<compile_context>
chip_gen: v6e
topology: v6e:2x2x1
jax: 0.10.0
libtpu: 0.0.40
codegen_flags: <defaults>
</compile_context>

<pallas_src>
import functools
import itertools

import numpy as np
import jax
import jax.numpy as jnp
from jax.experimental import pallas as pl
from jax.experimental.pallas import tpu as pltpu


def _rup(x, m):
    return ((x + m - 1) // m) * m


_SQRT_2_OVER_PI = 0.7978845608028654
_GN_EPS = 1e-5
_VMEM_LIMIT = 48 * 1024 * 1024          # safe on v5e/v6e (128 MiB) and v7x (64 MiB)
_GN_FUSE_MAX_ELEMS = 1 << 21            # fused single-pass GroupNorm below ~8 MB f32
_RESIDENT_MAX_BYTES = 16 * 1024 * 1024  # per-sample padded image residency cap
_MAX_ROW_BLOCK = 16                     # bounds in-kernel unrolling (RB * 9 taps)


def _pick_row_block(H, cap=_MAX_ROW_BLOCK):
    """Largest divisor of H that is <= cap."""
    for rb in range(min(H, cap), 0, -1):
        if H % rb == 0:
            return rb
    return 1


def _apply_act(y, act):
    if act == "gelu":
        # TODO(synk): PyTorch nn.GELU() is the exact erf form; lax.erf has no Mosaic
        # lowering, so the tanh approximation is used (~1e-3 level divergence).
        return 0.5 * y * (1.0 + jnp.tanh(_SQRT_2_OVER_PI * (y + 0.044715 * y * y * y)))
    if act == "sigmoid":
        return 1.0 / (1.0 + jnp.exp(-y))
    return y


# ----------------------------------------------------------------------------
# Pallas kernels
# ----------------------------------------------------------------------------

def _mm_bias_kernel(a_ref, b_ref, bias_ref, o_ref):
    o_ref[...] = (jnp.dot(a_ref[...], b_ref[...],
                          preferred_element_type=jnp.float32)
                  + bias_ref[...]).astype(o_ref.dtype)


def _left_mm_kernel(a_ref, x_ref, o_ref):
    o_ref[...] = jnp.dot(a_ref[...], x_ref[...],
                         preferred_element_type=jnp.float32)


# --- dense 3x3 conv: whole padded image resident in VMEM, RB output rows / step ---
def _conv3x3_block_kernel(xp_ref, w_ref, b_ref, o_ref, *, W, RB):
    # xp_ref: (H+2, W+2, Cin) full padded image (bf16), resident across the row axis.
    # w_ref: (9, Cin, Cout), b_ref: (1, Cout), o_ref: (RB, W, Cout).
    r0 = pl.program_id(1) * RB
    cout = o_ref.shape[-1]
    bias = b_ref[...]
    for r in range(RB):
        acc = jnp.zeros((W, cout), jnp.float32)
        for ky in range(3):
            row = xp_ref[r0 + r + ky]                       # (W+2, Cin)
            for kx in range(3):
                acc += jnp.dot(row[kx:kx + W, :], w_ref[ky * 3 + kx],
                               preferred_element_type=jnp.float32)
        o_ref[r] = (acc + bias).astype(o_ref.dtype)


# Fallback: one output row per grid step, three shifted halo-row windows.
def _conv3x3_row_kernel(xt_ref, xm_ref, xb_ref, w_ref, b_ref, o_ref, *, W):
    rows = (xt_ref, xm_ref, xb_ref)
    cout = o_ref.shape[-1]
    acc = jnp.zeros((W, cout), jnp.float32)
    for ky in range(3):
        for kx in range(3):
            acc += jnp.dot(rows[ky][pl.ds(kx, W), :], w_ref[ky * 3 + kx],
                           preferred_element_type=jnp.float32)
    o_ref[...] = (acc + b_ref[...]).astype(o_ref.dtype)


# --- depthwise (grouped) 3x3 conv: resident image, RB output rows / step (VPU) ---
def _dw_block_kernel(xp_ref, w_ref, b_ref, o_ref, *, W, RB):
    r0 = pl.program_id(1) * RB
    C = o_ref.shape[-1]
    bias = b_ref[...]
    for r in range(RB):
        acc = jnp.zeros((W, C), jnp.float32)
        for ky in range(3):
            row = xp_ref[r0 + r + ky]                       # (W+2, C)
            for kx in range(3):
                acc += row[kx:kx + W, :] * w_ref[pl.ds(ky * 3 + kx, 1), :]
        o_ref[r] = acc + bias


def _dw2_block_kernel(xp_ref, wa_ref, ba_ref, wb_ref, bb_ref,
                      oa_ref, ob_ref, *, W, RB):
    # Two depthwise convs sharing the same resident input (Y/Z encoder branches).
    r0 = pl.program_id(1) * RB
    C = oa_ref.shape[-1]
    ba = ba_ref[...]
    bb = bb_ref[...]
    for r in range(RB):
        acc_a = jnp.zeros((W, C), jnp.float32)
        acc_b = jnp.zeros((W, C), jnp.float32)
        for ky in range(3):
            row = xp_ref[r0 + r + ky]
            for kx in range(3):
                seg = row[kx:kx + W, :]
                k = ky * 3 + kx
                acc_a += seg * wa_ref[pl.ds(k, 1), :]
                acc_b += seg * wb_ref[pl.ds(k, 1), :]
        oa_ref[r] = acc_a + ba
        ob_ref[r] = acc_b + bb


# Fallback per-row depthwise kernels (very large per-sample images).
def _dw_row_kernel(xt_ref, xm_ref, xb_ref, w_ref, b_ref, o_ref, *, W):
    rows = (xt_ref, xm_ref, xb_ref)
    C = o_ref.shape[-1]
    acc = jnp.zeros((W, C), jnp.float32)
    for ky in range(3):
        for kx in range(3):
            acc += rows[ky][pl.ds(kx, W), :] * w_ref[pl.ds(ky * 3 + kx, 1), :]
    o_ref[...] = acc + b_ref[...]


def _dw2_row_kernel(xt_ref, xm_ref, xb_ref, wa_ref, ba_ref, wb_ref, bb_ref,
                    oa_ref, ob_ref, *, W):
    rows = (xt_ref, xm_ref, xb_ref)
    C = oa_ref.shape[-1]
    acc_a = jnp.zeros((W, C), jnp.float32)
    acc_b = jnp.zeros((W, C), jnp.float32)
    for ky in range(3):
        for kx in range(3):
            seg = rows[ky][pl.ds(kx, W), :]
            k = ky * 3 + kx
            acc_a += seg * wa_ref[pl.ds(k, 1), :]
            acc_b += seg * wb_ref[pl.ds(k, 1), :]
    oa_ref[...] = acc_a + ba_ref[...]
    ob_ref[...] = acc_b + bb_ref[...]


def _gn_fused_kernel(x_ref, g_ref, b_ref, o_ref, *, count, act):
    # Single-pass GroupNorm(num_groups=1) + affine + activation for one sample.
    x = x_ref[...]                              # (R, C)
    mean = jnp.sum(x) / count
    msq = jnp.sum(x * x) / count
    inv = jax.lax.rsqrt(msq - mean * mean + _GN_EPS)
    o_ref[...] = _apply_act((x - mean) * inv * g_ref[...] + b_ref[...], act)


def _gn_stats_kernel(x_ref, s_ref, q_ref):
    # Per-lane partial sums; the tiny cross-lane reduce happens outside.
    @pl.when(pl.program_id(1) == 0)
    def _():
        s_ref[...] = jnp.zeros_like(s_ref)
        q_ref[...] = jnp.zeros_like(q_ref)
    x = x_ref[...]
    s_ref[...] += jnp.sum(x, axis=0, keepdims=True)
    q_ref[...] += jnp.sum(x * x, axis=0, keepdims=True)


def _affine_act_kernel(x_ref, sc_ref, sh_ref, o_ref, *, act):
    o_ref[...] = _apply_act(x_ref[...] * sc_ref[...] + sh_ref[...], act)


def _add2_act_kernel(a_ref, b_ref, o_ref, *, act):
    o_ref[...] = _apply_act(a_ref[...] + b_ref[...], act)


def _add3_act_kernel(a_ref, b_ref, c_ref, o_ref, *, act):
    o_ref[...] = _apply_act(a_ref[...] + b_ref[...] + c_ref[...], act)


def _reparam_kernel(mu_ref, ls_ref, eps_ref, o_ref):
    o_ref[...] = mu_ref[...] + jnp.exp(ls_ref[...]) * eps_ref[...]


def _pool_max_kernel(p_ref, o_ref):
    o_ref[...] = jnp.max(p_ref[...], axis=0)


# ----------------------------------------------------------------------------
# Pallas wrappers (jitted leaf ops)
# ----------------------------------------------------------------------------

_MM_BM_CAP = 1024


@jax.jit
def matmul_bias(a, b, bias=None):
    """(M, K) @ (K, N) + bias[N].  Full-K / full-N blocks, bf16 ops, f32 out."""
    M, K = a.shape
    K2, N = b.shape
    assert K == K2
    if bias is None:
        bias = jnp.zeros((N,), jnp.float32)
    bm = _rup(M, 8) if M <= _MM_BM_CAP else _MM_BM_CAP
    Mp = _rup(M, bm)
    a_p = a.astype(jnp.bfloat16)
    if Mp != M:
        a_p = jnp.pad(a_p, ((0, Mp - M), (0, 0)))
    out = pl.pallas_call(
        _mm_bias_kernel,
        out_shape=jax.ShapeDtypeStruct((Mp, N), jnp.float32),
        grid=(Mp // bm,),
        in_specs=[
            pl.BlockSpec((bm, K), lambda i: (i, 0)),
            pl.BlockSpec((K, N), lambda i: (0, 0)),
            pl.BlockSpec((1, N), lambda i: (0, 0)),
        ],
        out_specs=pl.BlockSpec((bm, N), lambda i: (i, 0)),
        compiler_params=pltpu.CompilerParams(
            dimension_semantics=("parallel",),
            vmem_limit_bytes=_VMEM_LIMIT),
    )(a_p, b.astype(jnp.bfloat16), bias.astype(jnp.float32).reshape(1, N))
    return out[:M] if Mp != M else out


@jax.jit
def conv3x3(x_nhwc, w_oihw, bias=None):
    """Dense 3x3 conv (padding=1): resident padded image + RB rows per grid step."""
    N, H, W, Cin = x_nhwc.shape
    Cout = w_oihw.shape[0]
    if bias is None:
        bias = jnp.zeros((Cout,), jnp.float32)
    xp = jnp.pad(x_nhwc, ((0, 0), (1, 1), (1, 1), (0, 0))).astype(jnp.bfloat16)
    w9 = jnp.transpose(w_oihw, (2, 3, 1, 0)).reshape(9, Cin, Cout).astype(jnp.bfloat16)
    b2 = bias.astype(jnp.float32).reshape(1, Cout)
    cp = pltpu.CompilerParams(dimension_semantics=("parallel", "parallel"),
                              vmem_limit_bytes=_VMEM_LIMIT)

    if (H + 2) * (W + 2) * Cin * 2 <= _RESIDENT_MAX_BYTES:
        RB = _pick_row_block(H)
        return pl.pallas_call(
            functools.partial(_conv3x3_block_kernel, W=W, RB=RB),
            out_shape=jax.ShapeDtypeStruct((N, H, W, Cout), jnp.float32),
            grid=(N, H // RB),
            in_specs=[
                pl.BlockSpec((None, H + 2, W + 2, Cin), lambda n, h: (n, 0, 0, 0)),
                pl.BlockSpec((9, Cin, Cout), lambda n, h: (0, 0, 0)),
                pl.BlockSpec((1, Cout), lambda n, h: (0, 0)),
            ],
            out_specs=pl.BlockSpec((None, RB, W, Cout), lambda n, h: (n, h, 0, 0)),
            compiler_params=cp,
        )(xp, w9, b2)

    # Fallback for very large per-sample images: one row per step, halo windows.
    return pl.pallas_call(
        functools.partial(_conv3x3_row_kernel, W=W),
        out_shape=jax.ShapeDtypeStruct((N, H, W, Cout), jnp.float32),
        grid=(N, H),
        in_specs=[
            pl.BlockSpec((None, None, W + 2, Cin), lambda n, h: (n, h, 0, 0)),
            pl.BlockSpec((None, None, W + 2, Cin), lambda n, h: (n, h + 1, 0, 0)),
            pl.BlockSpec((None, None, W + 2, Cin), lambda n, h: (n, h + 2, 0, 0)),
            pl.BlockSpec((9, Cin, Cout), lambda n, h: (0, 0, 0)),
            pl.BlockSpec((1, Cout), lambda n, h: (0, 0)),
        ],
        out_specs=pl.BlockSpec((None, None, W, Cout), lambda n, h: (n, h, 0, 0)),
        compiler_params=cp,
    )(xp, xp, xp, w9, b2)


@jax.jit
def depthwise_conv3x3(x_nhwc, w9, bias):
    """Per-channel 3x3 conv (groups=C, padding=1).  w9: (9, C), bias: (C,)."""
    N, H, W, C = x_nhwc.shape
    xp = jnp.pad(x_nhwc, ((0, 0), (1, 1), (1, 1), (0, 0)))
    w9 = w9.astype(jnp.float32)
    b2 = bias.astype(jnp.float32).reshape(1, C)
    cp = pltpu.CompilerParams(dimension_semantics=("parallel", "parallel"),
                              vmem_limit_bytes=_VMEM_LIMIT)

    if (H + 2) * (W + 2) * C * 4 <= _RESIDENT_MAX_BYTES:
        RB = _pick_row_block(H)
        return pl.pallas_call(
            functools.partial(_dw_block_kernel, W=W, RB=RB),
            out_shape=jax.ShapeDtypeStruct((N, H, W, C), jnp.float32),
            grid=(N, H // RB),
            in_specs=[
                pl.BlockSpec((None, H + 2, W + 2, C), lambda n, h: (n, 0, 0, 0)),
                pl.BlockSpec((9, C), lambda n, h: (0, 0)),
                pl.BlockSpec((1, C), lambda n, h: (0, 0)),
            ],
            out_specs=pl.BlockSpec((None, RB, W, C), lambda n, h: (n, h, 0, 0)),
            compiler_params=cp,
        )(xp, w9, b2)

    return pl.pallas_call(
        functools.partial(_dw_row_kernel, W=W),
        out_shape=jax.ShapeDtypeStruct((N, H, W, C), jnp.float32),
        grid=(N, H),
        in_specs=[
            pl.BlockSpec((None, None, W + 2, C), lambda n, h: (n, h, 0, 0)),
            pl.BlockSpec((None, None, W + 2, C), lambda n, h: (n, h + 1, 0, 0)),
            pl.BlockSpec((None, None, W + 2, C), lambda n, h: (n, h + 2, 0, 0)),
            pl.BlockSpec((9, C), lambda n, h: (0, 0)),
            pl.BlockSpec((1, C), lambda n, h: (0, 0)),
        ],
        out_specs=pl.BlockSpec((None, None, W, C), lambda n, h: (n, h, 0, 0)),
        compiler_params=cp,
    )(xp, xp, xp, w9, b2)


@jax.jit
def depthwise_conv3x3_dual(x_nhwc, w9a, ba, w9b, bb):
    """Two depthwise 3x3 convs over the same input (shared halo reads)."""
    N, H, W, C = x_nhwc.shape
    xp = jnp.pad(x_nhwc, ((0, 0), (1, 1), (1, 1), (0, 0)))
    w9a = w9a.astype(jnp.float32)
    w9b = w9b.astype(jnp.float32)
    ba2 = ba.astype(jnp.float32).reshape(1, C)
    bb2 = bb.astype(jnp.float32).reshape(1, C)
    cp = pltpu.CompilerParams(dimension_semantics=("parallel", "parallel"),
                              vmem_limit_bytes=_VMEM_LIMIT)
    out_shape = (jax.ShapeDtypeStruct((N, H, W, C), jnp.float32),
                 jax.ShapeDtypeStruct((N, H, W, C), jnp.float32))

    if (H + 2) * (W + 2) * C * 4 <= _RESIDENT_MAX_BYTES:
        RB = _pick_row_block(H)
        ya, yb = pl.pallas_call(
            functools.partial(_dw2_block_kernel, W=W, RB=RB),
            out_shape=out_shape,
            grid=(N, H // RB),
            in_specs=[
                pl.BlockSpec((None, H + 2, W + 2, C), lambda n, h: (n, 0, 0, 0)),
                pl.BlockSpec((9, C), lambda n, h: (0, 0)),
                pl.BlockSpec((1, C), lambda n, h: (0, 0)),
                pl.BlockSpec((9, C), lambda n, h: (0, 0)),
                pl.BlockSpec((1, C), lambda n, h: (0, 0)),
            ],
            out_specs=(pl.BlockSpec((None, RB, W, C), lambda n, h: (n, h, 0, 0)),
                       pl.BlockSpec((None, RB, W, C), lambda n, h: (n, h, 0, 0))),
            compiler_params=cp,
        )(xp, w9a, ba2, w9b, bb2)
        return ya, yb

    ya, yb = pl.pallas_call(
        functools.partial(_dw2_row_kernel, W=W),
        out_shape=out_shape,
        grid=(N, H),
        in_specs=[
            pl.BlockSpec((None, None, W + 2, C), lambda n, h: (n, h, 0, 0)),
            pl.BlockSpec((None, None, W + 2, C), lambda n, h: (n, h + 1, 0, 0)),
            pl.BlockSpec((None, None, W + 2, C), lambda n, h: (n, h + 2, 0, 0)),
            pl.BlockSpec((9, C), lambda n, h: (0, 0)),
            pl.BlockSpec((1, C), lambda n, h: (0, 0)),
            pl.BlockSpec((9, C), lambda n, h: (0, 0)),
            pl.BlockSpec((1, C), lambda n, h: (0, 0)),
        ],
        out_specs=(pl.BlockSpec((None, None, W, C), lambda n, h: (n, h, 0, 0)),
                   pl.BlockSpec((None, None, W, C), lambda n, h: (n, h, 0, 0))),
        compiler_params=cp,
    )(xp, xp, xp, w9a, ba2, w9b, bb2)
    return ya, yb


def _tile_rows(R, cap=2048):
    rt = min(cap, _rup(R, 8))
    return rt, _rup(R, rt)


@functools.partial(jax.jit, static_argnames=("act",))
def group_norm_act(x_nhwc, gamma, beta, act):
    """GroupNorm(num_groups=1) per sample with optional fused activation."""
    N, H, W, C = x_nhwc.shape
    R = H * W
    x3 = x_nhwc.reshape(N, R, C)

    if R * C <= _GN_FUSE_MAX_ELEMS:
        y = pl.pallas_call(
            functools.partial(_gn_fused_kernel, count=float(R * C), act=act),
            out_shape=jax.ShapeDtypeStruct((N, R, C), jnp.float32),
            grid=(N,),
            in_specs=[pl.BlockSpec((None, R, C), lambda n: (n, 0, 0)),
                      pl.BlockSpec((1, C), lambda n: (0, 0)),
                      pl.BlockSpec((1, C), lambda n: (0, 0))],
            out_specs=pl.BlockSpec((None, R, C), lambda n: (n, 0, 0)),
            compiler_params=pltpu.CompilerParams(
                dimension_semantics=("parallel",),
                vmem_limit_bytes=_VMEM_LIMIT),
        )(x3, gamma.reshape(1, C), beta.reshape(1, C))
        return y.reshape(N, H, W, C)

    # Two-pass fallback for large per-sample tensors (per-lane partial sums).
    rt, Rp = _tile_rows(R)
    xpad = jnp.pad(x3, ((0, 0), (0, Rp - R), (0, 0))) if Rp != R else x3
    grid = (N, Rp // rt)
    s, q = pl.pallas_call(
        _gn_stats_kernel,
        out_shape=(jax.ShapeDtypeStruct((N, 1, C), jnp.float32),
                   jax.ShapeDtypeStruct((N, 1, C), jnp.float32)),
        grid=grid,
        in_specs=[pl.BlockSpec((None, rt, C), lambda n, i: (n, i, 0))],
        out_specs=(pl.BlockSpec((None, 1, C), lambda n, i: (n, 0, 0)),
                   pl.BlockSpec((None, 1, C), lambda n, i: (n, 0, 0))),
        compiler_params=pltpu.CompilerParams(
            dimension_semantics=("parallel", "arbitrary")),
    )(xpad)
    cnt = float(R * C)
    mean = jnp.sum(s[:, 0, :], axis=-1) / cnt
    var = jnp.sum(q[:, 0, :], axis=-1) / cnt - mean * mean
    inv = jax.lax.rsqrt(var + _GN_EPS)
    scale = gamma[None, :] * inv[:, None]
    shift = beta[None, :] - mean[:, None] * scale
    y = pl.pallas_call(
        functools.partial(_affine_act_kernel, act=act),
        out_shape=jax.ShapeDtypeStruct((N, Rp, C), jnp.float32),
        grid=grid,
        in_specs=[pl.BlockSpec((None, rt, C), lambda n, i: (n, i, 0)),
                  pl.BlockSpec((None, 1, C), lambda n, i: (n, 0, 0)),
                  pl.BlockSpec((None, 1, C), lambda n, i: (n, 0, 0))],
        out_specs=pl.BlockSpec((None, rt, C), lambda n, i: (n, i, 0)),
        compiler_params=pltpu.CompilerParams(
            dimension_semantics=("parallel", "parallel")),
    )(xpad, scale.reshape(N, 1, C), shift.reshape(N, 1, C))
    if Rp != R:
        y = y[:, :R]
    return y.reshape(N, H, W, C)


@functools.partial(jax.jit, static_argnames=("act",))
def add_act(a, b, act):
    shape = a.shape
    C = shape[-1]
    a2, b2 = a.reshape(-1, C), b.reshape(-1, C)
    R = a2.shape[0]
    rt, Rp = _tile_rows(R)
    if Rp != R:
        a2 = jnp.pad(a2, ((0, Rp - R), (0, 0)))
        b2 = jnp.pad(b2, ((0, Rp - R), (0, 0)))
    out = pl.pallas_call(
        functools.partial(_add2_act_kernel, act=act),
        out_shape=jax.ShapeDtypeStruct((Rp, C), jnp.float32),
        grid=(Rp // rt,),
        in_specs=[pl.BlockSpec((rt, C), lambda i: (i, 0)),
                  pl.BlockSpec((rt, C), lambda i: (i, 0))],
        out_specs=pl.BlockSpec((rt, C), lambda i: (i, 0)),
        compiler_params=pltpu.CompilerParams(dimension_semantics=("parallel",)),
    )(a2, b2)
    return out[:R].reshape(shape)


@functools.partial(jax.jit, static_argnames=("act",))
def add3_act(a, b, c, act):
    shape = a.shape
    C = shape[-1]
    a2, b2, c2 = (t.reshape(-1, C) for t in (a, b, c))
    R = a2.shape[0]
    rt, Rp = _tile_rows(R)
    if Rp != R:
        a2 = jnp.pad(a2, ((0, Rp - R), (0, 0)))
        b2 = jnp.pad(b2, ((0, Rp - R), (0, 0)))
        c2 = jnp.pad(c2, ((0, Rp - R), (0, 0)))
    out = pl.pallas_call(
        functools.partial(_add3_act_kernel, act=act),
        out_shape=jax.ShapeDtypeStruct((Rp, C), jnp.float32),
        grid=(Rp // rt,),
        in_specs=[pl.BlockSpec((rt, C), lambda i: (i, 0)),
                  pl.BlockSpec((rt, C), lambda i: (i, 0)),
                  pl.BlockSpec((rt, C), lambda i: (i, 0))],
        out_specs=pl.BlockSpec((rt, C), lambda i: (i, 0)),
        compiler_params=pltpu.CompilerParams(dimension_semantics=("parallel",)),
    )(a2, b2, c2)
    return out[:R].reshape(shape)


@jax.jit
def reparam(mu, log_sigma, eps):
    R, C = mu.shape
    return pl.pallas_call(
        _reparam_kernel,
        out_shape=jax.ShapeDtypeStruct((R, C), jnp.float32),
        grid=(1,),
        in_specs=[pl.BlockSpec((R, C), lambda i: (0, 0))] * 3,
        out_specs=pl.BlockSpec((R, C), lambda i: (0, 0)),
    )(mu, log_sigma, eps)


@jax.jit
def maxpool3(x_nhwc):
    """MaxPool2d(kernel=3, stride=3, padding=0)."""
    N, H, W, C = x_nhwc.shape
    Ho, Wo = H // 3, W // 3
    p = x_nhwc[:, :Ho * 3, :Wo * 3, :].reshape(N, Ho, 3, Wo, 3, C)
    p = jnp.transpose(p, (2, 4, 0, 1, 3, 5)).reshape(9, N * Ho * Wo, C)
    R = N * Ho * Wo
    rt, Rp = _tile_rows(R, cap=1024)
    if Rp != R:
        p = jnp.pad(p, ((0, 0), (0, Rp - R), (0, 0)))
    out = pl.pallas_call(
        _pool_max_kernel,
        out_shape=jax.ShapeDtypeStruct((Rp, C), jnp.float32),
        grid=(Rp // rt,),
        in_specs=[pl.BlockSpec((9, rt, C), lambda i: (0, i, 0))],
        out_specs=pl.BlockSpec((rt, C), lambda i: (i, 0)),
        compiler_params=pltpu.CompilerParams(dimension_semantics=("parallel",)),
    )(p)
    return out[:R].reshape(N, Ho, Wo, C)


@jax.jit
def _upsample_axis1(x3, A):
    """(B, S, F) -> (B, So, F) via per-batch left-matmul with A: (So, S)."""
    B, S, F = x3.shape
    So = A.shape[0]
    return pl.pallas_call(
        _left_mm_kernel,
        out_shape=jax.ShapeDtypeStruct((B, So, F), jnp.float32),
        grid=(B,),
        in_specs=[pl.BlockSpec((So, S), lambda b: (0, 0)),
                  pl.BlockSpec((None, S, F), lambda b: (b, 0, 0))],
        out_specs=pl.BlockSpec((None, So, F), lambda b: (b, 0, 0)),
        compiler_params=pltpu.CompilerParams(
            dimension_semantics=("parallel",),
            vmem_limit_bytes=_VMEM_LIMIT),
    )(A, x3)


def _interp_matrix_align_corners(out_size, in_size):
    A = np.zeros((out_size, in_size), np.float32)
    if in_size == 1:
        A[:, 0] = 1.0
        return jnp.asarray(A)
    scale = (in_size - 1) / (out_size - 1)
    for o in range(out_size):
        src = o * scale
        lo = min(int(np.floor(src)), in_size - 1)
        hi = min(lo + 1, in_size - 1)
        w = src - lo
        A[o, lo] += 1.0 - w
        A[o, hi] += w
    return jnp.asarray(A)


def upsample3_bilinear(x_nhwc):
    """nn.Upsample(scale_factor=3, mode='bilinear', align_corners=True), NHWC."""
    N, H, W, C = x_nhwc.shape
    Ho, Wo = 3 * H, 3 * W
    Ah = _interp_matrix_align_corners(Ho, H)
    Aw = _interp_matrix_align_corners(Wo, W)
    y = _upsample_axis1(x_nhwc.reshape(N, H, W * C), Ah).reshape(N, Ho, W, C)
    y = _upsample_axis1(y.reshape(N * Ho, W, C), Aw).reshape(N, Ho, Wo, C)
    return y


# ----------------------------------------------------------------------------
# Layer helpers (plain-JAX glue around the Pallas leaf ops)
# ----------------------------------------------------------------------------

def conv1x1(x_nhwc, w_oihw, bias):
    N, H, W, Cin = x_nhwc.shape
    Cout = w_oihw.shape[0]
    y = matmul_bias(x_nhwc.reshape(-1, Cin), w_oihw[:, :, 0, 0].T, bias)
    return y.reshape(N, H, W, Cout)


def conv1x1_transpose(x_nhwc, w_iohw, bias):
    # ConvTranspose2d(kernel=1): weight (Cin, Cout, 1, 1).
    N, H, W, Cin = x_nhwc.shape
    Cout = w_iohw.shape[1]
    y = matmul_bias(x_nhwc.reshape(-1, Cin), w_iohw[:, :, 0, 0], bias)
    return y.reshape(N, H, W, Cout)


def linear(x, w_oi, bias):
    return matmul_bias(x, w_oi.T, bias)


def _dw_w9(w_c133):
    return w_c133[:, 0].reshape(w_c133.shape[0], 9).T    # (9, C)


# ----------------------------------------------------------------------------
# Parameter init (deterministic, synthetic)
# ----------------------------------------------------------------------------

_key_iter = itertools.count()
_PARAM_ROOT = jax.random.PRNGKey(1234)


def _winit(shape, scale=0.05):
    k = jax.random.fold_in(_PARAM_ROOT, next(_key_iter))
    return scale * jax.random.normal(k, shape, jnp.float32)


def init_double_conv(in_c, out_c, mid_c=None):
    mid = mid_c if mid_c else out_c
    return {
        "w1": _winit((mid, in_c, 3, 3)),
        "gn1_w": jnp.ones((mid,), jnp.float32),
        "gn1_b": jnp.zeros((mid,), jnp.float32),
        "w2": _winit((out_c, mid, 3, 3)),
        "gn2_w": jnp.ones((out_c,), jnp.float32),
        "gn2_b": jnp.zeros((out_c,), jnp.float32),
    }


def init_down(in_c, out_c):
    return {"dc1": init_double_conv(in_c, in_c), "dc2": init_double_conv(in_c, out_c)}


def init_up(in_c, out_c):
    return {"dc1": init_double_conv(in_c, in_c),
            "dc2": init_double_conv(in_c, out_c, in_c // 2)}


def init_depthwise_down(in_c, depth_c, out_c):
    p = {}
    for nm in ("X", "Y", "Z"):
        p[nm + "_depth_w"] = _winit((in_c, 1, 3, 3))
        p[nm + "_depth_b"] = _winit((in_c,))
        p[nm + "_point_w"] = _winit((depth_c, in_c, 1, 1))
        p[nm + "_point_b"] = _winit((depth_c,))
    p["total_w"] = _winit((out_c, 3 * depth_c, 1, 1))
    p["total_b"] = _winit((out_c,))
    return p


def init_depthwise_up(in_c, depth_c, out_c):
    p = {"total_w": _winit((in_c, depth_c * 3, 1, 1)),
         "total_b": _winit((depth_c * 3,))}
    for nm in ("X", "Y", "Z"):
        p[nm + "_point_w"] = _winit((depth_c, out_c, 1, 1))
        p[nm + "_point_b"] = _winit((out_c,))
        p[nm + "_depth_w"] = _winit((out_c, 1, 3, 3))
        p[nm + "_depth_b"] = _winit((out_c,))
    return p


def init_vae(base=243, depth_c=81, channel_list=(64, 128, 256, 512), latent_dim=512):
    cl = list(channel_list)
    flat = (base // 27) ** 2
    return {
        "enc_dw": init_depthwise_down(base, depth_c, cl[0]),
        "down1": init_down(cl[0], cl[1]),
        "down2": init_down(cl[1], cl[2]),
        "down3": init_down(cl[2], cl[3]),
        "enc_dc": init_double_conv(cl[3], 1),
        "mu_w": _winit((latent_dim, flat)), "mu_b": _winit((latent_dim,)),
        "sig_w": _winit((latent_dim, flat)), "sig_b": _winit((latent_dim,)),
        "dec_lin_w": _winit((flat, latent_dim)), "dec_lin_b": _winit((flat,)),
        "dec_dc": init_double_conv(1, cl[3]),
        "up1": init_up(cl[3], cl[2]),
        "up2": init_up(cl[2], cl[1]),
        "up3": init_up(cl[1], cl[0]),
        "dec_dw": init_depthwise_up(cl[0], depth_c, base),
    }


# ----------------------------------------------------------------------------
# Module forward functions
# ----------------------------------------------------------------------------

def apply_double_conv(x, p, residual=False):
    h = conv3x3(x, p["w1"], None)
    h = group_norm_act(h, p["gn1_w"], p["gn1_b"], act="gelu")
    h = conv3x3(h, p["w2"], None)
    h = group_norm_act(h, p["gn2_w"], p["gn2_b"], act="none")
    if residual:
        return add_act(x, h, "gelu")
    return h


def apply_down(x, p):
    x = maxpool3(x)
    x = apply_double_conv(x, p["dc1"], residual=True)
    return apply_double_conv(x, p["dc2"])


def apply_up(x, p):
    x = upsample3_bilinear(x)
    x = apply_double_conv(x, p["dc1"])
    return apply_double_conv(x, p["dc2"])


def apply_depthwise_down(img_nchw, p):
    x_in = jnp.transpose(img_nchw, (0, 2, 3, 1))       # NCHW -> NHWC for the X branch
    # img.permute(0,3,1,2) (NCHW) viewed as NHWC equals the raw NCHW buffer.
    yz_in = img_nchw

    xd = depthwise_conv3x3(x_in, _dw_w9(p["X_depth_w"]), p["X_depth_b"])
    x = conv1x1(xd, p["X_point_w"], p["X_point_b"])
    # Y and Z consume the identical tensor (matches the PyTorch code): share halo reads.
    yd, zd = depthwise_conv3x3_dual(yz_in,
                                    _dw_w9(p["Y_depth_w"]), p["Y_depth_b"],
                                    _dw_w9(p["Z_depth_w"]), p["Z_depth_b"])
    y = conv1x1(yd, p["Y_point_w"], p["Y_point_b"])
    z = conv1x1(zd, p["Z_point_w"], p["Z_point_b"])
    t = jnp.concatenate([x, y, z], axis=-1)
    return conv1x1(t, p["total_w"], p["total_b"])


def apply_depthwise_up(x, p):
    t = conv1x1_transpose(x, p["total_w"], p["total_b"])
    depth_c = t.shape[-1] // 3
    outs = []
    for i, nm in enumerate(("X", "Y", "Z")):
        c = t[..., i * depth_c:(i + 1) * depth_c]
        h = conv1x1_transpose(c, p[nm + "_point_w"], p[nm + "_point_b"])
        # Stride-1 ConvTranspose2d(k=3, p=1, groups=C) == depthwise conv with a
        # spatially flipped kernel and padding 1.
        wf = p[nm + "_depth_w"][:, :, ::-1, ::-1]
        outs.append(depthwise_conv3x3(h, _dw_w9(wf), p[nm + "_depth_b"]))
    return add3_act(outs[0], outs[1], outs[2], "sigmoid")


def vae_forward(x_nchw, params, eps):
    # ----- encoder -----
    h = apply_depthwise_down(x_nchw, params["enc_dw"])
    h = apply_down(h, params["down1"])
    h = apply_down(h, params["down2"])
    h = apply_down(h, params["down3"])
    h = apply_double_conv(h, params["enc_dc"])
    flat = h.reshape(h.shape[0], -1)
    mu = linear(flat, params["mu_w"], params["mu_b"])
    log_sigma = linear(flat, params["sig_w"], params["sig_b"])
    z = reparam(mu, log_sigma, eps)                    # mu + exp(log_sigma) * eps
    sigma = jnp.exp(log_sigma)
    kl = jnp.sum(sigma ** 2 + mu ** 2 - jnp.log(sigma) - 0.5)
    # ----- decoder -----
    d = linear(z, params["dec_lin_w"], params["dec_lin_b"])
    s = int(np.sqrt(d.shape[1]))
    d = d.reshape(-1, s, s, 1)                         # Unflatten(-1, (1, s, s)) in NHWC
    d = apply_double_conv(d, params["dec_dc"])
    d = apply_up(d, params["up1"])
    d = apply_up(d, params["up2"])
    d = apply_up(d, params["up3"])
    out = apply_depthwise_up(d, params["dec_dw"])
    return jnp.transpose(out, (0, 3, 1, 2)), kl        # back to NCHW


# ----------------------------------------------------------------------------
if __name__ == "__main__":
    # The architecture ties channels == H == W (the permute trick in DepthWiseDown)
    # and needs three /3 poolings, so the smallest consistent instantiation has a
    # 27x27x27 input.  (The reference model uses base=243, depth_c=81,
    # channel_list=(64,128,256,512), latent_dim=512 -- same code path, larger shapes.)
    BASE = 27
    LATENT = 32
    params = init_vae(base=BASE, depth_c=BASE // 3,
                      channel_list=(8, 16, 32, 64), latent_dim=LATENT)

    x = jax.random.normal(jax.random.PRNGKey(0), (1, BASE, BASE, BASE), jnp.float32)
    eps = jax.random.normal(jax.random.PRNGKey(1), (1, LATENT), jnp.float32)

    out, kl = vae_forward(x, params, eps)
    out = jax.block_until_ready(out)
    jax.block_until_ready(kl)

    assert out.shape == (1, BASE, BASE, BASE), out.shape
    assert bool(jnp.isfinite(out).all())
    print("KERNEL_OK")
</pallas_src>

<mosaic_0001>
module attributes {stable_mosaic.version = 11 : i64} {
  func.func @_dw_block_kernel(%arg0: i32, %arg1: i32, %arg2: memref<1x29x29x27xf32, #tpu.memory_space<vmem>>, %arg3: memref<9x27xf32, #tpu.memory_space<vmem>>, %arg4: memref<1x27xf32, #tpu.memory_space<vmem>>, %arg5: memref<1x9x27x27xf32, #tpu.memory_space<vmem>>) attributes {dimension_semantics = [#tpu.dimension_semantics<parallel>, #tpu.dimension_semantics<parallel>], iteration_bounds = array<i64: 1, 3>, scalar_prefetch = 0 : i64, scratch_operands = 0 : i64, tpu.core_type = #tpu.core_type<tc>, window_params = [{transform_indices = @transform_0, window_bounds = array<i64: 1, 29, 29, 27>}, {pipeline_mode = #tpu.pipeline_mode<synchronous>, transform_indices = @transform_1, window_bounds = array<i64: 9, 27>}, {pipeline_mode = #tpu.pipeline_mode<synchronous>, transform_indices = @transform_2, window_bounds = array<i64: 1, 27>}, {transform_indices = @transform_3, window_bounds = array<i64: 1, 9, 27, 27>}]} {
    %c9_i32 = arith.constant 9 : i32
    %0 = arith.muli %arg1, %c9_i32 : i32
    %c0 = arith.constant 0 : index
    %c0_0 = arith.constant 0 : index
    %1 = vector.load %arg4[%c0, %c0_0] : memref<1x27xf32, #tpu.memory_space<vmem>>, vector<1x27xf32>
    %cst = arith.constant 0.000000e+00 : f32
    %2 = vector.broadcast %cst : f32 to vector<27x27xf32>
    %c0_i32 = arith.constant 0 : i32
    %3 = arith.addi %0, %c0_i32 : i32
    %c0_i32_1 = arith.constant 0 : i32
    %4 = arith.addi %3, %c0_i32_1 : i32
    %c0_2 = arith.constant 0 : index
    %5 = arith.index_cast %4 : i32 to index
    %c0_3 = arith.constant 0 : index
    %c0_4 = arith.constant 0 : index
    %6 = vector.load %arg2[%c0_2, %5, %c0_3, %c0_4] : memref<1x29x29x27xf32, #tpu.memory_space<vmem>>, vector<1x1x29x27xf32>
    %7 = vector.shape_cast %6 : vector<1x1x29x27xf32> to vector<29x27xf32>
    %8 = vector.extract_strided_slice %7 {offsets = [0, 0], sizes = [27, 27], strides = [1, 1]} : vector<29x27xf32> to vector<27x27xf32>
    %c0_5 = arith.constant 0 : index
    %c0_6 = arith.constant 0 : index
    %9 = vector.load %arg3[%c0_5, %c0_6] : memref<9x27xf32, #tpu.memory_space<vmem>>, vector<1x27xf32>
    %10 = vector.broadcast %9 : vector<1x27xf32> to vector<27x27xf32>
    %11 = arith.mulf %8, %10 : vector<27x27xf32>
    %12 = arith.addf %2, %11 : vector<27x27xf32>
    %13 = vector.extract_strided_slice %7 {offsets = [1, 0], sizes = [27, 27], strides = [1, 1]} : vector<29x27xf32> to vector<27x27xf32>
    %c1 = arith.constant 1 : index
    %c0_7 = arith.constant 0 : index
    %14 = vector.load %arg3[%c1, %c0_7] : memref<9x27xf32, #tpu.memory_space<vmem>>, vector<1x27xf32>
    %15 = vector.broadcast %14 : vector<1x27xf32> to vector<27x27xf32>
    %16 = arith.mulf %13, %15 : vector<27x27xf32>
    %17 = arith.addf %12, %16 : vector<27x27xf32>
    %18 = vector.extract_strided_slice %7 {offsets = [2, 0], sizes = [27, 27], strides = [1, 1]} : vector<29x27xf32> to vector<27x27xf32>
    %c2 = arith.constant 2 : index
    %c0_8 = arith.constant 0 : index
    %19 = vector.load %arg3[%c2, %c0_8] : memref<9x27xf32, #tpu.memory_space<vmem>>, vector<1x27xf32>
    %20 = vector.broadcast %19 : vector<1x27xf32> to vector<27x27xf32>
    %21 = arith.mulf %18, %20 : vector<27x27xf32>
    %22 = arith.addf %17, %21 : vector<27x27xf32>
    %c0_i32_9 = arith.constant 0 : i32
    %23 = arith.addi %0, %c0_i32_9 : i32
    %c1_i32 = arith.constant 1 : i32
    %24 = arith.addi %23, %c1_i32 : i32
    %c0_10 = arith.constant 0 : index
    %25 = arith.index_cast %24 : i32 to index
    %c0_11 = arith.constant 0 : index
    %c0_12 = arith.constant 0 : index
    %26 = vector.load %arg2[%c0_10, %25, %c0_11, %c0_12] : memref<1x29x29x27xf32, #tpu.memory_space<vmem>>, vector<1x1x29x27xf32>
    %27 = vector.shape_cast %26 : vector<1x1x29x27xf32> to vector<29x27xf32>
    %28 = vector.extract_strided_slice %27 {offsets = [0, 0], sizes = [27, 27], strides = [1, 1]} : vector<29x27xf32> to vector<27x27xf32>
    %c3 = arith.constant 3 : index
    %c0_13 = arith.constant 0 : index
    %29 = vector.load %arg3[%c3, %c0_13] : memref<9x27xf32, #tpu.memory_space<vmem>>, vector<1x27xf32>
    %30 = vector.broadcast %29 : vector<1x27xf32> to vector<27x27xf32>
    %31 = arith.mulf %28, %30 : vector<27x27xf32>
    %32 = arith.addf %22, %31 : vector<27x27xf32>
    %33 = vector.extract_strided_slice %27 {offsets = [1, 0], sizes = [27, 27], strides = [1, 1]} : vector<29x27xf32> to vector<27x27xf32>
    %c4 = arith.constant 4 : index
    %c0_14 = arith.constant 0 : index
    %34 = vector.load %arg3[%c4, %c0_14] : memref<9x27xf32, #tpu.memory_space<vmem>>, vector<1x27xf32>
    %35 = vector.broadcast %34 : vector<1x27xf32> to vector<27x27xf32>
    %36 = arith.mulf %33, %35 : vector<27x27xf32>
    %37 = arith.addf %32, %36 : vector<27x27xf32>
    %38 = vector.extract_strided_slice %27 {offsets = [2, 0], sizes = [27, 27], strides = [1, 1]} : vector<29x27xf32> to vector<27x27xf32>
    %c5 = arith.constant 5 : index
    %c0_15 = arith.constant 0 : index
    %39 = vector.load %arg3[%c5, %c0_15] : memref<9x27xf32, #tpu.memory_space<vmem>>, vector<1x27xf32>
    %40 = vector.broadcast %39 : vector<1x27xf32> to vector<27x27xf32>
    %41 = arith.mulf %38, %40 : vector<27x27xf32>
    %42 = arith.addf %37, %41 : vector<27x27xf32>
    %c0_i32_16 = arith.constant 0 : i32
    %43 = arith.addi %0, %c0_i32_16 : i32
    %c2_i32 = arith.constant 2 : i32
    %44 = arith.addi %43, %c2_i32 : i32
    %c0_17 = arith.constant 0 : index
    %45 = arith.index_cast %44 : i32 to index
    %c0_18 = arith.constant 0 : index
    %c0_19 = arith.constant 0 : index
    %46 = vector.load %arg2[%c0_17, %45, %c0_18, %c0_19] : memref<1x29x29x27xf32, #tpu.memory_space<vmem>>, vector<1x1x29x27xf32>
    %47 = vector.shape_cast %46 : vector<1x1x29x27xf32> to vector<29x27xf32>
    %48 = vector.extract_strided_slice %47 {offsets = [0, 0], sizes = [27, 27], strides = [1, 1]} : vector<29x27xf32> to vector<27x27xf32>
    %c6 = arith.constant 6 : index
    %c0_20 = arith.constant 0 : index
    %49 = vector.load %arg3[%c6, %c0_20] : memref<9x27xf32, #tpu.memory_space<vmem>>, vector<1x27xf32>
    %50 = vector.broadcast %49 : vector<1x27xf32> to vector<27x27xf32>
    %51 = arith.mulf %48, %50 : vector<27x27xf32>
    %52 = arith.addf %42, %51 : vector<27x27xf32>
    %53 = vector.extract_strided_slice %47 {offsets = [1, 0], sizes = [27, 27], strides = [1, 1]} : vector<29x27xf32> to vector<27x27xf32>
    %c7 = arith.constant 7 : index
    %c0_21 = arith.constant 0 : index
    %54 = vector.load %arg3[%c7, %c0_21] : memref<9x27xf32, #tpu.memory_space<vmem>>, vector<1x27xf32>
    %55 = vector.broadcast %54 : vector<1x27xf32> to vector<27x27xf32>
    %56 = arith.mulf %53, %55 : vector<27x27xf32>
    %57 = arith.addf %52, %56 : vector<27x27xf32>
    %58 = vector.extract_strided_slice %47 {offsets = [2, 0], sizes = [27, 27], strides = [1, 1]} : vector<29x27xf32> to vector<27x27xf32>
    %c8 = arith.constant 8 : index
    %c0_22 = arith.constant 0 : index
    %59 = vector.load %arg3[%c8, %c0_22] : memref<9x27xf32, #tpu.memory_space<vmem>>, vector<1x27xf32>
    %60 = vector.broadcast %59 : vector<1x27xf32> to vector<27x27xf32>
    %61 = arith.mulf %58, %60 : vector<27x27xf32>
    %62 = arith.addf %57, %61 : vector<27x27xf32>
    %63 = vector.broadcast %1 : vector<1x27xf32> to vector<27x27xf32>
    %64 = arith.addf %62, %63 : vector<27x27xf32>
    %c0_23 = arith.constant 0 : index
    %c0_24 = arith.constant 0 : index
    %c0_25 = arith.constant 0 : index
    %c0_26 = arith.constant 0 : index
    %65 = vector.load %arg5[%c0_23, %c0_24, %c0_25, %c0_26] : memref<1x9x27x27xf32, #tpu.memory_space<vmem>>, vector<1x1x27x27xf32>
    %66 = vector.shape_cast %65 : vector<1x1x27x27xf32> to vector<27x27xf32>
    %67 = vector.shape_cast %64 : vector<27x27xf32> to vector<1x1x27x27xf32>
    tpu.vector_store %arg5[%c0_23, %c0_24, %c0_25, %c0_26], %67 {strides = array<i32>} : memref<1x9x27x27xf32, #tpu.memory_space<vmem>>, vector<1x1x27x27xf32>,
    %cst_27 = arith.constant 0.000000e+00 : f32
    %68 = vector.broadcast %cst_27 : f32 to vector<27x27xf32>
    %c1_i32_28 = arith.constant 1 : i32
    %69 = arith.addi %0, %c1_i32_28 : i32
    %c0_i32_29 = arith.constant 0 : i32
    %70 = arith.addi %69, %c0_i32_29 : i32
    %c0_30 = arith.constant 0 : index
    %71 = arith.index_cast %70 : i32 to index
    %c0_31 = arith.constant 0 : index
    %c0_32 = arith.constant 0 : index
    %72 = vector.load %arg2[%c0_30, %71, %c0_31, %c0_32] : memref<1x29x29x27xf32, #tpu.memory_space<vmem>>, vector<1x1x29x27xf32>
    %73 = vector.shape_cast %72 : vector<1x1x29x27xf32> to vector<29x27xf32>
    %74 = vector.extract_strided_slice %73 {offsets = [0, 0], sizes = [27, 27], strides = [1, 1]} : vector<29x27xf32> to vector<27x27xf32>
    %c0_33 = arith.constant 0 : index
    %c0_34 = arith.constant 0 : index
    %75 = vector.load %arg3[%c0_33, %c0_34] : memref<9x27xf32, #tpu.memory_space<vmem>>, vector<1x27xf32>
    %76 = vector.broadcast %75 : vector<1x27xf32> to vector<27x27xf32>
    %77 = arith.mulf %74, %76 : vector<27x27xf32>
    %78 = arith.addf %68, %77 : vector<27x27xf32>
    %79 = vector.extract_strided_slice %73 {offsets = [1, 0], sizes = [27, 27], strides = [1, 1]} : vector<29x27xf32> to vector<27x27xf32>
    %c1_35 = arith.constant 1 : index
    %c0_36 = arith.constant 0 : index
    %80 = vector.load %arg3[%c1_35, %c0_36] : memref<9x27xf32, #tpu.memory_space<vmem>>, vector<1x27xf32>
    %81 = vector.broadcast %80 : vector<1x27xf32> to vector<27x27xf32>
    %82 = arith.mulf %79, %81 : vector<27x27xf32>
    %83 = arith.addf %78, %82 : vector<27x27xf32>
    %84 = vector.extract_strided_slice %73 {offsets = [2, 0], sizes = [27, 27], strides = [1, 1]} : vector<29x27xf32> to vector<27x27xf32>
    %c2_37 = arith.constant 2 : index
    %c0_38 = arith.constant 0 : index
    %85 = vector.load %arg3[%c2_37, %c0_38] : memref<9x27xf32, #tpu.memory_space<vmem>>, vector<1x27xf32>
    %86 = vector.broadcast %85 : vector<1x27xf32> to vector<27x27xf32>
    %87 = arith.mulf %84, %86 : vector<27x27xf32>
    %88 = arith.addf %83, %87 : vector<27x27xf32>
    %c1_i32_39 = arith.constant 1 : i32
    %89 = arith.addi %0, %c1_i32_39 : i32
    %c1_i32_40 = arith.constant 1 : i32
    %90 = arith.addi %89, %c1_i32_40 : i32
    %c0_41 = arith.constant 0 : index
    %91 = arith.index_cast %90 : i32 to index
    %c0_42 = arith.constant 0 : index
    %c0_43 = arith.constant 0 : index
    %92 = vector.load %arg2[%c0_41, %91, %c0_42, %c0_43] : memref<1x29x29x27xf32, #tpu.memory_space<vmem>>, vector<1x1x29x27xf32>
    %93 = vector.shape_cast %92 : vector<1x1x29x27xf32> to vector<29x27xf32>
    %94 = vector.extract_strided_slice %93 {offsets = [0, 0], sizes = [27, 27], strides = [1, 1]} : vector<29x27xf32> to vector<27x27xf32>
    %c3_44 = arith.constant 3 : index
    %c0_45 = arith.constant 0 : index
    %95 = vector.load %arg3[%c3_44, %c0_45] : memref<9x27xf32, #tpu.memory_space<vmem>>, vector<1x27xf32>
    %96 = vector.broadcast %95 : vector<1x27xf32> to vector<27x27xf32>
    %97 = arith.mulf %94, %96 : vector<27x27xf32>
    %98 = arith.addf %88, %97 : vector<27x27xf32>
    %99 = vector.extract_strided_slice %93 {offsets = [1, 0], sizes = [27, 27], strides = [1, 1]} : vector<29x27xf32> to vector<27x27xf32>
    %c4_46 = arith.constant 4 : index
    %c0_47 = arith.constant 0 : index
    %100 = vector.load %arg3[%c4_46, %c0_47] : memref<9x27xf32, #tpu.memory_space<vmem>>, vector<1x27xf32>
    %101 = vector.broadcast %100 : vector<1x27xf32> to vector<27x27xf32>
    %102 = arith.mulf %99, %101 : vector<27x27xf32>
    %103 = arith.addf %98, %102 : vector<27x27xf32>
    %104 = vector.extract_strided_slice %93 {offsets = [2, 0], sizes = [27, 27], strides = [1, 1]} : vector<29x27xf32> to vector<27x27xf32>
    %c5_48 = arith.constant 5 : index
    %c0_49 = arith.constant 0 : index
    %105 = vector.load %arg3[%c5_48, %c0_49] : memref<9x27xf32, #tpu.memory_space<vmem>>, vector<1x27xf32>
    %106 = vector.broadcast %105 : vector<1x27xf32> to vector<27x27xf32>
    %107 = arith.mulf %104, %106 : vector<27x27xf32>
    %108 = arith.addf %103, %107 : vector<27x27xf32>
    %c1_i32_50 = arith.constant 1 : i32
    %109 = arith.addi %0, %c1_i32_50 : i32
    %c2_i32_51 = arith.constant 2 : i32
    %110 = arith.addi %109, %c2_i32_51 : i32
    %c0_52 = arith.constant 0 : index
    %111 = arith.index_cast %110 : i32 to index
    %c0_53 = arith.constant 0 : index
    %c0_54 = arith.constant 0 : index
    %112 = vector.load %arg2[%c0_52, %111, %c0_53, %c0_54] : memref<1x29x29x27xf32, #tpu.memory_space<vmem>>, vector<1x1x29x27xf32>
    %113 = vector.shape_cast %112 : vector<1x1x29x27xf32> to vector<29x27xf32>
    %114 = vector.extract_strided_slice %113 {offsets = [0, 0], sizes = [27, 27], strides = [1, 1]} : vector<29x27xf32> to vector<27x27xf32>
    %c6_55 = arith.constant 6 : index
    %c0_56 = arith.constant 0 : index
    %115 = vector.load %arg3[%c6_55, %c0_56] : memref<9x27xf32, #tpu.memory_space<vmem>>, vector<1x27xf32>
    %116 = vector.broadcast %115 : vector<1x27xf32> to vector<27x27xf32>
    %117 = arith.mulf %114, %116 : vector<27x27xf32>
    %118 = arith.addf %108, %117 : vector<27x27xf32>
    %119 = vector.extract_strided_slice %113 {offsets = [1, 0], sizes = [27, 27], strides = [1, 1]} : vector<29x27xf32> to vector<27x27xf32>
    %c7_57 = arith.constant 7 : index
    %c0_58 = arith.constant 0 : index
    %120 = vector.load %arg3[%c7_57, %c0_58] : memref<9x27xf32, #tpu.memory_space<vmem>>, vector<1x27xf32>
    %121 = vector.broadcast %120 : vector<1x27xf32> to vector<27x27xf32>
    %122 = arith.mulf %119, %121 : vector<27x27xf32>
    %123 = arith.addf %118, %122 : vector<27x27xf32>
    %124 = vector.extract_strided_slice %113 {offsets = [2, 0], sizes = [27, 27], strides = [1, 1]} : vector<29x27xf32> to vector<27x27xf32>
    %c8_59 = arith.constant 8 : index
    %c0_60 = arith.constant 0 : index
    %125 = vector.load %arg3[%c8_59, %c0_60] : memref<9x27xf32, #tpu.memory_space<vmem>>, vector<1x27xf32>
    %126 = vector.broadcast %125 : vector<1x27xf32> to vector<27x27xf32>
    %127 = arith.mulf %124, %126 : vector<27x27xf32>
    %128 = arith.addf %123, %127 : vector<27x27xf32>
    %129 = vector.broadcast %1 : vector<1x27xf32> to vector<27x27xf32>
    %130 = arith.addf %128, %129 : vector<27x27xf32>
    %c0_61 = arith.constant 0 : index
    %c1_62 = arith.constant 1 : index
    %c0_63 = arith.constant 0 : index
    %c0_64 = arith.constant 0 : index
    %131 = vector.load %arg5[%c0_61, %c1_62, %c0_63, %c0_64] : memref<1x9x27x27xf32, #tpu.memory_space<vmem>>, vector<1x1x27x27xf32>
    %132 = vector.shape_cast %131 : vector<1x1x27x27xf32> to vector<27x27xf32>
    %133 = vector.shape_cast %130 : vector<27x27xf32> to vector<1x1x27x27xf32>
    tpu.vector_store %arg5[%c0_61, %c1_62, %c0_63, %c0_64], %133 {strides = array<i32>} : memref<1x9x27x27xf32, #tpu.memory_space<vmem>>, vector<1x1x27x27xf32>,
    %cst_65 = arith.constant 0.000000e+00 : f32
    %134 = vector.broadcast %cst_65 : f32 to vector<27x27xf32>
    %c2_i32_66 = arith.constant 2 : i32
    %135 = arith.addi %0, %c2_i32_66 : i32
    %c0_i32_67 = arith.constant 0 : i32
    %136 = arith.addi %135, %c0_i32_67 : i32
    %c0_68 = arith.constant 0 : index
    %137 = arith.index_cast %136 : i32 to index
    %c0_69 = arith.constant 0 : index
    %c0_70 = arith.constant 0 : index
    %138 = vector.load %arg2[%c0_68, %137, %c0_69, %c0_70] : memref<1x29x29x27xf32, #tpu.memory_space<vmem>>, vector<1x1x29x27xf32>
    %139 = vector.shape_cast %138 : vector<1x1x29x27xf32> to vector<29x27xf32>
    %140 = vector.extract_strided_slice %139 {offsets = [0, 0], sizes = [27, 27], strides = [1, 1]} : vector<29x27xf32> to vector<27x27xf32>
    %c0_71 = arith.constant 0 : index
    %c0_72 = arith.constant 0 : index
    %141 = vector.load %arg3[%c0_71, %c0_72] : memref<9x27xf32, #tpu.memory_space<vmem>>, vector<1x27xf32>
    %142 = vector.broadcast %141 : vector<1x27xf32> to vector<27x27xf32>
    %143 = arith.mulf %140, %142 : vector<27x27xf32>
    %144 = arith.addf %134, %143 : vector<27x27xf32>
    %145 = vector.extract_strided_slice %139 {offsets = [1, 0], sizes = [27, 27], strides = [1, 1]} : vector<29x27xf32> to vector<27x27xf32>
    %c1_73 = arith.constant 1 : index
    %c0_74 = arith.constant 0 : index
    %146 = vector.load %arg3[%c1_73, %c0_74] : memref<9x27xf32, #tpu.memory_space<vmem>>, vector<1x27xf32>
    %147 = vector.broadcast %146 : vector<1x27xf32> to vector<27x27xf32>
    %148 = arith.mulf %145, %147 : vector<27x27xf32>
    %149 = arith.addf %144, %148 : vector<27x27xf32>
    %150 = vector.extract_strided_slice %139 {offsets = [2, 0], sizes = [27, 27], strides = [1, 1]} : vector<29x27xf32> to vector<27x27xf32>
    %c2_75 = arith.constant 2 : index
    %c0_76 = arith.constant 0 : index
    %151 = vector.load %arg3[%c2_75, %c0_76] : memref<9x27xf32, #tpu.memory_space<vmem>>, vector<1x27xf32>
    %152 = vector.broadcast %151 : vector<1x27xf32> to vector<27x27xf32>
    %153 = arith.mulf %150, %152 : vector<27x27xf32>
    %154 = arith.addf %149, %153 : vector<27x27xf32>
    %c2_i32_77 = arith.constant 2 : i32
    %155 = arith.addi %0, %c2_i32_77 : i32
    %c1_i32_78 = arith.constant 1 : i32
    %156 = arith.addi %155, %c1_i32_78 : i32
    %c0_79 = arith.constant 0 : index
    %157 = arith.index_cast %156 : i32 to index
    %c0_80 = arith.constant 0 : index
    %c0_81 = arith.constant 0 : index
    %158 = vector.load %arg2[%c0_79, %157, %c0_80, %c0_81] : memref<1x29x29x27xf32, #tpu.memory_space<vmem>>, vector<1x1x29x27xf32>
    %159 = vector.shape_cast %158 : vector<1x1x29x27xf32> to vector<29x27xf32>
    %160 = vector.extract_strided_slice %159 {offsets = [0, 0], sizes = [27, 27], strides = [1, 1]} : vector<29x27xf32> to vector<27x27xf32>
    %c3_82 = arith.constant 3 : index
    %c0_83 = arith.constant 0 : index
    %161 = vector.load %arg3[%c3_82, %c0_83] : memref<9x27xf32, #tpu.memory_space<vmem>>, vector<1x27xf32>
    %162 = vector.broadcast %161 : vector<1x27xf32> to vector<27x27xf32>
    %163 = arith.mulf %160, %162 : vector<27x27xf32>
    %164 = arith.addf %154, %163 : vector<27x27xf32>
    %165 = vector.extract_strided_slice %159 {offsets = [1, 0], sizes = [27, 27], strides = [1, 1]} : vector<29x27xf32> to vector<27x27xf32>
    %c4_84 = arith.constant 4 : index
    %c0_85 = arith.constant 0 : index
    %166 = vector.load %arg3[%c4_84, %c0_85] : memref<9x27xf32, #tpu.memory_space<vmem>>, vector<1x27xf32>
    %167 = vector.broadcast %166 : vector<1x27xf32> to vector<27x27xf32>
    %168 = arith.mulf %165, %167 : vector<27x27xf32>
    %169 = arith.addf %164, %168 : vector<27x27xf32>
    %170 = vector.extract_strided_slice %159 {offsets = [2, 0], sizes = [27, 27], strides = [1, 1]} : vector<29x27xf32> to vector<27x27xf32>
    %c5_86 = arith.constant 5 : index
    %c0_87 = arith.constant 0 : index
    %171 = vector.load %arg3[%c5_86, %c0_87] : memref<9x27xf32, #tpu.memory_space<vmem>>, vector<1x27xf32>
    %172 = vector.broadcast %171 : vector<1x27xf32> to vector<27x27xf32>
    %173 = arith.mulf %170, %172 : vector<27x27xf32>
    %174 = arith.addf %169, %173 : vector<27x27xf32>
    %c2_i32_88 = arith.constant 2 : i32
    %175 = arith.addi %0, %c2_i32_88 : i32
    %c2_i32_89 = arith.constant 2 : i32
    %176 = arith.addi %175, %c2_i32_89 : i32
    %c0_90 = arith.constant 0 : index
    %177 = arith.index_cast %176 : i32 to index
    %c0_91 = arith.constant 0 : index
    %c0_92 = arith.constant 0 : index
    %178 = vector.load %arg2[%c0_90, %177, %c0_91, %c0_92] : memref<1x29x29x27xf32, #tpu.memory_space<vmem>>, vector<1x1x29x27xf32>
    %179 = vector.shape_cast %178 : vector<1x1x29x27xf32> to vector<29x27xf32>
    %180 = vector.extract_strided_slice %179 {offsets = [0, 0], sizes = [27, 27], strides = [1, 1]} : vector<29x27xf32> to vector<27x27xf32>
    %c6_93 = arith.constant 6 : index
    %c0_94 = arith.constant 0 : index
    %181 = vector.load %arg3[%c6_93, %c0_94] : memref<9x27xf32, #tpu.memory_space<vmem>>, vector<1x27xf32>
    %182 = vector.broadcast %181 : vector<1x27xf32> to vector<27x27xf32>
    %183 = arith.mulf %180, %182 : vector<27x27xf32>
    %184 = arith.addf %174, %183 : vector<27x27xf32>
    %185 = vector.extract_strided_slice %179 {offsets = [1, 0], sizes = [27, 27], strides = [1, 1]} : vector<29x27xf32> to vector<27x27xf32>
    %c7_95 = arith.constant 7 : index
    %c0_96 = arith.constant 0 : index
    %186 = vector.load %arg3[%c7_95, %c0_96] : memref<9x27xf32, #tpu.memory_space<vmem>>, vector<1x27xf32>
    %187 = vector.broadcast %186 : vector<1x27xf32> to vector<27x27xf32>
    %188 = arith.mulf %185, %187 : vector<27x27xf32>
    %189 = arith.addf %184, %188 : vector<27x27xf32>
    %190 = vector.extract_strided_slice %179 {offsets = [2, 0], sizes = [27, 27], strides = [1, 1]} : vector<29x27xf32> to vector<27x27xf32>
    %c8_97 = arith.constant 8 : index
    %c0_98 = arith.constant 0 : index
    %191 = vector.load %arg3[%c8_97, %c0_98] : memref<9x27xf32, #tpu.memory_space<vmem>>, vector<1x27xf32>
    %192 = vector.broadcast %191 : vector<1x27xf32> to vector<27x27xf32>
    %193 = arith.mulf %190, %192 : vector<27x27xf32>
    %194 = arith.addf %189, %193 : vector<27x27xf32>
    %195 = vector.broadcast %1 : vector<1x27xf32> to vector<27x27xf32>
    %196 = arith.addf %194, %195 : vector<27x27xf32>
    %c0_99 = arith.constant 0 : index
    %c2_100 = arith.constant 2 : index
    %c0_101 = arith.constant 0 : index
    %c0_102 = arith.constant 0 : index
    %197 = vector.load %arg5[%c0_99, %c2_100, %c0_101, %c0_102] : memref<1x9x27x27xf32, #tpu.memory_space<vmem>>, vector<1x1x27x27xf32>
    %198 = vector.shape_cast %197 : vector<1x1x27x27xf32> to vector<27x27xf32>
    %199 = vector.shape_cast %196 : vector<27x27xf32> to vector<1x1x27x27xf32>
    tpu.vector_store %arg5[%c0_99, %c2_100, %c0_101, %c0_102], %199 {strides = array<i32>} : memref<1x9x27x27xf32, #tpu.memory_space<vmem>>, vector<1x1x27x27xf32>,
    %cst_103 = arith.constant 0.000000e+00 : f32
    %200 = vector.broadcast %cst_103 : f32 to vector<27x27xf32>
    %c3_i32 = arith.constant 3 : i32
    %201 = arith.addi %0, %c3_i32 : i32
    %c0_i32_104 = arith.constant 0 : i32
    %202 = arith.addi %201, %c0_i32_104 : i32
    %c0_105 = arith.constant 0 : index
    %203 = arith.index_cast %202 : i32 to index
    %c0_106 = arith.constant 0 : index
    %c0_107 = arith.constant 0 : index
    %204 = vector.load %arg2[%c0_105, %203, %c0_106, %c0_107] : memref<1x29x29x27xf32, #tpu.memory_space<vmem>>, vector<1x1x29x27xf32>
    %205 = vector.shape_cast %204 : vector<1x1x29x27xf32> to vector<29x27xf32>
    %206 = vector.extract_strided_slice %205 {offsets = [0, 0], sizes = [27, 27], strides = [1, 1]} : vector<29x27xf32> to vector<27x27xf32>
    %c0_108 = arith.constant 0 : index
    %c0_109 = arith.constant 0 : index
    %207 = vector.load %arg3[%c0_108, %c0_109] : memref<9x27xf32, #tpu.memory_space<vmem>>, vector<1x27xf32>
    %208 = vector.broadcast %207 : vector<1x27xf32> to vector<27x27xf32>
    %209 = arith.mulf %206, %208 : vector<27x27xf32>
    %210 = arith.addf %200, %209 : vector<27x27xf32>
    %211 = vector.extract_strided_slice %205 {offsets = [1, 0], sizes = [27, 27], strides = [1, 1]} : vector<29x27xf32> to vector<27x27xf32>
    %c1_110 = arith.constant 1 : index
    %c0_111 = arith.constant 0 : index
    %212 = vector.load %arg3[%c1_110, %c0_111] : memref<9x27xf32, #tpu.memory_space<vmem>>, vector<1x27xf32>
    %213 = vector.broadcast %212 : vector<1x27xf32> to vector<27x27xf32>
    %214 = arith.mulf %211, %213 : vector<27x27xf32>
    %215 = arith.addf %210, %214 : vector<27x27xf32>
    %216 = vector.extract_strided_slice %205 {offsets = [2, 0], sizes = [27, 27], strides = [1, 1]} : vector<29x27xf32> to vector<27x27xf32>
    %c2_112 = arith.constant 2 : index
    %c0_113 = arith.constant 0 : index
    %217 = vector.load %arg3[%c2_112, %c0_113] : memref<9x27xf32, #tpu.memory_space<vmem>>, vector<1x27xf32>
    %218 = vector.broadcast %217 : vector<1x27xf32> to vector<27x27xf32>
    %219 = arith.mulf %216, %218 : vector<27x27xf32>
    %220 = arith.addf %215, %219 : vector<27x27xf32>
    %c3_i32_114 = arith.constant 3 : i32
    %221 = arith.addi %0, %c3_i32_114 : i32
    %c1_i32_115 = arith.constant 1 : i32
    %222 = arith.addi %221, %c1_i32_115 : i32
    %c0_116 = arith.constant 0 : index
    %223 = arith.index_cast %222 : i32 to index
    %c0_117 = arith.constant 0 : index
    %c0_118 = arith.constant 0 : index
    %224 = vector.load %arg2[%c0_116, %223, %c0_117, %c0_118] : memref<1x29x29x27xf32, #tpu.memory_space<vmem>>, vector<1x1x29x27xf32>
    %225 = vector.shape_cast %224 : vector<1x1x29x27xf32> to vector<29x27xf32>
    %226 = vector.extract_strided_slice %225 {offsets = [0, 0], sizes = [27, 27], strides = [1, 1]} : vector<29x27xf32> to vector<27x27xf32>
    %c3_119 = arith.constant 3 : index
    %c0_120 = arith.constant 0 : index
    %227 = vector.load %arg3[%c3_119, %c0_120] : memref<9x27xf32, #tpu.memory_space<vmem>>, vector<1x27xf32>
    %228 = vector.broadcast %227 : vector<1x27xf32> to vector<27x27xf32>
    %229 = arith.mulf %226, %228 : vector<27x27xf32>
    %230 = arith.addf %220, %229 : vector<27x27xf32>
    %231 = vector.extract_strided_slice %225 {offsets = [1, 0], sizes = [27, 27], strides = [1, 1]} : vector<29x27xf32> to vector<27x27xf32>
    %c4_121 = arith.constant 4 : index
    %c0_122 = arith.constant 0 : index
    %232 = vector.load %arg3[%c4_121, %c0_122] : memref<9x27xf32, #tpu.memory_space<vmem>>, vector<1x27xf32>
    %233 = vector.broadcast %232 : vector<1x27xf32> to vector<27x27xf32>
    %234 = arith.mulf %231, %233 : vector<27x27xf32>
    %235 = arith.addf %230, %234 : vector<27x27xf32>
    %236 = vector.extract_strided_slice %225 {offsets = [2, 0], sizes = [27, 27], strides = [1, 1]} : vector<29x27xf32> to vector<27x27xf32>
    %c5_123 = arith.constant 5 : index
    %c0_124 = arith.constant 0 : index
    %237 = vector.load %arg3[%c5_123, %c0_124] : memref<9x27xf32, #tpu.memory_space<vmem>>, vector<1x27xf32>
    %238 = vector.broadcast %237 : vector<1x27xf32> to vector<27x27xf32>
    %239 = arith.mulf %236, %238 : vector<27x27xf32>
    %240 = arith.addf %235, %239 : vector<27x27xf32>
    %c3_i32_125 = arith.constant 3 : i32
    %241 = arith.addi %0, %c3_i32_125 : i32
    %c2_i32_126 = arith.constant 2 : i32
    %242 = arith.addi %241, %c2_i32_126 : i32
    %c0_127 = arith.constant 0 : index
    %243 = arith.index_cast %242 : i32 to index
    %c0_128 = arith.constant 0 : index
    %c0_129 = arith.constant 0 : index
    %244 = vector.load %arg2[%c0_127, %243, %c0_128, %c0_129] : memref<1x29x29x27xf32, #tpu.memory_space<vmem>>, vector<1x1x29x27xf32>
    %245 = vector.shape_cast %244 : vector<1x1x29x27xf32> to vector<29x27xf32>
    %246 = vector.extract_strided_slice %245 {offsets = [0, 0], sizes = [27, 27], strides = [1, 1]} : vector<29x27xf32> to vector<27x27xf32>
    %c6_130 = arith.constant 6 : index
    %c0_131 = arith.constant 0 : index
    %247 = vector.load %arg3[%c6_130, %c0_131] : memref<9x27xf32, #tpu.memory_space<vmem>>, vector<1x27xf32>
    %248 = vector.broadcast %247 : vector<1x27xf32> to vector<27x27xf32>
    %249 = arith.mulf %246, %248 : vector<27x27xf32>
    %250 = arith.addf %240, %249 : vector<27x27xf32>
    %251 = vector.extract_strided_slice %245 {offsets = [1, 0], sizes = [27, 27], strides = [1, 1]} : vector<29x27xf32> to vector<27x27xf32>
    %c7_132 = arith.constant 7 : index
    %c0_133 = arith.constant 0 : index
    %252 = vector.load %arg3[%c7_132, %c0_133] : memref<9x27xf32, #tpu.memory_space<vmem>>, vector<1x27xf32>
    %253 = vector.broadcast %252 : vector<1x27xf32> to vector<27x27xf32>
    %254 = arith.mulf %251, %253 : vector<27x27xf32>
    %255 = arith.addf %250, %254 : vector<27x27xf32>
    %256 = vector.extract_strided_slice %245 {offsets = [2, 0], sizes = [27, 27], strides = [1, 1]} : vector<29x27xf32> to vector<27x27xf32>
    %c8_134 = arith.constant 8 : index
    %c0_135 = arith.constant 0 : index
    %257 = vector.load %arg3[%c8_134, %c0_135] : memref<9x27xf32, #tpu.memory_space<vmem>>, vector<1x27xf32>
    %258 = vector.broadcast %257 : vector<1x27xf32> to vector<27x27xf32>
    %259 = arith.mulf %256, %258 : vector<27x27xf32>
    %260 = arith.addf %255, %259 : vector<27x27xf32>
    %261 = vector.broadcast %1 : vector<1x27xf32> to vector<27x27xf32>
    %262 = arith.addf %260, %261 : vector<27x27xf32>
    %c0_136 = arith.constant 0 : index
    %c3_137 = arith.constant 3 : index
    %c0_138 = arith.constant 0 : index
    %c0_139 = arith.constant 0 : index
    %263 = vector.load %arg5[%c0_136, %c3_137, %c0_138, %c0_139] : memref<1x9x27x27xf32, #tpu.memory_space<vmem>>, vector<1x1x27x27xf32>
    %264 = vector.shape_cast %263 : vector<1x1x27x27xf32> to vector<27x27xf32>
    %265 = vector.shape_cast %262 : vector<27x27xf32> to vector<1x1x27x27xf32>
    tpu.vector_store %arg5[%c0_136, %c3_137, %c0_138, %c0_139], %265 {strides = array<i32>} : memref<1x9x27x27xf32, #tpu.memory_space<vmem>>, vector<1x1x27x27xf32>,
    %cst_140 = arith.constant 0.000000e+00 : f32
    %266 = vector.broadcast %cst_140 : f32 to vector<27x27xf32>
    %c4_i32 = arith.constant 4 : i32
    %267 = arith.addi %0, %c4_i32 : i32
    %c0_i32_141 = arith.constant 0 : i32
    %268 = arith.addi %267, %c0_i32_141 : i32
    %c0_142 = arith.constant 0 : index
    %269 = arith.index_cast %268 : i32 to index
    %c0_143 = arith.constant 0 : index
    %c0_144 = arith.constant 0 : index
    %270 = vector.load %arg2[%c0_142, %269, %c0_143, %c0_144] : memref<1x29x29x27xf32, #tpu.memory_space<vmem>>, vector<1x1x29x27xf32>
    %271 = vector.shape_cast %270 : vector<1x1x29x27xf32> to vector<29x27xf32>
    %272 = vector.extract_strided_slice %271 {offsets = [0, 0], sizes = [27, 27], strides = [1, 1]} : vector<29x27xf32> to vector<27x27xf32>
    %c0_145 = arith.constant 0 : index
    %c0_146 = arith.constant 0 : index
    %273 = vector.load %arg3[%c0_145, %c0_146] : memref<9x27xf32, #tpu.memory_space<vmem>>, vector<1x27xf32>
    %274 = vector.broadcast %273 : vector<1x27xf32> to vector<27x27xf32>
    %275 = arith.mulf %272, %274 : vector<27x27xf32>
    %276 = arith.addf %266, %275 : vector<27x27xf32>
    %277 = vector.extract_strided_slice %271 {offsets = [1, 0], sizes = [27, 27], strides = [1, 1]} : vector<29x27xf32> to vector<27x27xf32>
    %c1_147 = arith.constant 1 : index
    %c0_148 = arith.constant 0 : index
    %278 = vector.load %arg3[%c1_147, %c0_148] : memref<9x27xf32, #tpu.memory_space<vmem>>, vector<1x27xf32>
    %279 = vector.broadcast %278 : vector<1x27xf32> to vector<27x27xf32>
    %280 = arith.mulf %277, %279 : vector<27x27xf32>
    %281 = arith.addf %276, %280 : vector<27x27xf32>
    %282 = vector.extract_strided_slice %271 {offsets = [2, 0], sizes = [27, 27], strides = [1, 1]} : vector<29x27xf32> to vector<27x27xf32>
    %c2_149 = arith.constant 2 : index
    %c0_150 = arith.constant 0 : index
    %283 = vector.load %arg3[%c2_149, %c0_150] : memref<9x27xf32, #tpu.memory_space<vmem>>, vector<1x27xf32>
    %284 = vector.broadcast %283 : vector<1x27xf32> to vector<27x27xf32>
    %285 = arith.mulf %282, %284 : vector<27x27xf32>
    %286 = arith.addf %281, %285 : vector<27x27xf32>
    %c4_i32_151 = arith.constant 4 : i32
    %287 = arith.addi %0, %c4_i32_151 : i32
    %c1_i32_152 = arith.constant 1 : i32
    %288 = arith.addi %287, %c1_i32_152 : i32
    %c0_153 = arith.constant 0 : index
    %289 = arith.index_cast %288 : i32 to index
    %c0_154 = arith.constant 0 : index
    %c0_155 = arith.constant 0 : index
    %290 = vector.load %arg2[%c0_153, %289, %c0_154, %c0_155] : memref<1x29x29x27xf32, #tpu.memory_space<vmem>>, vector<1x1x29x27xf32>
    %291 = vector.shape_cast %290 : vector<1x1x29x27xf32> to vector<29x27xf32>
    %292 = vector.extract_strided_slice %291 {offsets = [0, 0], sizes = [27, 27], strides = [1, 1]} : vector<29x27xf32> to vector<27x27xf32>
    %c3_156 = arith.constant 3 : index
    %c0_157 = arith.constant 0 : index
    %293 = vector.load %arg3[%c3_156, %c0_157] : memref<9x27xf32, #tpu.memory_space<vmem>>, vector<1x27xf32>
    %294 = vector.broadcast %293 : vector<1x27xf32> to vector<27x27xf32>
    %295 = arith.mulf %292, %294 : vector<27x27xf32>
    %296 = arith.addf %286, %295 : vector<27x27xf32>
    %297 = vector.extract_strided_slice %291 {offsets = [1, 0], sizes = [27, 27], strides = [1, 1]} : vector<29x27xf32> to vector<27x27xf32>
    %c4_158 = arith.constant 4 : index
    %c0_159 = arith.constant 0 : index
    %298 = vector.load %arg3[%c4_158, %c0_159] : memref<9x27xf32, #tpu.memory_space<vmem>>, vector<1x27xf32>
    %299 = vector.broadcast %298 : vector<1x27xf32> to vector<27x27xf32>
    %300 = arith.mulf %297, %299 : vector<27x27xf32>
    %301 = arith.addf %296, %300 : vector<27x27xf32>
    %302 = vector.extract_strided_slice %291 {offsets = [2, 0], sizes = [27, 27], strides = [1, 1]} : vector<29x27xf32> to vector<27x27xf32>
    %c5_160 = arith.constant 5 : index
    %c0_161 = arith.constant 0 : index
    %303 = vector.load %arg3[%c5_160, %c0_161] : memref<9x27xf32, #tpu.memory_space<vmem>>, vector<1x27xf32>
    %304 = vector.broadcast %303 : vector<1x27xf32> to vector<27x27xf32>
    %305 = arith.mulf %302, %304 : vector<27x27xf32>
    %306 = arith.addf %301, %305 : vector<27x27xf32>
    %c4_i32_162 = arith.constant 4 : i32
    %307 = arith.addi %0, %c4_i32_162 : i32
    %c2_i32_163 = arith.constant 2 : i32
    %308 = arith.addi %307, %c2_i32_163 : i32
    %c0_164 = arith.constant 0 : index
    %309 = arith.index_cast %308 : i32 to index
    %c0_165 = arith.constant 0 : index
    %c0_166 = arith.constant 0 : index
    %310 = vector.load %arg2[%c0_164, %309, %c0_165, %c0_166] : memref<1x29x29x27xf32, #tpu.memory_space<vmem>>, vector<1x1x29x27xf32>
    %311 = vector.shape_cast %310 : vector<1x1x29x27xf32> to vector<29x27xf32>
    %312 = vector.extract_strided_slice %311 {offsets = [0, 0], sizes = [27, 27], strides = [1, 1]} : vector<29x27xf32> to vector<27x27xf32>
    %c6_167 = arith.constant 6 : index
    %c0_168 = arith.constant 0 : index
    %313 = vector.load %arg3[%c6_167, %c0_168] : memref<9x27xf32, #tpu.memory_space<vmem>>, vector<1x27xf32>
    %314 = vector.broadcast %313 : vector<1x27xf32> to vector<27x27xf32>
    %315 = arith.mulf %312, %314 : vector<27x27xf32>
    %316 = arith.addf %306, %315 : vector<27x27xf32>
    %317 = vector.extract_strided_slice %311 {offsets = [1, 0], sizes = [27, 27], strides = [1, 1]} : vector<29x27xf32> to vector<27x27xf32>
    %c7_169 = arith.constant 7 : index
    %c0_170 = arith.constant 0 : index
    %318 = vector.load %arg3[%c7_169, %c0_170] : memref<9x27xf32, #tpu.memory_space<vmem>>, vector<1x27xf32>
    %319 = vector.broadcast %318 : vector<1x27xf32> to vector<27x27xf32>
    %320 = arith.mulf %317, %319 : vector<27x27xf32>
    %321 = arith.addf %316, %320 : vector<27x27xf32>
    %322 = vector.extract_strided_slice %311 {offsets = [2, 0], sizes = [27, 27], strides = [1, 1]} : vector<29x27xf32> to vector<27x27xf32>
    %c8_171 = arith.constant 8 : index
    %c0_172 = arith.constant 0 : index
    %323 = vector.load %arg3[%c8_171, %c0_172] : memref<9x27xf32, #tpu.memory_space<vmem>>, vector<1x27xf32>
    %324 = vector.broadcast %323 : vector<1x27xf32> to vector<27x27xf32>
    %325 = arith.mulf %322, %324 : vector<27x27xf32>
    %326 = arith.addf %321, %325 : vector<27x27xf32>
    %327 = vector.broadcast %1 : vector<1x27xf32> to vector<27x27xf32>
    %328 = arith.addf %326, %327 : vector<27x27xf32>
    %c0_173 = arith.constant 0 : index
    %c4_174 = arith.constant 4 : index
    %c0_175 = arith.constant 0 : index
    %c0_176 = arith.constant 0 : index
    %329 = vector.load %arg5[%c0_173, %c4_174, %c0_175, %c0_176] : memref<1x9x27x27xf32, #tpu.memory_space<vmem>>, vector<1x1x27x27xf32>
    %330 = vector.shape_cast %329 : vector<1x1x27x27xf32> to vector<27x27xf32>
    %331 = vector.shape_cast %328 : vector<27x27xf32> to vector<1x1x27x27xf32>
    tpu.vector_store %arg5[%c0_173, %c4_174, %c0_175, %c0_176], %331 {strides = array<i32>} : memref<1x9x27x27xf32, #tpu.memory_space<vmem>>, vector<1x1x27x27xf32>,
    %cst_177 = arith.constant 0.000000e+00 : f32
    %332 = vector.broadcast %cst_177 : f32 to vector<27x27xf32>
    %c5_i32 = arith.constant 5 : i32
    %333 = arith.addi %0, %c5_i32 : i32
    %c0_i32_178 = arith.constant 0 : i32
    %334 = arith.addi %333, %c0_i32_178 : i32
    %c0_179 = arith.constant 0 : index
    %335 = arith.index_cast %334 : i32 to index
    %c0_180 = arith.constant 0 : index
    %c0_181 = arith.constant 0 : index
    %336 = vector.load %arg2[%c0_179, %335, %c0_180, %c0_181] : memref<1x29x29x27xf32, #tpu.memory_space<vmem>>, vector<1x1x29x27xf32>
    %337 = vector.shape_cast %336 : vector<1x1x29x27xf32> to vector<29x27xf32>
    %338 = vector.extract_strided_slice %337 {offsets = [0, 0], sizes = [27, 27], strides = [1, 1]} : vector<29x27xf32> to vector<27x27xf32>
    %c0_182 = arith.constant 0 : index
    %c0_183 = arith.constant 0 : index
    %339 = vector.load %arg3[%c0_182, %c0_183] : memref<9x27xf32, #tpu.memory_space<vmem>>, vector<1x27xf32>
    %340 = vector.broadcast %339 : vector<1x27xf32> to vector<27x27xf32>
    %341 = arith.mulf %338, %340 : vector<27x27xf32>
    %342 = arith.addf %332, %341 : vector<27x27xf32>
    %343 = vector.extract_strided_slice %337 {offsets = [1, 0], sizes = [27, 27], strides = [1, 1]} : vector<29x27xf32> to vector<27x27xf32>
    %c1_184 = arith.constant 1 : index
    %c0_185 = arith.constant 0 : index
    %344 = vector.load %arg3[%c1_184, %c0_185] : memref<9x27xf32, #tpu.memory_space<vmem>>, vector<1x27xf32>
    %345 = vector.broadcast %344 : vector<1x27xf32> to vector<27x27xf32>
    %346 = arith.mulf %343, %345 : vector<27x27xf32>
    %347 = arith.addf %342, %346 : vector<27x27xf32>
    %348 = vector.extract_strided_slice %337 {offsets = [2, 0], sizes = [27, 27], strides = [1, 1]} : vector<29x27xf32> to vector<27x27xf32>
    %c2_186 = arith.constant 2 : index
    %c0_187 = arith.constant 0 : index
    %349 = vector.load %arg3[%c2_186, %c0_187] : memref<9x27xf32, #tpu.memory_space<vmem>>, vector<1x27xf32>
    %350 = vector.broadcast %349 : vector<1x27xf32> to vector<27x27xf32>
    %351 = arith.mulf %348, %350 : vector<27x27xf32>
    %352 = arith.addf %347, %351 : vector<27x27xf32>
    %c5_i32_188 = arith.constant 5 : i32
    %353 = arith.addi %0, %c5_i32_188 : i32
    %c1_i32_189 = arith.constant 1 : i32
    %354 = arith.addi %353, %c1_i32_189 : i32
    %c0_190 = arith.constant 0 : index
    %355 = arith.index_cast %354 : i32 to index
    %c0_191 = arith.constant 0 : index
    %c0_192 = arith.constant 0 : index
    %356 = vector.load %arg2[%c0_190, %355, %c0_191, %c0_192] : memref<1x29x29x27xf32, #tpu.memory_space<vmem>>, vector<1x1x29x27xf32>
    %357 = vector.shape_cast %356 : vector<1x1x29x27xf32> to vector<29x27xf32>
    %358 = vector.extract_strided_slice %357 {offsets = [0, 0], sizes = [27, 27], strides = [1, 1]} : vector<29x27xf32> to vector<27x27xf32>
    %c3_193 = arith.constant 3 : index
    %c0_194 = arith.constant 0 : index
    %359 = vector.load %arg3[%c3_193, %c0_194] : memref<9x27xf32, #tpu.memory_space<vmem>>, vector<1x27xf32>
    %360 = vector.broadcast %359 : vector<1x27xf32> to vector<27x27xf32>
    %361 = arith.mulf %358, %360 : vector<27x27xf32>
    %362 = arith.addf %352, %361 : vector<27x27xf32>
    %363 = vector.extract_strided_slice %357 {offsets = [1, 0], sizes = [27, 27], strides = [1, 1]} : vector<29x27xf32> to vector<27x27xf32>
    %c4_195 = arith.constant 4 : index
    %c0_196 = arith.constant 0 : index
    %364 = vector.load %arg3[%c4_195, %c0_196] : memref<9x27xf32, #tpu.memory_space<vmem>>, vector<1x27xf32>
    %365 = vector.broadcast %364 : vector<1x27xf32> to vector<27x27xf32>
    %366 = arith.mulf %363, %365 : vector<27x27xf32>
    %367 = arith.addf %362, %366 : vector<27x27xf32>
    %368 = vector.extract_strided_slice %357 {offsets = [2, 0], sizes = [27, 27], strides = [1, 1]} : vector<29x27xf32> to vector<27x27xf32>
    %c5_197 = arith.constant 5 : index
    %c0_198 = arith.constant 0 : index
    %369 = vector.load %arg3[%c5_197, %c0_198] : memref<9x27xf32, #tpu.memory_space<vmem>>, vector<1x27xf32>
    %370 = vector.broadcast %369 : vector<1x27xf32> to vector<27x27xf32>
    %371 = arith.mulf %368, %370 : vector<27x27xf32>
    %372 = arith.addf %367, %371 : vector<27x27xf32>
    %c5_i32_199 = arith.constant 5 : i32
    %373 = arith.addi %0, %c5_i32_199 : i32
    %c2_i32_200 = arith.constant 2 : i32
    %374 = arith.addi %373, %c2_i32_200 : i32
    %c0_201 = arith.constant 0 : index
    %375 = arith.index_cast %374 : i32 to index
    %c0_202 = arith.constant 0 : index
    %c0_203 = arith.constant 0 : index
    %376 = vector.load %arg2[%c0_201, %375, %c0_202, %c0_203] : memref<1x29x29x27xf32, #tpu.memory_space<vmem>>, vector<1x1x29x27xf32>
    %377 = vector.shape_cast %376 : vector<1x1x29x27xf32> to vector<29x27xf32>
    %378 = vector.extract_strided_slice %377 {offsets = [0, 0], sizes = [27, 27], strides = [1, 1]} : vector<29x27xf32> to vector<27x27xf32>
    %c6_204 = arith.constant 6 : index
    %c0_205 = arith.constant 0 : index
    %379 = vector.load %arg3[%c6_204, %c0_205] : memref<9x27xf32, #tpu.memory_space<vmem>>, vector<1x27xf32>
    %380 = vector.broadcast %379 : vector<1x27xf32> to vector<27x27xf32>
    %381 = arith.mulf %378, %380 : vector<27x27xf32>
    %382 = arith.addf %372, %381 : vector<27x27xf32>
    %383 = vector.extract_strided_slice %377 {offsets = [1, 0], sizes = [27, 27], strides = [1, 1]} : vector<29x27xf32> to vector<27x27xf32>
    %c7_206 = arith.constant 7 : index
    %c0_207 = arith.constant 0 : index
    %384 = vector.load %arg3[%c7_206, %c0_207] : memref<9x27xf32, #tpu.memory_space<vmem>>, vector<1x27xf32>
    %385 = vector.broadcast %384 : vector<1x27xf32> to vector<27x27xf32>
    %386 = arith.mulf %383, %385 : vector<27x27xf32>
    %387 = arith.addf %382, %386 : vector<27x27xf32>
    %388 = vector.extract_strided_slice %377 {offsets = [2, 0], sizes = [27, 27], strides = [1, 1]} : vector<29x27xf32> to vector<27x27xf32>
    %c8_208 = arith.constant 8 : index
    %c0_209 = arith.constant 0 : index
    %389 = vector.load %arg3[%c8_208, %c0_209] : memref<9x27xf32, #tpu.memory_space<vmem>>, vector<1x27xf32>
    %390 = vector.broadcast %389 : vector<1x27xf32> to vector<27x27xf32>
    %391 = arith.mulf %388, %390 : vector<27x27xf32>
    %392 = arith.addf %387, %391 : vector<27x27xf32>
    %393 = vector.broadcast %1 : vector<1x27xf32> to vector<27x27xf32>
    %394 = arith.addf %392, %393 : vector<27x27xf32>
    %c0_210 = arith.constant 0 : index
    %c5_211 = arith.constant 5 : index
    %c0_212 = arith.constant 0 : index
    %c0_213 = arith.constant 0 : index
    %395 = vector.load %arg5[%c0_210, %c5_211, %c0_212, %c0_213] : memref<1x9x27x27xf32, #tpu.memory_space<vmem>>, vector<1x1x27x27xf32>
    %396 = vector.shape_cast %395 : vector<1x1x27x27xf32> to vector<27x27xf32>
    %397 = vector.shape_cast %394 : vector<27x27xf32> to vector<1x1x27x27xf32>
    tpu.vector_store %arg5[%c0_210, %c5_211, %c0_212, %c0_213], %397 {strides = array<i32>} : memref<1x9x27x27xf32, #tpu.memory_space<vmem>>, vector<1x1x27x27xf32>,
    %cst_214 = arith.constant 0.000000e+00 : f32
    %398 = vector.broadcast %cst_214 : f32 to vector<27x27xf32>
    %c6_i32 = arith.constant 6 : i32
    %399 = arith.addi %0, %c6_i32 : i32
    %c0_i32_215 = arith.constant 0 : i32
    %400 = arith.addi %399, %c0_i32_215 : i32
    %c0_216 = arith.constant 0 : index
    %401 = arith.index_cast %400 : i32 to index
    %c0_217 = arith.constant 0 : index
    %c0_218 = arith.constant 0 : index
    %402 = vector.load %arg2[%c0_216, %401, %c0_217, %c0_218] : memref<1x29x29x27xf32, #tpu.memory_space<vmem>>, vector<1x1x29x27xf32>
    %403 = vector.shape_cast %402 : vector<1x1x29x27xf32> to vector<29x27xf32>
    %404 = vector.extract_strided_slice %403 {offsets = [0, 0], sizes = [27, 27], strides = [1, 1]} : vector<29x27xf32> to vector<27x27xf32>
    %c0_219 = arith.constant 0 : index
    %c0_220 = arith.constant 0 : index
    %405 = vector.load %arg3[%c0_219, %c0_220] : memref<9x27xf32, #tpu.memory_space<vmem>>, vector<1x27xf32>
    %406 = vector.broadcast %405 : vector<1x27xf32> to vector<27x27xf32>
    %407 = arith.mulf %404, %406 : vector<27x27xf32>
    %408 = arith.addf %398, %407 : vector<27x27xf32>
    %409 = vector.extract_strided_slice %403 {offsets = [1, 0], sizes = [27, 27], strides = [1, 1]} : vector<29x27xf32> to vector<27x27xf32>
    %c1_221 = arith.constant 1 : index
    %c0_222 = arith.constant 0 : index
    %410 = vector.load %arg3[%c1_221, %c0_222] : memref<9x27xf32, #tpu.memory_space<vmem>>, vector<1x27xf32>
    %411 = vector.broadcast %410 : vector<1x27xf32> to vector<27x27xf32>
    %412 = arith.mulf %409, %411 : vector<27x27xf32>
    %413 = arith.addf %408, %412 : vector<27x27xf32>
    %414 = vector.extract_strided_slice %403 {offsets = [2, 0], sizes = [27, 27], strides = [1, 1]} : vector<29x27xf32> to vector<27x27xf32>
    %c2_223 = arith.constant 2 : index
    %c0_224 = arith.constant 0 : index
    %415 = vector.load %arg3[%c2_223, %c0_224] : memref<9x27xf32, #tpu.memory_space<vmem>>, vector<1x27xf32>
    %416 = vector.broadcast %415 : vector<1x27xf32> to vector<27x27xf32>
    %417 = arith.mulf %414, %416 : vector<27x27xf32>
    %418 = arith.addf %413, %417 : vector<27x27xf32>
    %c6_i32_225 = arith.constant 6 : i32
    %419 = arith.addi %0, %c6_i32_225 : i32
    %c1_i32_226 = arith.constant 1 : i32
    %420 = arith.addi %419, %c1_i32_226 : i32
    %c0_227 = arith.constant 0 : index
    %421 = arith.index_cast %420 : i32 to index
    %c0_228 = arith.constant 0 : index
    %c0_229 = arith.constant 0 : index
    %422 = vector.load %arg2[%c0_227, %421, %c0_228, %c0_229] : memref<1x29x29x27xf32, #tpu.memory_space<vmem>>, vector<1x1x29x27xf32>
    %423 = vector.shape_cast %422 : vector<1x1x29x27xf32> to vector<29x27xf32>
    %424 = vector.extract_strided_slice %423 {offsets = [0, 0], sizes = [27, 27], strides = [1, 1]} : vector<29x27xf32> to vector<27x27xf32>
    %c3_230 = arith.constant 3 : index
    %c0_231 = arith.constant 0 : index
    %425 = vector.load %arg3[%c3_230, %c0_231] : memref<9x27xf32, #tpu.memory_space<vmem>>, vector<1x27xf32>
    %426 = vector.broadcast %425 : vector<1x27xf32> to vector<27x27xf32>
    %427 = arith.mulf %424, %426 : vector<27x27xf32>
    %428 = arith.addf %418, %427 : vector<27x27xf32>
    %429 = vector.extract_strided_slice %423 {offsets = [1, 0], sizes = [27, 27], strides = [1, 1]} : vector<29x27xf32> to vector<27x27xf32>
    %c4_232 = arith.constant 4 : index
    %c0_233 = arith.constant 0 : index
    %430 = vector.load %arg3[%c4_232, %c0_233] : memref<9x27xf32, #tpu.memory_space<vmem>>, vector<1x27xf32>
    %431 = vector.broadcast %430 : vector<1x27xf32> to vector<27x27xf32>
    %432 = arith.mulf %429, %431 : vector<27x27xf32>
    %433 = arith.addf %428, %432 : vector<27x27xf32>
    %434 = vector.extract_strided_slice %423 {offsets = [2, 0], sizes = [27, 27], strides = [1, 1]} : vector<29x27xf32> to vector<27x27xf32>
    %c5_234 = arith.constant 5 : index
    %c0_235 = arith.constant 0 : index
    %435 = vector.load %arg3[%c5_234, %c0_235] : memref<9x27xf32, #tpu.memory_space<vmem>>, vector<1x27xf32>
    %436 = vector.broadcast %435 : vector<1x27xf32> to vector<27x27xf32>
    %437 = arith.mulf %434, %436 : vector<27x27xf32>
    %438 = arith.addf %433, %437 : vector<27x27xf32>
    %c6_i32_236 = arith.constant 6 : i32
    %439 = arith.addi %0, %c6_i32_236 : i32
    %c2_i32_237 = arith.constant 2 : i32
    %440 = arith.addi %439, %c2_i32_237 : i32
    %c0_238 = arith.constant 0 : index
    %441 = arith.index_cast %440 : i32 to index
    %c0_239 = arith.constant 0 : index
    %c0_240 = arith.constant 0 : index
    %442 = vector.load %arg2[%c0_238, %441, %c0_239, %c0_240] : memref<1x29x29x27xf32, #tpu.memory_space<vmem>>, vector<1x1x29x27xf32>
    %443 = vector.shape_cast %442 : vector<1x1x29x27xf32> to vector<29x27xf32>
    %444 = vector.extract_strided_slice %443 {offsets = [0, 0], sizes = [27, 27], strides = [1, 1]} : vector<29x27xf32> to vector<27x27xf32>
    %c6_241 = arith.constant 6 : index
    %c0_242 = arith.constant 0 : index
    %445 = vector.load %arg3[%c6_241, %c0_242] : memref<9x27xf32, #tpu.memory_space<vmem>>, vector<1x27xf32>
    %446 = vector.broadcast %445 : vector<1x27xf32> to vector<27x27xf32>
    %447 = arith.mulf %444, %446 : vector<27x27xf32>
    %448 = arith.addf %438, %447 : vector<27x27xf32>
    %449 = vector.extract_strided_slice %443 {offsets = [1, 0], sizes = [27, 27], strides = [1, 1]} : vector<29x27xf32> to vector<27x27xf32>
    %c7_243 = arith.constant 7 : index
    %c0_244 = arith.constant 0 : index
    %450 = vector.load %arg3[%c7_243, %c0_244] : memref<9x27xf32, #tpu.memory_space<vmem>>, vector<1x27xf32>
    %451 = vector.broadcast %450 : vector<1x27xf32> to vector<27x27xf32>
    %452 = arith.mulf %449, %451 : vector<27x27xf32>
    %453 = arith.addf %448, %452 : vector<27x27xf32>
    %454 = vector.extract_strided_slice %443 {offsets = [2, 0], sizes = [27, 27], strides = [1, 1]} : vector<29x27xf32> to vector<27x27xf32>
    %c8_245 = arith.constant 8 : index
    %c0_246 = arith.constant 0 : index
    %455 = vector.load %arg3[%c8_245, %c0_246] : memref<9x27xf32, #tpu.memory_space<vmem>>, vector<1x27xf32>
    %456 = vector.broadcast %455 : vector<1x27xf32> to vector<27x27xf32>
    %457 = arith.mulf %454, %456 : vector<27x27xf32>
    %458 = arith.addf %453, %457 : vector<27x27xf32>
    %459 = vector.broadcast %1 : vector<1x27xf32> to vector<27x27xf32>
    %460 = arith.addf %458, %459 : vector<27x27xf32>
    %c0_247 = arith.constant 0 : index
    %c6_248 = arith.constant 6 : index
    %c0_249 = arith.constant 0 : index
    %c0_250 = arith.constant 0 : index
    %461 = vector.load %arg5[%c0_247, %c6_248, %c0_249, %c0_250] : memref<1x9x27x27xf32, #tpu.memory_space<vmem>>, vector<1x1x27x27xf32>
    %462 = vector.shape_cast %461 : vector<1x1x27x27xf32> to vector<27x27xf32>
    %463 = vector.shape_cast %460 : vector<27x27xf32> to vector<1x1x27x27xf32>
    tpu.vector_store %arg5[%c0_247, %c6_248, %c0_249, %c0_250], %463 {strides = array<i32>} : memref<1x9x27x27xf32, #tpu.memory_space<vmem>>, vector<1x1x27x27xf32>,
    %cst_251 = arith.constant 0.000000e+00 : f32
    %464 = vector.broadcast %cst_251 : f32 to vector<27x27xf32>
    %c7_i32 = arith.constant 7 : i32
    %465 = arith.addi %0, %c7_i32 : i32
    %c0_i32_252 = arith.constant 0 : i32
    %466 = arith.addi %465, %c0_i32_252 : i32
    %c0_253 = arith.constant 0 : index
    %467 = arith.index_cast %466 : i32 to index
    %c0_254 = arith.constant 0 : index
    %c0_255 = arith.constant 0 : index
    %468 = vector.load %arg2[%c0_253, %467, %c0_254, %c0_255] : memref<1x29x29x27xf32, #tpu.memory_space<vmem>>, vector<1x1x29x27xf32>
    %469 = vector.shape_cast %468 : vector<1x1x29x27xf32> to vector<29x27xf32>
    %470 = vector.extract_strided_slice %469 {offsets = [0, 0], sizes = [27, 27], strides = [1, 1]} : vector<29x27xf32> to vector<27x27xf32>
    %c0_256 = arith.constant 0 : index
    %c0_257 = arith.constant 0 : index
    %471 = vector.load %arg3[%c0_256, %c0_257] : memref<9x27xf32, #tpu.memory_space<vmem>>, vector<1x27xf32>
    %472 = vector.broadcast %471 : vector<1x27xf32> to vector<27x27xf32>
    %473 = arith.mulf %470, %472 : vector<27x27xf32>
    %474 = arith.addf %464, %473 : vector<27x27xf32>
    %475 = vector.extract_strided_slice %469 {offsets = [1, 0], sizes = [27, 27], strides = [1, 1]} : vector<29x27xf32> to vector<27x27xf32>
    %c1_258 = arith.constant 1 : index
    %c0_259 = arith.constant 0 : index
    %476 = vector.load %arg3[%c1_258, %c0_259] : memref<9x27xf32, #tpu.memory_space<vmem>>, vector<1x27xf32>
    %477 = vector.broadcast %476 : vector<1x27xf32> to vector<27x27xf32>
    %478 = arith.mulf %475, %477 : vector<27x27xf32>
    %479 = arith.addf %474, %478 : vector<27x27xf32>
    %480 = vector.extract_strided_slice %469 {offsets = [2, 0], sizes = [27, 27], strides = [1, 1]} : vector<29x27xf32> to vector<27x27xf32>
    %c2_260 = arith.constant 2 : index
    %c0_261 = arith.constant 0 : index
    %481 = vector.load %arg3[%c2_260, %c0_261] : memref<9x27xf32, #tpu.memory_space<vmem>>, vector<1x27xf32>
    %482 = vector.broadcast %481 : vector<1x27xf32> to vector<27x27xf32>
    %483 = arith.mulf %480, %482 : vector<27x27xf32>
    %484 = arith.addf %479, %483 : vector<27x27xf32>
    %c7_i32_262 = arith.constant 7 : i32
    %485 = arith.addi %0, %c7_i32_262 : i32
    %c1_i32_263 = arith.constant 1 : i32
    %486 = arith.addi %485, %c1_i32_263 : i32
    %c0_264 = arith.constant 0 : index
    %487 = arith.index_cast %486 : i32 to index
    %c0_265 = arith.constant 0 : index
    %c0_266 = arith.constant 0 : index
    %488 = vector.load %arg2[%c0_264, %487, %c0_265, %c0_266] : memref<1x29x29x27xf32, #tpu.memory_space<vmem>>, vector<1x1x29x27xf32>
    %489 = vector.shape_cast %488 : vector<1x1x29x27xf32> to vector<29x27xf32>
    %490 = vector.extract_strided_slice %489 {offsets = [0, 0], sizes = [27, 27], strides = [1, 1]} : vector<29x27xf32> to vector<27x27xf32>
    %c3_267 = arith.constant 3 : index
    %c0_268 = arith.constant 0 : index
    %491 = vector.load %arg3[%c3_267, %c0_268] : memref<9x27xf32, #tpu.memory_space<vmem>>, vector<1x27xf32>
    %492 = vector.broadcast %491 : vector<1x27xf32> to vector<27x27xf32>
    %493 = arith.mulf %490, %492 : vector<27x27xf32>
    %494 = arith.addf %484, %493 : vector<27x27xf32>
    %495 = vector.extract_strided_slice %489 {offsets = [1, 0], sizes = [27, 27], strides = [1, 1]} : vector<29x27xf32> to vector<27x27xf32>
    %c4_269 = arith.constant 4 : index
    %c0_270 = arith.constant 0 : index
    %496 = vector.load %arg3[%c4_269, %c0_270] : memref<9x27xf32, #tpu.memory_space<vmem>>, vector<1x27xf32>
    %497 = vector.broadcast %496 : vector<1x27xf32> to vector<27x27xf32>
    %498 = arith.mulf %495, %497 : vector<27x27xf32>
    %499 = arith.addf %494, %498 : vector<27x27xf32>
    %500 = vector.extract_strided_slice %489 {offsets = [2, 0], sizes = [27, 27], strides = [1, 1]} : vector<29x27xf32> to vector<27x27xf32>
    %c5_271 = arith.constant 5 : index
    %c0_272 = arith.constant 0 : index
    %501 = vector.load %arg3[%c5_271, %c0_272] : memref<9x27xf32, #tpu.memory_space<vmem>>, vector<1x27xf32>
    %502 = vector.broadcast %501 : vector<1x27xf32> to vector<27x27xf32>
    %503 = arith.mulf %500, %502 : vector<27x27xf32>
    %504 = arith.addf %499, %503 : vector<27x27xf32>
    %c7_i32_273 = arith.constant 7 : i32
    %505 = arith.addi %0, %c7_i32_273 : i32
    %c2_i32_274 = arith.constant 2 : i32
    %506 = arith.addi %505, %c2_i32_274 : i32
    %c0_275 = arith.constant 0 : index
    %507 = arith.index_cast %506 : i32 to index
    %c0_276 = arith.constant 0 : index
    %c0_277 = arith.constant 0 : index
    %508 = vector.load %arg2[%c0_275, %507, %c0_276, %c0_277] : memref<1x29x29x27xf32, #tpu.memory_space<vmem>>, vector<1x1x29x27xf32>
    %509 = vector.shape_cast %508 : vector<1x1x29x27xf32> to vector<29x27xf32>
    %510 = vector.extract_strided_slice %509 {offsets = [0, 0], sizes = [27, 27], strides = [1, 1]} : vector<29x27xf32> to vector<27x27xf32>
    %c6_278 = arith.constant 6 : index
    %c0_279 = arith.constant 0 : index
    %511 = vector.load %arg3[%c6_278, %c0_279] : memref<9x27xf32, #tpu.memory_space<vmem>>, vector<1x27xf32>
    %512 = vector.broadcast %511 : vector<1x27xf32> to vector<27x27xf32>
    %513 = arith.mulf %510, %512 : vector<27x27xf32>
    %514 = arith.addf %504, %513 : vector<27x27xf32>
    %515 = vector.extract_strided_slice %509 {offsets = [1, 0], sizes = [27, 27], strides = [1, 1]} : vector<29x27xf32> to vector<27x27xf32>
    %c7_280 = arith.constant 7 : index
    %c0_281 = arith.constant 0 : index
    %516 = vector.load %arg3[%c7_280, %c0_281] : memref<9x27xf32, #tpu.memory_space<vmem>>, vector<1x27xf32>
    %517 = vector.broadcast %516 : vector<1x27xf32> to vector<27x27xf32>
    %518 = arith.mulf %515, %517 : vector<27x27xf32>
    %519 = arith.addf %514, %518 : vector<27x27xf32>
    %520 = vector.extract_strided_slice %509 {offsets = [2, 0], sizes = [27, 27], strides = [1, 1]} : vector<29x27xf32> to vector<27x27xf32>
    %c8_282 = arith.constant 8 : index
    %c0_283 = arith.constant 0 : index
    %521 = vector.load %arg3[%c8_282, %c0_283] : memref<9x27xf32, #tpu.memory_space<vmem>>, vector<1x27xf32>
    %522 = vector.broadcast %521 : vector<1x27xf32> to vector<27x27xf32>
    %523 = arith.mulf %520, %522 : vector<27x27xf32>
    %524 = arith.addf %519, %523 : vector<27x27xf32>
    %525 = vector.broadcast %1 : vector<1x27xf32> to vector<27x27xf32>
    %526 = arith.addf %524, %525 : vector<27x27xf32>
    %c0_284 = arith.constant 0 : index
    %c7_285 = arith.constant 7 : index
    %c0_286 = arith.constant 0 : index
    %c0_287 = arith.constant 0 : index
    %527 = vector.load %arg5[%c0_284, %c7_285, %c0_286, %c0_287] : memref<1x9x27x27xf32, #tpu.memory_space<vmem>>, vector<1x1x27x27xf32>
    %528 = vector.shape_cast %527 : vector<1x1x27x27xf32> to vector<27x27xf32>
    %529 = vector.shape_cast %526 : vector<27x27xf32> to vector<1x1x27x27xf32>
    tpu.vector_store %arg5[%c0_284, %c7_285, %c0_286, %c0_287], %529 {strides = array<i32>} : memref<1x9x27x27xf32, #tpu.memory_space<vmem>>, vector<1x1x27x27xf32>,
    %cst_288 = arith.constant 0.000000e+00 : f32
    %530 = vector.broadcast %cst_288 : f32 to vector<27x27xf32>
    %c8_i32 = arith.constant 8 : i32
    %531 = arith.addi %0, %c8_i32 : i32
    %c0_i32_289 = arith.constant 0 : i32
    %532 = arith.addi %531, %c0_i32_289 : i32
    %c0_290 = arith.constant 0 : index
    %533 = arith.index_cast %532 : i32 to index
    %c0_291 = arith.constant 0 : index
    %c0_292 = arith.constant 0 : index
    %534 = vector.load %arg2[%c0_290, %533, %c0_291, %c0_292] : memref<1x29x29x27xf32, #tpu.memory_space<vmem>>, vector<1x1x29x27xf32>
    %535 = vector.shape_cast %534 : vector<1x1x29x27xf32> to vector<29x27xf32>
    %536 = vector.extract_strided_slice %535 {offsets = [0, 0], sizes = [27, 27], strides = [1, 1]} : vector<29x27xf32> to vector<27x27xf32>
    %c0_293 = arith.constant 0 : index
    %c0_294 = arith.constant 0 : index
    %537 = vector.load %arg3[%c0_293, %c0_294] : memref<9x27xf32, #tpu.memory_space<vmem>>, vector<1x27xf32>
    %538 = vector.broadcast %537 : vector<1x27xf32> to vector<27x27xf32>
    %539 = arith.mulf %536, %538 : vector<27x27xf32>
    %540 = arith.addf %530, %539 : vector<27x27xf32>
    %541 = vector.extract_strided_slice %535 {offsets = [1, 0], sizes = [27, 27], strides = [1, 1]} : vector<29x27xf32> to vector<27x27xf32>
    %c1_295 = arith.constant 1 : index
    %c0_296 = arith.constant 0 : index
    %542 = vector.load %arg3[%c1_295, %c0_296] : memref<9x27xf32, #tpu.memory_space<vmem>>, vector<1x27xf32>
    %543 = vector.broadcast %542 : vector<1x27xf32> to vector<27x27xf32>
    %544 = arith.mulf %541, %543 : vector<27x27xf32>
    %545 = arith.addf %540, %544 : vector<27x27xf32>
    %546 = vector.extract_strided_slice %535 {offsets = [2, 0], sizes = [27, 27], strides = [1, 1]} : vector<29x27xf32> to vector<27x27xf32>
    %c2_297 = arith.constant 2 : index
    %c0_298 = arith.constant 0 : index
    %547 = vector.load %arg3[%c2_297, %c0_298] : memref<9x27xf32, #tpu.memory_space<vmem>>, vector<1x27xf32>
    %548 = vector.broadcast %547 : vector<1x27xf32> to vector<27x27xf32>
    %549 = arith.mulf %546, %548 : vector<27x27xf32>
    %550 = arith.addf %545, %549 : vector<27x27xf32>
    %c8_i32_299 = arith.constant 8 : i32
    %551 = arith.addi %0, %c8_i32_299 : i32
    %c1_i32_300 = arith.constant 1 : i32
    %552 = arith.addi %551, %c1_i32_300 : i32
    %c0_301 = arith.constant 0 : index
    %553 = arith.index_cast %552 : i32 to index
    %c0_302 = arith.constant 0 : index
    %c0_303 = arith.constant 0 : index
    %554 = vector.load %arg2[%c0_301, %553, %c0_302, %c0_303] : memref<1x29x29x27xf32, #tpu.memory_space<vmem>>, vector<1x1x29x27xf32>
    %555 = vector.shape_cast %554 : vector<1x1x29x27xf32> to vector<29x27xf32>
    %556 = vector.extract_strided_slice %555 {offsets = [0, 0], sizes = [27, 27], strides = [1, 1]} : vector<29x27xf32> to vector<27x27xf32>
    %c3_304 = arith.constant 3 : index
    %c0_305 = arith.constant 0 : index
    %557 = vector.load %arg3[%c3_304, %c0_305] : memref<9x27xf32, #tpu.memory_space<vmem>>, vector<1x27xf32>
    %558 = vector.broadcast %557 : vector<1x27xf32> to vector<27x27xf32>
    %559 = arith.mulf %556, %558 : vector<27x27xf32>
    %560 = arith.addf %550, %559 : vector<27x27xf32>
    %561 = vector.extract_strided_slice %555 {offsets = [1, 0], sizes = [27, 27], strides = [1, 1]} : vector<29x27xf32> to vector<27x27xf32>
    %c4_306 = arith.constant 4 : index
    %c0_307 = arith.constant 0 : index
    %562 = vector.load %arg3[%c4_306, %c0_307] : memref<9x27xf32, #tpu.memory_space<vmem>>, vector<1x27xf32>
    %563 = vector.broadcast %562 : vector<1x27xf32> to vector<27x27xf32>
    %564 = arith.mulf %561, %563 : vector<27x27xf32>
    %565 = arith.addf %560, %564 : vector<27x27xf32>
    %566 = vector.extract_strided_slice %555 {offsets = [2, 0], sizes = [27, 27], strides = [1, 1]} : vector<29x27xf32> to vector<27x27xf32>
    %c5_308 = arith.constant 5 : index
    %c0_309 = arith.constant 0 : index
    %567 = vector.load %arg3[%c5_308, %c0_309] : memref<9x27xf32, #tpu.memory_space<vmem>>, vector<1x27xf32>
    %568 = vector.broadcast %567 : vector<1x27xf32> to vector<27x27xf32>
    %569 = arith.mulf %566, %568 : vector<27x27xf32>
    %570 = arith.addf %565, %569 : vector<27x27xf32>
    %c8_i32_310 = arith.constant 8 : i32
    %571 = arith.addi %0, %c8_i32_310 : i32
    %c2_i32_311 = arith.constant 2 : i32
    %572 = arith.addi %571, %c2_i32_311 : i32
    %c0_312 = arith.constant 0 : index
    %573 = arith.index_cast %572 : i32 to index
    %c0_313 = arith.constant 0 : index
    %c0_314 = arith.constant 0 : index
    %574 = vector.load %arg2[%c0_312, %573, %c0_313, %c0_314] : memref<1x29x29x27xf32, #tpu.memory_space<vmem>>, vector<1x1x29x27xf32>
    %575 = vector.shape_cast %574 : vector<1x1x29x27xf32> to vector<29x27xf32>
    %576 = vector.extract_strided_slice %575 {offsets = [0, 0], sizes = [27, 27], strides = [1, 1]} : vector<29x27xf32> to vector<27x27xf32>
    %c6_315 = arith.constant 6 : index
    %c0_316 = arith.constant 0 : index
    %577 = vector.load %arg3[%c6_315, %c0_316] : memref<9x27xf32, #tpu.memory_space<vmem>>, vector<1x27xf32>
    %578 = vector.broadcast %577 : vector<1x27xf32> to vector<27x27xf32>
    %579 = arith.mulf %576, %578 : vector<27x27xf32>
    %580 = arith.addf %570, %579 : vector<27x27xf32>
    %581 = vector.extract_strided_slice %575 {offsets = [1, 0], sizes = [27, 27], strides = [1, 1]} : vector<29x27xf32> to vector<27x27xf32>
    %c7_317 = arith.constant 7 : index
    %c0_318 = arith.constant 0 : index
    %582 = vector.load %arg3[%c7_317, %c0_318] : memref<9x27xf32, #tpu.memory_space<vmem>>, vector<1x27xf32>
    %583 = vector.broadcast %582 : vector<1x27xf32> to vector<27x27xf32>
    %584 = arith.mulf %581, %583 : vector<27x27xf32>
    %585 = arith.addf %580, %584 : vector<27x27xf32>
    %586 = vector.extract_strided_slice %575 {offsets = [2, 0], sizes = [27, 27], strides = [1, 1]} : vector<29x27xf32> to vector<27x27xf32>
    %c8_319 = arith.constant 8 : index
    %c0_320 = arith.constant 0 : index
    %587 = vector.load %arg3[%c8_319, %c0_320] : memref<9x27xf32, #tpu.memory_space<vmem>>, vector<1x27xf32>
    %588 = vector.broadcast %587 : vector<1x27xf32> to vector<27x27xf32>
    %589 = arith.mulf %586, %588 : vector<27x27xf32>
    %590 = arith.addf %585, %589 : vector<27x27xf32>
    %591 = vector.broadcast %1 : vector<1x27xf32> to vector<27x27xf32>
    %592 = arith.addf %590, %591 : vector<27x27xf32>
    %c0_321 = arith.constant 0 : index
    %c8_322 = arith.constant 8 : index
    %c0_323 = arith.constant 0 : index
    %c0_324 = arith.constant 0 : index
    %593 = vector.load %arg5[%c0_321, %c8_322, %c0_323, %c0_324] : memref<1x9x27x27xf32, #tpu.memory_space<vmem>>, vector<1x1x27x27xf32>
    %594 = vector.shape_cast %593 : vector<1x1x27x27xf32> to vector<27x27xf32>
    %595 = vector.shape_cast %592 : vector<27x27xf32> to vector<1x1x27x27xf32>
    tpu.vector_store %arg5[%c0_321, %c8_322, %c0_323, %c0_324], %595 {strides = array<i32>} : memref<1x9x27x27xf32, #tpu.memory_space<vmem>>, vector<1x1x27x27xf32>,
    return
  }
  func.func @transform_0(%arg0: i32, %arg1: i32) -> (i32, i32, i32, i32) {
    %c0_i32 = arith.constant 0 : i32
    %c0_i32_0 = arith.constant 0 : i32
    %c0_i32_1 = arith.constant 0 : i32
    %c0_i32_2 = arith.constant 0 : i32
    return %arg0, %c0_i32, %c0_i32_0, %c0_i32_1 : i32, i32, i32, i32
  }
  func.func @transform_1(%arg0: i32, %arg1: i32) -> (i32, i32) {
    %c0_i32 = arith.constant 0 : i32
    %c0_i32_0 = arith.constant 0 : i32
    %c0_i32_1 = arith.constant 0 : i32
    return %c0_i32, %c0_i32_0 : i32, i32
  }
  func.func @transform_2(%arg0: i32, %arg1: i32) -> (i32, i32) {
    %c0_i32 = arith.constant 0 : i32
    %c0_i32_0 = arith.constant 0 : i32
    %c0_i32_1 = arith.constant 0 : i32
    return %c0_i32, %c0_i32_0 : i32, i32
  }
  func.func @transform_3(%arg0: i32, %arg1: i32) -> (i32, i32, i32, i32) {
    %c0_i32 = arith.constant 0 : i32
    %c0_i32_0 = arith.constant 0 : i32
    %c0_i32_1 = arith.constant 0 : i32
    return %arg0, %arg1, %c0_i32, %c0_i32_0 : i32, i32, i32, i32
  }
}

</mosaic_0001>

<llo_original>
// kernel: depthwise_conv3x3.1
$region0: #{depthwise_conv3x3.1}
  #allocation0 [shape = 'u32[]', space=smem, size = 0x4, offset = 0x4, fixed_abs, tag = 'smem constant byte address 0x4 - core index']
  #allocation1 [shape = 'u32[144,128]{1,0:T(1,128)}', space=vmem, size = 0x12000, scoped, tag = 'internal scratch']
  %s0 = inlined_call_operand.vmem [shape: f32[1,29,29,27], index: 0, kind: input, shape index: {}]
  %s1 = inlined_call_operand.vmem [shape: f32[9,27], index: 1, kind: input, shape index: {}]
  %s2 = inlined_call_operand.vmem [shape: f32[1,27], index: 2, kind: input, shape index: {}]
  %s3 = inlined_call_operand.vmem [shape: f32[1,27,27,27], index: 3, kind: output, shape index: {}]
  %s4 = sld [smem:[#allocation0]]
  $region45: #{depthwise_conv3x3.1} parent=0
    _
  %s6 = ssub.s32 1, %s4
  %s7 = scalar_select 0, %s6, %s4
  loop: start=0, step=1, limit=5
  $region2: #{depthwise_conv3x3.1} parent=0 // loop_pre_header
    _
  $region3: #{depthwise_conv3x3.1} parent=0 // loop_header
    %s9 = sphi 0, %s13
    %p10 = scmp.ge.s32.totalorder %s9, 5
    %s16 = sphi 0, %s28
    %s17 = sphi 0, %s24
    %s18 = sphi 0, %s16
    %s19 = sphi 0, %s17
    %s20 = sphi 0, %s18
    %s21 = sphi 0, %s19
    %s31 = sphi 0, %s33
    %s34 = sphi 0, %s31
    %s35 = sphi 0, %s34
    %s51 = sphi 0, %s35
    %s55 = sphi 0, %s55
    %s57 = sphi 0, %s55
    %s58 = sphi 0, %s57
    %s72 = sphi 0, %s58
    %s76 = sphi 0, %s76
    %s78 = sphi 0, %s76
    %s79 = sphi 0, %s78
    %s93 = sphi 0, %s79
    %s101 = sphi 0, %s103
    %s104 = sphi 0, %s101
    %s105 = sphi 0, %s104
    %s121 = sphi 0, %s105
  $region4: #{depthwise_conv3x3.1} parent=0 // loop_header_branch
    %12 = sbr.rel (%p10) target = $region8
  $region5: #{depthwise_conv3x3.1} parent=0 // loop_body
    %s14 = ssub.s32 %s9, 1
    %s15 = ssub.s32 %s9, 2
    %s22 = sadd.s32 1, %s17
    %p23 = scmp.ge.s32.totalorder %s22, 3
    %s24 = scalar_select %p23, 0, %s22
    %s25 = sadd.s32 1, %s16
    %s26 = scalar_select %p23, %s25, %s16
    %p27 = scmp.ge.s32.totalorder %s26, 1
    %s28 = scalar_select %p27, 0, %s26
    %s29 = ssub.s32 %s16, %s28
    %p30 = scmp.eq.s32.totalorder %s29, 0
    %s32 = sadd.s32 %s31, 1
    %s33 = scalar_select %p30, %s31, %s32
    %p36 = pneg %p30
    %p37 = scmp.eq.s32.totalorder %s9, 2
    %p38 = por %p36, %p37
    %p39 = scmp.ne.s32.totalorder %s31, %s34
    %p40 = scmp.eq.s32.totalorder %s9, 0
    %p41 = por %p39, %p40
    %p42 = scmp.ne.s32.totalorder %s31, %s34
    %p43 = scmp.eq.s32.totalorder %s14, 2
    %p44 = por %p42, %p43
    %p45 = scmp.ne.s32.totalorder %s34, %s35
    %p46 = scmp.eq.s32.totalorder %s14, 0
    %p47 = por %p45, %p46
    %p48 = scmp.ne.s32.totalorder %s34, %s35
    %p49 = scmp.eq.s32.totalorder %s15, 2
    %p50 = por %p48, %p49
    %p52 = scmp.ne.s32.totalorder %s35, %s51
    %p53 = scmp.eq.s32.totalorder %s15, 0
    %p54 = por %p52, %p53
    %s56 = sadd.s32 %s55, 1
    %p59 = scmp.eq.s32.totalorder %s9, 2
    %p60 = scmp.ne.s32.totalorder %s55, %s57
    %p61 = scmp.eq.s32.totalorder %s9, 0
    %p62 = por %p60, %p61
    %p63 = scmp.ne.s32.totalorder %s55, %s57
    %p64 = scmp.eq.s32.totalorder %s14, 2
    %p65 = por %p63, %p64
    %p66 = scmp.ne.s32.totalorder %s57, %s58
    %p67 = scmp.eq.s32.totalorder %s14, 0
    %p68 = por %p66, %p67
    %p69 = scmp.ne.s32.totalorder %s57, %s58
    %p70 = scmp.eq.s32.totalorder %s15, 2
    %p71 = por %p69, %p70
    %p73 = scmp.ne.s32.totalorder %s58, %s72
    %p74 = scmp.eq.s32.totalorder %s15, 0
    %p75 = por %p73, %p74
    %s77 = sadd.s32 %s76, 1
    %p80 = scmp.eq.s32.totalorder %s9, 2
    %p81 = scmp.ne.s32.totalorder %s76, %s78
    %p82 = scmp.eq.s32.totalorder %s9, 0
    %p83 = por %p81, %p82
    %p84 = scmp.ne.s32.totalorder %s76, %s78
    %p85 = scmp.eq.s32.totalorder %s14, 2
    %p86 = por %p84, %p85
    %p87 = scmp.ne.s32.totalorder %s78, %s79
    %p88 = scmp.eq.s32.totalorder %s14, 0
    %p89 = por %p87, %p88
    %p90 = scmp.ne.s32.totalorder %s78, %s79
    %p91 = scmp.eq.s32.totalorder %s15, 2
    %p92 = por %p90, %p91
    %p94 = scmp.ne.s32.totalorder %s79, %s93
    %p95 = scmp.eq.s32.totalorder %s15, 0
    %p96 = por %p94, %p95
    %s97 = ssub.s32 %s16, %s28
    %s98 = ssub.s32 %s17, %s24
    %s99 = sor.u32 %s97, %s98
    %p100 = scmp.eq.s32.totalorder %s99, 0
    %s102 = sadd.s32 %s101, 1
    %s103 = scalar_select %p100, %s101, %s102
    %p106 = pneg %p100
    %p107 = scmp.eq.s32.totalorder %s9, 2
    %p108 = por %p106, %p107
    %p109 = scmp.ne.s32.totalorder %s101, %s104
    %p110 = scmp.eq.s32.totalorder %s9, 0
    %p111 = por %p109, %p110
    %p112 = scmp.ne.s32.totalorder %s101, %s104
    %p113 = scmp.eq.s32.totalorder %s14, 2
    %p114 = por %p112, %p113
    %p115 = scmp.ne.s32.totalorder %s104, %s105
    %p116 = scmp.eq.s32.totalorder %s14, 0
    %p117 = por %p115, %p116
    %p118 = scmp.ne.s32.totalorder %s104, %s105
    %p119 = scmp.eq.s32.totalorder %s15, 2
    %p120 = por %p118, %p119
    %p122 = scmp.ne.s32.totalorder %s105, %s121
    %p123 = scmp.eq.s32.totalorder %s15, 0
    %p124 = por %p122, %p123
    %p125 = scmp.le.s32.totalorder 1, %s9
    %p126 = scmp.lt.s32.totalorder %s9, 4
    %p127 = pnand %p125, %p126
    %p128 = pneg %p127
    // Predicated region
    $region9: #{depthwise_conv3x3.1} parent=5 // pred_check
      _
    $region10: #{depthwise_conv3x3.1} parent=5 // pred_check_branch
      %130 = sbr.rel (%p127) target = $region12
    $region11: #{depthwise_conv3x3.1} parent=5 // pred_region
      %s131 = ssub.s32 %s9, 1
      // Predicated region
      $region13: #{depthwise_conv3x3.1} parent=11 // pred_check
        %p132 = pneg %p47
      $region14: #{depthwise_conv3x3.1} parent=11 // pred_check_branch
        %134 = sbr.rel (%p132) target = $region16
      $region15: #{depthwise_conv3x3.1} parent=11 // pred_region
        %p135 = scmp.lt.s32.totalorder %s18, 0
        %s136 = scalar_select %p135, %s18, 0
        %s137 = smul.addr %s136, 116
        %s138 = smul.addr %s137, 8
        %s139 = scalar_lea.vmem %s0, %s138
      $region16: #{depthwise_conv3x3.1} parent=11 // pred_fallthru
        _
      // Predicated region
      $region17: #{depthwise_conv3x3.1} parent=11 // pred_check
        %p140 = pneg %p68
      $region18: #{depthwise_conv3x3.1} parent=11 // pred_check_branch
        %142 = sbr.rel (%p140) target = $region20
      $region19: #{depthwise_conv3x3.1} parent=11 // pred_region
        _
      $region20: #{depthwise_conv3x3.1} parent=11 // pred_fallthru
        _
      // Predicated region
      $region21: #{depthwise_conv3x3.1} parent=11 // pred_check
        %p143 = pneg %p89
      $region22: #{depthwise_conv3x3.1} parent=11 // pred_check_branch
        %145 = sbr.rel (%p143) target = $region24
      $region23: #{depthwise_conv3x3.1} parent=11 // pred_region
        _
      $region24: #{depthwise_conv3x3.1} parent=11 // pred_fallthru
        _
    $region12: #{depthwise_conv3x3.1} parent=5 // pred_fallthru
      _
    %p146 = scmp.lt.s32.totalorder %s9, 3
    // Predicated region
    $region25: #{depthwise_conv3x3.1} parent=5 // pred_check
      %p147 = pneg %p146
    $region26: #{depthwise_conv3x3.1} parent=5 // pred_check_branch
      %149 = sbr.rel (%p147) target = $region28
    $region27: #{depthwise_conv3x3.1} parent=5 // pred_region
      _
    $region28: #{depthwise_conv3x3.1} parent=5 // pred_fallthru
      _
    %p150 = scmp.le.s32.totalorder 1, %s9
    %p151 = scmp.lt.s32.totalorder %s9, 4
    %p152 = pnand %p150, %p151
    %p153 = pneg %p152
    // Predicated region
    $region29: #{depthwise_conv3x3.1} parent=5 // pred_check
      _
    $region30: #{depthwise_conv3x3.1} parent=5 // pred_check_branch
      %155 = sbr.rel (%p152) target = $region32
    $region31: #{depthwise_conv3x3.1} parent=5 // pred_region
      %s156 = ssub.s32 %s9, 1
      %p157 = scmp.lt.s32.totalorder %s18, 0
      %s158 = scalar_select %p157, %s18, 0
      %s159 = smul.addr %s158, 116
      %s160 = smul.addr %s159, 8
      %s161 = scalar_lea.vmem %s0, %s160
      %p162 = pneg %p47
      %p163 = pneg %p44
      %p164 = pneg %p68
      %p165 = pneg %p65
      %p166 = pneg %p89
      %p167 = pneg %p86
      %p168 = pneg %p117
      %p169 = pneg %p114
      %s170 = smul.u32 9, %s19
      %p171 = scmp.lt.s32.totalorder %s18, 0
      %s172 = scalar_select %p171, %s18, 0
      %p173 = scmp.lt.s32.totalorder %s170, 26
      %s174 = scalar_select %p173, %s170, 26
      %s175 = smul.addr %s174, 4
      %s176 = smul.addr %s172, 108
      %s177 = sadd.s32 %s175, %s176
      %s178 = smul.addr %s177, 8
      %s179 = scalar_lea.vmem %s3, %s178
      %p180 = scmp.lt.s32.totalorder %s18, 0
      %s181 = scalar_select %p180, %s18, 0
      %s182 = smul.addr %s181, 116
      %s183 = smul.addr %s182, 8
      %s184 = scalar_lea.vmem %s0, %s183
      %s185 = smul.u32 9, %s19
      %p186 = scmp.lt.s32.totalorder %s18, 0
      %s187 = scalar_select %p186, %s18, 0
      %p188 = scmp.lt.s32.totalorder %s185, 26
      %s189 = scalar_select %p188, %s185, 26
      %s190 = smul.addr %s189, 4
      %s191 = smul.addr %s187, 108
      %s192 = sadd.s32 %s190, %s191
      %s193 = smul.addr %s192, 8
      %s194 = scalar_lea.vmem %s3, %s193
      %s195 = smul.u32 9, %s19
      %s196 = smul.u32 %s19, 9
      %v197 = vld [vmem:[%s2] sm:$0x1]
      %s198 = smul.u32 %s196, 32
      %s199 = scalar_lea.vmem %s184, %s198
      %v200 = vld [vmem:[%s199] sm:$0xff]
      %v201 = vld [vmem:[%s199 + $0x8] sm:$0xff]
      %v202 = vld [vmem:[%s199 + $0x10] sm:$0xff]
      %v203 = vld [vmem:[%s199 + $0x18] sm:$0x1f]
      %v204 = vld [vmem:[%s1] sm:$0x1]
      %v205 = vlaneseq
      %v206 = vshrl.u32 %v205, 7
      %v207 = vsub.s32 0, %v206
      %v208 = vrot.slane %v204, %v207
      %v209 = vmul.f32 %v200, %v208
      %v210 = vmul.f32 %v201, %v208
      %v211 = vmul.f32 %v202, %v208
      %v212 = vmul.f32 %v203, %v208
      %v213 = vadd.f32 %v209, 0.0
      %v214 = vadd.f32 %v210, 0.0
      %v215 = vadd.f32 %v211, 0.0
      %v216 = vadd.f32 %v212, 0.0
      %v217 = vld [vmem:[%s1 + $0x1] sm:$0x1]
      %v218 = vlaneseq
      %v219 = vshrl.u32 %v218, 7
      %v220 = vsub.s32 0, %v219
      %v221 = vrot.slane %v217, %v220
      %v222 = vmul.f32 %v200, %v221
      %v223 = vmul.f32 %v201, %v221
      %v224 = vmul.f32 %v202, %v221
      %v225 = vmul.f32 %v203, %v221
      %vm230 = vcmask 1046528
      %v231 = vrot.slane %v222, 1
      %v232 = vrot.slane %v223, 1
      %v233 = vsel %vm230, %v231, %v232
      %v234 = vrot.slane %v224, 1
      %v235 = vsel %vm230, %v232, %v234
      %v236 = vrot.slane %v225, 1
      %v237 = vsel %vm230, %v234, %v236
      %v242 = vadd.f32 %v213, %v233
      %v243 = vadd.f32 %v214, %v235
      %v244 = vadd.f32 %v215, %v237
      %v245 = vadd.f32 %v216, %v236
      %v246 = vld [vmem:[%s1 + $0x2] sm:$0x1]
      %v247 = vlaneseq
      %v248 = vshrl.u32 %v247, 7
      %v249 = vsub.s32 0, %v248
      %v250 = vrot.slane %v246, %v249
      %v251 = vmul.f32 %v200, %v250
      %v252 = vmul.f32 %v201, %v250
      %v253 = vmul.f32 %v202, %v250
      %v254 = vmul.f32 %v203, %v250
      %vm259 = vcmask 1045504
      %v260 = vrot.slane %v251, 2
      %v261 = vrot.slane %v252, 2
      %v262 = vsel %vm259, %v260, %v261
      %v263 = vrot.slane %v253, 2
      %v264 = vsel %vm259, %v261, %v263
      %v265 = vrot.slane %v254, 2
      %v266 = vsel %vm259, %v263, %v265
      %v271 = vadd.f32 %v242, %v262
      %v272 = vadd.f32 %v243, %v264
      %v273 = vadd.f32 %v244, %v266
      %v274 = vadd.f32 %v245, %v265
      %s275 = sadd.s32 %s196, 1
      %s276 = smul.u32 %s275, 32
      %s277 = scalar_lea.vmem %s184, %s276
      %v278 = vld [vmem:[%s277] sm:$0xff]
      %v279 = vld [vmem:[%s277 + $0x8] sm:$0xff]
      %v280 = vld [vmem:[%s277 + $0x10] sm:$0xff]
      %v281 = vld [vmem:[%s277 + $0x18] sm:$0x1f]
      %v282 = vld [vmem:[%s1 + $0x3] sm:$0x1]
      %v283 = vlaneseq
      %v284 = vshrl.u32 %v283, 7
      %v285 = vsub.s32 0, %v284
      %v286 = vrot.slane %v282, %v285
      %v287 = vmul.f32 %v278, %v286
      %v288 = vmul.f32 %v279, %v286
      %v289 = vmul.f32 %v280, %v286
      %v290 = vmul.f32 %v281, %v286
      %v291 = vadd.f32 %v271, %v287
      %v292 = vadd.f32 %v272, %v288
      %v293 = vadd.f32 %v273, %v289
      %v294 = vadd.f32 %v274, %v290
      %v295 = vld [vmem:[%s1 + $0x4] sm:$0x1]
      %v296 = vlaneseq
      %v297 = vshrl.u32 %v296, 7
      %v298 = vsub.s32 0, %v297
      %v299 = vrot.slane %v295, %v298
      %v300 = vmul.f32 %v278, %v299
      %v301 = vmul.f32 %v279, %v299
      %v302 = vmul.f32 %v280, %v299
      %v303 = vmul.f32 %v281, %v299
      %v308 = vrot.slane %v300, 1
      %v309 = vrot.slane %v301, 1
      %v310 = vsel %vm230, %v308, %v309
      %v311 = vrot.slane %v302, 1
      %v312 = vsel %vm230, %v309, %v311
      %v313 = vrot.slane %v303, 1
      %v314 = vsel %vm230, %v311, %v313
      %v319 = vadd.f32 %v291, %v310
      %v320 = vadd.f32 %v292, %v312
      %v321 = vadd.f32 %v293, %v314
      %v322 = vadd.f32 %v294, %v313
      %v323 = vld [vmem:[%s1 + $0x5] sm:$0x1]
      %v324 = vlaneseq
      %v325 = vshrl.u32 %v324, 7
      %v326 = vsub.s32 0, %v325
      %v327 = vrot.slane %v323, %v326
      %v328 = vmul.f32 %v278, %v327
      %v329 = vmul.f32 %v279, %v327
      %v330 = vmul.f32 %v280, %v327
      %v331 = vmul.f32 %v281, %v327
      %v336 = vrot.slane %v328, 2
      %v337 = vrot.slane %v329, 2
      %v338 = vsel %vm259, %v336, %v337
      %v339 = vrot.slane %v330, 2
      %v340 = vsel %vm259, %v337, %v339
      %v341 = vrot.slane %v331, 2
      %v342 = vsel %vm259, %v339, %v341
      %v347 = vadd.f32 %v319, %v338
      %v348 = vadd.f32 %v320, %v340
      %v349 = vadd.f32 %v321, %v342
      %v350 = vadd.f32 %v322, %v341
      %s351 = sadd.s32 %s196, 2
      %s352 = smul.u32 %s351, 32
      %s353 = scalar_lea.vmem %s184, %s352
      %v354 = vld [vmem:[%s353] sm:$0xff]
      %v355 = vld [vmem:[%s353 + $0x8] sm:$0xff]
      %v356 = vld [vmem:[%s353 + $0x10] sm:$0xff]
      %v357 = vld [vmem:[%s353 + $0x18] sm:$0x1f]
      %v358 = vld [vmem:[%s1 + $0x6] sm:$0x1]
      %v359 = vlaneseq
      %v360 = vshrl.u32 %v359, 7
      %v361 = vsub.s32 0, %v360
      %v362 = vrot.slane %v358, %v361
      %v363 = vmul.f32 %v354, %v362
      %v364 = vmul.f32 %v355, %v362
      %v365 = vmul.f32 %v356, %v362
      %v366 = vmul.f32 %v357, %v362
      %v367 = vadd.f32 %v347, %v363
      %v368 = vadd.f32 %v348, %v364
      %v369 = vadd.f32 %v349, %v365
      %v370 = vadd.f32 %v350, %v366
      %v371 = vld [vmem:[%s1 + $0x7] sm:$0x1]
      %v372 = vlaneseq
      %v373 = vshrl.u32 %v372, 7
      %v374 = vsub.s32 0, %v373
      %v375 = vrot.slane %v371, %v374
      %v376 = vmul.f32 %v354, %v375
      %v377 = vmul.f32 %v355, %v375
      %v378 = vmul.f32 %v356, %v375
      %v379 = vmul.f32 %v357, %v375
      %v384 = vrot.slane %v376, 1
      %v385 = vrot.slane %v377, 1
      %v386 = vsel %vm230, %v384, %v385
      %v387 = vrot.slane %v378, 1
      %v388 = vsel %vm230, %v385, %v387
      %v389 = vrot.slane %v379, 1
      %v390 = vsel %vm230, %v387, %v389
      %v395 = vadd.f32 %v367, %v386
      %v396 = vadd.f32 %v368, %v388
      %v397 = vadd.f32 %v369, %v390
      %v398 = vadd.f32 %v370, %v389
      %v399 = vld [vmem:[%s1 + $0x8] sm:$0x1]
      %v400 = vlaneseq
      %v401 = vshrl.u32 %v400, 7
      %v402 = vsub.s32 0, %v401
      %v403 = vrot.slane %v399, %v402
      %v404 = vmul.f32 %v354, %v403
      %v405 = vmul.f32 %v355, %v403
      %v406 = vmul.f32 %v356, %v403
      %v407 = vmul.f32 %v357, %v403
      %v412 = vrot.slane %v404, 2
      %v413 = vrot.slane %v405, 2
      %v414 = vsel %vm259, %v412, %v413
      %v415 = vrot.slane %v406, 2
      %v416 = vsel %vm259, %v413, %v415
      %v417 = vrot.slane %v407, 2
      %v418 = vsel %vm259, %v415, %v417
      %v423 = vadd.f32 %v395, %v414
      %v424 = vadd.f32 %v396, %v416
      %v425 = vadd.f32 %v397, %v418
      %v426 = vadd.f32 %v398, %v417
      %v428 = vlaneseq
      %v429 = vshrl.u32 %v428, 7
      %v430 = vsub.s32 0, %v429
      %v431 = vrot.slane %v197, %v430
      %v433 = vadd.f32 %v423, %v431
      %v434 = vadd.f32 %v424, %v431
      %v435 = vadd.f32 %v425, %v431
      %v436 = vadd.f32 %v426, %v431
      %vm437 = vcmask 220160
      %438 = vst.msk [vmem:[%s194] sm:$0xff] %vm437, %v433
      %439 = vst.msk [vmem:[%s194 + $0x8] sm:$0xff] %vm437, %v434
      %440 = vst.msk [vmem:[%s194 + $0x10] sm:$0xff] %vm437, %v435
      %vm441 = vcmask 215040
      %442 = vst.msk [vmem:[%s194 + $0x18] sm:$0x7] %vm441, %v436
      %v443 = vld [vmem:[%s277] sm:$0xff]
      %v444 = vld [vmem:[%s277 + $0x8] sm:$0xff]
      %v445 = vld [vmem:[%s277 + $0x10] sm:$0xff]
      %v446 = vld [vmem:[%s277 + $0x18] sm:$0x1f]
      %v447 = vld [vmem:[%s1] sm:$0x1]
      %v448 = vlaneseq
      %v449 = vshrl.u32 %v448, 7
      %v450 = vsub.s32 0, %v449
      %v451 = vrot.slane %v447, %v450
      %v452 = vmul.f32 %v443, %v451
      %v453 = vmul.f32 %v444, %v451
      %v454 = vmul.f32 %v445, %v451
      %v455 = vmul.f32 %v446, %v451
      %v456 = vadd.f32 %v452, 0.0
      %v457 = vadd.f32 %v453, 0.0
      %v458 = vadd.f32 %v454, 0.0
      %v459 = vadd.f32 %v455, 0.0
      %v460 = vld [vmem:[%s1 + $0x1] sm:$0x1]
      %v461 = vlaneseq
      %v462 = vshrl.u32 %v461, 7
      %v463 = vsub.s32 0, %v462
      %v464 = vrot.slane %v460, %v463
      %v465 = vmul.f32 %v443, %v464
      %v466 = vmul.f32 %v444, %v464
      %v467 = vmul.f32 %v445, %v464
      %v468 = vmul.f32 %v446, %v464
      %v473 = vrot.slane %v465, 1
      %v474 = vrot.slane %v466, 1
      %v475 = vsel %vm230, %v473, %v474
      %v476 = vrot.slane %v467, 1
      %v477 = vsel %vm230, %v474, %v476
      %v478 = vrot.slane %v468, 1
      %v479 = vsel %vm230, %v476, %v478
      %v484 = vadd.f32 %v456, %v475
      %v485 = vadd.f32 %v457, %v477
      %v486 = vadd.f32 %v458, %v479
      %v487 = vadd.f32 %v459, %v478
      %v488 = vld [vmem:[%s1 + $0x2] sm:$0x1]
      %v489 = vlaneseq
      %v490 = vshrl.u32 %v489, 7
      %v491 = vsub.s32 0, %v490
      %v492 = vrot.slane %v488, %v491
      %v493 = vmul.f32 %v443, %v492
      %v494 = vmul.f32 %v444, %v492
      %v495 = vmul.f32 %v445, %v492
      %v496 = vmul.f32 %v446, %v492
      %v501 = vrot.slane %v493, 2
      %v502 = vrot.slane %v494, 2
      %v503 = vsel %vm259, %v501, %v502
      %v504 = vrot.slane %v495, 2
      %v505 = vsel %vm259, %v502, %v504
      %v506 = vrot.slane %v496, 2
      %v507 = vsel %vm259, %v504, %v506
      %v512 = vadd.f32 %v484, %v503
      %v513 = vadd.f32 %v485, %v505
      %v514 = vadd.f32 %v486, %v507
      %v515 = vadd.f32 %v487, %v506
      %v516 = vld [vmem:[%s353] sm:$0xff]
      %v517 = vld [vmem:[%s353 + $0x8] sm:$0xff]
      %v518 = vld [vmem:[%s353 + $0x10] sm:$0xff]
      %v519 = vld [vmem:[%s353 + $0x18] sm:$0x1f]
      %v520 = vld [vmem:[%s1 + $0x3] sm:$0x1]
      %v521 = vlaneseq
      %v522 = vshrl.u32 %v521, 7
      %v523 = vsub.s32 0, %v522
      %v524 = vrot.slane %v520, %v523
      %v525 = vmul.f32 %v516, %v524
      %v526 = vmul.f32 %v517, %v524
      %v527 = vmul.f32 %v518, %v524
      %v528 = vmul.f32 %v519, %v524
      %v529 = vadd.f32 %v512, %v525
      %v530 = vadd.f32 %v513, %v526
      %v531 = vadd.f32 %v514, %v527
      %v532 = vadd.f32 %v515, %v528
      %v533 = vld [vmem:[%s1 + $0x4] sm:$0x1]
      %v534 = vlaneseq
      %v535 = vshrl.u32 %v534, 7
      %v536 = vsub.s32 0, %v535
      %v537 = vrot.slane %v533, %v536
      %v538 = vmul.f32 %v516, %v537
      %v539 = vmul.f32 %v517, %v537
      %v540 = vmul.f32 %v518, %v537
      %v541 = vmul.f32 %v519, %v537
      %v546 = vrot.slane %v538, 1
      %v547 = vrot.slane %v539, 1
      %v548 = vsel %vm230, %v546, %v547
      %v549 = vrot.slane %v540, 1
      %v550 = vsel %vm230, %v547, %v549
      %v551 = vrot.slane %v541, 1
      %v552 = vsel %vm230, %v549, %v551
      %v557 = vadd.f32 %v529, %v548
      %v558 = vadd.f32 %v530, %v550
      %v559 = vadd.f32 %v531, %v552
      %v560 = vadd.f32 %v532, %v551
      %v561 = vld [vmem:[%s1 + $0x5] sm:$0x1]
      %v562 = vlaneseq
      %v563 = vshrl.u32 %v562, 7
      %v564 = vsub.s32 0, %v563
      %v565 = vrot.slane %v561, %v564
      %v566 = vmul.f32 %v516, %v565
      %v567 = vmul.f32 %v517, %v565
      %v568 = vmul.f32 %v518, %v565
      %v569 = vmul.f32 %v519, %v565
      %v574 = vrot.slane %v566, 2
      %v575 = vrot.slane %v567, 2
      %v576 = vsel %vm259, %v574, %v575
      %v577 = vrot.slane %v568, 2
      %v578 = vsel %vm259, %v575, %v577
      %v579 = vrot.slane %v569, 2
      %v580 = vsel %vm259, %v577, %v579
      %v585 = vadd.f32 %v557, %v576
      %v586 = vadd.f32 %v558, %v578
      %v587 = vadd.f32 %v559, %v580
      %v588 = vadd.f32 %v560, %v579
      %s589 = sadd.s32 %s196, 3
      %s590 = smul.u32 %s589, 32
      %s591 = scalar_lea.vmem %s184, %s590
      %v592 = vld [vmem:[%s591] sm:$0xff]
      %v593 = vld [vmem:[%s591 + $0x8] sm:$0xff]
      %v594 = vld [vmem:[%s591 + $0x10] sm:$0xff]
      %v595 = vld [vmem:[%s591 + $0x18] sm:$0x1f]
      %v596 = vld [vmem:[%s1 + $0x6] sm:$0x1]
      %v597 = vlaneseq
      %v598 = vshrl.u32 %v597, 7
      %v599 = vsub.s32 0, %v598
      %v600 = vrot.slane %v596, %v599
      %v601 = vmul.f32 %v592, %v600
      %v602 = vmul.f32 %v593, %v600
      %v603 = vmul.f32 %v594, %v600
      %v604 = vmul.f32 %v595, %v600
      %v605 = vadd.f32 %v585, %v601
      %v606 = vadd.f32 %v586, %v602
      %v607 = vadd.f32 %v587, %v603
      %v608 = vadd.f32 %v588, %v604
      %v609 = vld [vmem:[%s1 + $0x7] sm:$0x1]
      %v610 = vlaneseq
      %v611 = vshrl.u32 %v610, 7
      %v612 = vsub.s32 0, %v611
      %v613 = vrot.slane %v609, %v612
      %v614 = vmul.f32 %v592, %v613
      %v615 = vmul.f32 %v593, %v613
      %v616 = vmul.f32 %v594, %v613
      %v617 = vmul.f32 %v595, %v613
      %v622 = vrot.slane %v614, 1
      %v623 = vrot.slane %v615, 1
      %v624 = vsel %vm230, %v622, %v623
      %v625 = vrot.slane %v616, 1
      %v626 = vsel %vm230, %v623, %v625
      %v627 = vrot.slane %v617, 1
      %v628 = vsel %vm230, %v625, %v627
      %v633 = vadd.f32 %v605, %v624
      %v634 = vadd.f32 %v606, %v626
      %v635 = vadd.f32 %v607, %v628
      %v636 = vadd.f32 %v608, %v627
      %v637 = vld [vmem:[%s1 + $0x8] sm:$0x1]
      %v638 = vlaneseq
      %v639 = vshrl.u32 %v638, 7
      %v640 = vsub.s32 0, %v639
      %v641 = vrot.slane %v637, %v640
      %v642 = vmul.f32 %v592, %v641
      %v643 = vmul.f32 %v593, %v641
      %v644 = vmul.f32 %v594, %v641
      %v645 = vmul.f32 %v595, %v641
      %v650 = vrot.slane %v642, 2
      %v651 = vrot.slane %v643, 2
      %v652 = vsel %vm259, %v650, %v651
      %v653 = vrot.slane %v644, 2
      %v654 = vsel %vm259, %v651, %v653
      %v655 = vrot.slane %v645, 2
      %v656 = vsel %vm259, %v653, %v655
      %v661 = vadd.f32 %v633, %v652
      %v662 = vadd.f32 %v634, %v654
      %v663 = vadd.f32 %v635, %v656
      %v664 = vadd.f32 %v636, %v655
      %v665 = vadd.f32 %v661, %v431
      %v666 = vadd.f32 %v662, %v431
      %v667 = vadd.f32 %v663, %v431
      %v668 = vadd.f32 %v664, %v431
      %s669 = scalar_lea.vmem %s194, 32
      %670 = vst.msk [vmem:[%s669] sm:$0xff] %vm437, %v665
      %671 = vst.msk [vmem:[%s669 + $0x8] sm:$0xff] %vm437, %v666
      %672 = vst.msk [vmem:[%s669 + $0x10] sm:$0xff] %vm437, %v667
      %673 = vst.msk [vmem:[%s669 + $0x18] sm:$0x7] %vm441, %v668
      %v674 = vld [vmem:[%s353] sm:$0xff]
      %v675 = vld [vmem:[%s353 + $0x8] sm:$0xff]
      %v676 = vld [vmem:[%s353 + $0x10] sm:$0xff]
      %v677 = vld [vmem:[%s353 + $0x18] sm:$0x1f]
      %v678 = vld [vmem:[%s1] sm:$0x1]
      %v679 = vlaneseq
      %v680 = vshrl.u32 %v679, 7
      %v681 = vsub.s32 0, %v680
      %v682 = vrot.slane %v678, %v681
      %v683 = vmul.f32 %v674, %v682
      %v684 = vmul.f32 %v675, %v682
      %v685 = vmul.f32 %v676, %v682
      %v686 = vmul.f32 %v677, %v682
      %v687 = vadd.f32 %v683, 0.0
      %v688 = vadd.f32 %v684, 0.0
      %v689 = vadd.f32 %v685, 0.0
      %v690 = vadd.f32 %v686, 0.0
      %v691 = vld [vmem:[%s1 + $0x1] sm:$0x1]
      %v692 = vlaneseq
      %v693 = vshrl.u32 %v692, 7
      %v694 = vsub.s32 0, %v693
      %v695 = vrot.slane %v691, %v694
      %v696 = vmul.f32 %v674, %v695
      %v697 = vmul.f32 %v675, %v695
      %v698 = vmul.f32 %v676, %v695
      %v699 = vmul.f32 %v677, %v695
      %v704 = vrot.slane %v696, 1
      %v705 = vrot.slane %v697, 1
      %v706 = vsel %vm230, %v704, %v705
      %v707 = vrot.slane %v698, 1
      %v708 = vsel %vm230, %v705, %v707
      %v709 = vrot.slane %v699, 1
      %v710 = vsel %vm230, %v707, %v709
      %v715 = vadd.f32 %v687, %v706
      %v716 = vadd.f32 %v688, %v708
      %v717 = vadd.f32 %v689, %v710
      %v718 = vadd.f32 %v690, %v709
      %v719 = vld [vmem:[%s1 + $0x2] sm:$0x1]
      %v720 = vlaneseq
      %v721 = vshrl.u32 %v720, 7
      %v722 = vsub.s32 0, %v721
      %v723 = vrot.slane %v719, %v722
      %v724 = vmul.f32 %v674, %v723
      %v725 = vmul.f32 %v675, %v723
      %v726 = vmul.f32 %v676, %v723
      %v727 = vmul.f32 %v677, %v723
      %v732 = vrot.slane %v724, 2
      %v733 = vrot.slane %v725, 2
      %v734 = vsel %vm259, %v732, %v733
      %v735 = vrot.slane %v726, 2
      %v736 = vsel %vm259, %v733, %v735
      %v737 = vrot.slane %v727, 2
      %v738 = vsel %vm259, %v735, %v737
      %v743 = vadd.f32 %v715, %v734
      %v744 = vadd.f32 %v716, %v736
      %v745 = vadd.f32 %v717, %v738
      %v746 = vadd.f32 %v718, %v737
      %v747 = vld [vmem:[%s591] sm:$0xff]
      %v748 = vld [vmem:[%s591 + $0x8] sm:$0xff]
      %v749 = vld [vmem:[%s591 + $0x10] sm:$0xff]
      %v750 = vld [vmem:[%s591 + $0x18] sm:$0x1f]
      %v751 = vld [vmem:[%s1 + $0x3] sm:$0x1]
      %v752 = vlaneseq
      %v753 = vshrl.u32 %v752, 7
      %v754 = vsub.s32 0, %v753
      %v755 = vrot.slane %v751, %v754
      %v756 = vmul.f32 %v747, %v755
      %v757 = vmul.f32 %v748, %v755
      %v758 = vmul.f32 %v749, %v755
      %v759 = vmul.f32 %v750, %v755
      %v760 = vadd.f32 %v743, %v756
      %v761 = vadd.f32 %v744, %v757
      %v762 = vadd.f32 %v745, %v758
      %v763 = vadd.f32 %v746, %v759
      %v764 = vld [vmem:[%s1 + $0x4] sm:$0x1]
      %v765 = vlaneseq
      %v766 = vshrl.u32 %v765, 7
      %v767 = vsub.s32 0, %v766
      %v768 = vrot.slane %v764, %v767
      %v769 = vmul.f32 %v747, %v768
      %v770 = vmul.f32 %v748, %v768
      %v771 = vmul.f32 %v749, %v768
      %v772 = vmul.f32 %v750, %v768
      %v777 = vrot.slane %v769, 1
      %v778 = vrot.slane %v770, 1
      %v779 = vsel %vm230, %v777, %v778
      %v780 = vrot.slane %v771, 1
      %v781 = vsel %vm230, %v778, %v780
      %v782 = vrot.slane %v772, 1
      %v783 = vsel %vm230, %v780, %v782
      %v788 = vadd.f32 %v760, %v779
      %v789 = vadd.f32 %v761, %v781
      %v790 = vadd.f32 %v762, %v783
      %v791 = vadd.f32 %v763, %v782
      %v792 = vld [vmem:[%s1 + $0x5] sm:$0x1]
      %v793 = vlaneseq
      %v794 = vshrl.u32 %v793, 7
      %v795 = vsub.s32 0, %v794
      %v796 = vrot.slane %v792, %v795
      %v797 = vmul.f32 %v747, %v796
      %v798 = vmul.f32 %v748, %v796
      %v799 = vmul.f32 %v749, %v796
      %v800 = vmul.f32 %v750, %v796
      %v805 = vrot.slane %v797, 2
      %v806 = vrot.slane %v798, 2
      %v807 = vsel %vm259, %v805, %v806
      %v808 = vrot.slane %v799, 2
      %v809 = vsel %vm259, %v806, %v808
      %v810 = vrot.slane %v800, 2
      %v811 = vsel %vm259, %v808, %v810
      %v816 = vadd.f32 %v788, %v807
      %v817 = vadd.f32 %v789, %v809
      %v818 = vadd.f32 %v790, %v811
      %v819 = vadd.f32 %v791, %v810
      %s820 = sadd.s32 %s196, 4
      %s821 = smul.u32 %s820, 32
      %s822 = scalar_lea.vmem %s184, %s821
      %v823 = vld [vmem:[%s822] sm:$0xff]
      %v824 = vld [vmem:[%s822 + $0x8] sm:$0xff]
      %v825 = vld [vmem:[%s822 + $0x10] sm:$0xff]
      %v826 = vld [vmem:[%s822 + $0x18] sm:$0x1f]
      %v827 = vld [vmem:[%s1 + $0x6] sm:$0x1]
      %v828 = vlaneseq
      %v829 = vshrl.u32 %v828, 7
      %v830 = vsub.s32 0, %v829
      %v831 = vrot.slane %v827, %v830
      %v832 = vmul.f32 %v823, %v831
      %v833 = vmul.f32 %v824, %v831
      %v834 = vmul.f32 %v825, %v831
      %v835 = vmul.f32 %v826, %v831
      %v836 = vadd.f32 %v816, %v832
      %v837 = vadd.f32 %v817, %v833
      %v838 = vadd.f32 %v818, %v834
      %v839 = vadd.f32 %v819, %v835
      %v840 = vld [vmem:[%s1 + $0x7] sm:$0x1]
      %v841 = vlaneseq
      %v842 = vshrl.u32 %v841, 7
      %v843 = vsub.s32 0, %v842
      %v844 = vrot.slane %v840, %v843
      %v845 = vmul.f32 %v823, %v844
      %v846 = vmul.f32 %v824, %v844
      %v847 = vmul.f32 %v825, %v844
      %v848 = vmul.f32 %v826, %v844
      %v853 = vrot.slane %v845, 1
      %v854 = vrot.slane %v846, 1
      %v855 = vsel %vm230, %v853, %v854
      %v856 = vrot.slane %v847, 1
      %v857 = vsel %vm230, %v854, %v856
      %v858 = vrot.slane %v848, 1
      %v859 = vsel %vm230, %v856, %v858
      %v864 = vadd.f32 %v836, %v855
      %v865 = vadd.f32 %v837, %v857
      %v866 = vadd.f32 %v838, %v859
      %v867 = vadd.f32 %v839, %v858
      %v868 = vld [vmem:[%s1 + $0x8] sm:$0x1]
      %v869 = vlaneseq
      %v870 = vshrl.u32 %v869, 7
      %v871 = vsub.s32 0, %v870
      %v872 = vrot.slane %v868, %v871
      %v873 = vmul.f32 %v823, %v872
      %v874 = vmul.f32 %v824, %v872
      %v875 = vmul.f32 %v825, %v872
      %v876 = vmul.f32 %v826, %v872
      %v881 = vrot.slane %v873, 2
      %v882 = vrot.slane %v874, 2
      %v883 = vsel %vm259, %v881, %v882
      %v884 = vrot.slane %v875, 2
      %v885 = vsel %vm259, %v882, %v884
      %v886 = vrot.slane %v876, 2
      %v887 = vsel %vm259, %v884, %v886
      %v892 = vadd.f32 %v864, %v883
      %v893 = vadd.f32 %v865, %v885
      %v894 = vadd.f32 %v866, %v887
      %v895 = vadd.f32 %v867, %v886
      %v896 = vadd.f32 %v892, %v431
      %v897 = vadd.f32 %v893, %v431
      %v898 = vadd.f32 %v894, %v431
      %v899 = vadd.f32 %v895, %v431
      %s900 = scalar_lea.vmem %s194, 64
      %901 = vst.msk [vmem:[%s900] sm:$0xff] %vm437, %v896
      %902 = vst.msk [vmem:[%s900 + $0x8] sm:$0xff] %vm437, %v897
      %903 = vst.msk [vmem:[%s900 + $0x10] sm:$0xff] %vm437, %v898
      %904 = vst.msk [vmem:[%s900 + $0x18] sm:$0x7] %vm441, %v899
      %v905 = vld [vmem:[%s591] sm:$0xff]
      %v906 = vld [vmem:[%s591 + $0x8] sm:$0xff]
      %v907 = vld [vmem:[%s591 + $0x10] sm:$0xff]
      %v908 = vld [vmem:[%s591 + $0x18] sm:$0x1f]
      %v909 = vld [vmem:[%s1] sm:$0x1]
      %v910 = vlaneseq
      %v911 = vshrl.u32 %v910, 7
      %v912 = vsub.s32 0, %v911
      %v913 = vrot.slane %v909, %v912
      %v914 = vmul.f32 %v905, %v913
      %v915 = vmul.f32 %v906, %v913
      %v916 = vmul.f32 %v907, %v913
      %v917 = vmul.f32 %v908, %v913
      %v918 = vadd.f32 %v914, 0.0
      %v919 = vadd.f32 %v915, 0.0
      %v920 = vadd.f32 %v916, 0.0
      %v921 = vadd.f32 %v917, 0.0
      %v922 = vld [vmem:[%s1 + $0x1] sm:$0x1]
      %v923 = vlaneseq
      %v924 = vshrl.u32 %v923, 7
      %v925 = vsub.s32 0, %v924
      %v926 = vrot.slane %v922, %v925
      %v927 = vmul.f32 %v905, %v926
      %v928 = vmul.f32 %v906, %v926
      %v929 = vmul.f32 %v907, %v926
      %v930 = vmul.f32 %v908, %v926
      %v935 = vrot.slane %v927, 1
      %v936 = vrot.slane %v928, 1
      %v937 = vsel %vm230, %v935, %v936
      %v938 = vrot.slane %v929, 1
      %v939 = vsel %vm230, %v936, %v938
      %v940 = vrot.slane %v930, 1
      %v941 = vsel %vm230, %v938, %v940
      %v946 = vadd.f32 %v918, %v937
      %v947 = vadd.f32 %v919, %v939
      %v948 = vadd.f32 %v920, %v941
      %v949 = vadd.f32 %v921, %v940
      %v950 = vld [vmem:[%s1 + $0x2] sm:$0x1]
      %v951 = vlaneseq
      %v952 = vshrl.u32 %v951, 7
      %v953 = vsub.s32 0, %v952
      %v954 = vrot.slane %v950, %v953
      %v955 = vmul.f32 %v905, %v954
      %v956 = vmul.f32 %v906, %v954
      %v957 = vmul.f32 %v907, %v954
      %v958 = vmul.f32 %v908, %v954
      %v963 = vrot.slane %v955, 2
      %v964 = vrot.slane %v956, 2
      %v965 = vsel %vm259, %v963, %v964
      %v966 = vrot.slane %v957, 2
      %v967 = vsel %vm259, %v964, %v966
      %v968 = vrot.slane %v958, 2
      %v969 = vsel %vm259, %v966, %v968
      %v974 = vadd.f32 %v946, %v965
      %v975 = vadd.f32 %v947, %v967
      %v976 = vadd.f32 %v948, %v969
      %v977 = vadd.f32 %v949, %v968
      %v978 = vld [vmem:[%s822] sm:$0xff]
      %v979 = vld [vmem:[%s822 + $0x8] sm:$0xff]
      %v980 = vld [vmem:[%s822 + $0x10] sm:$0xff]
      %v981 = vld [vmem:[%s822 + $0x18] sm:$0x1f]
      %v982 = vld [vmem:[%s1 + $0x3] sm:$0x1]
      %v983 = vlaneseq
      %v984 = vshrl.u32 %v983, 7
      %v985 = vsub.s32 0, %v984
      %v986 = vrot.slane %v982, %v985
      %v987 = vmul.f32 %v978, %v986
      %v988 = vmul.f32 %v979, %v986
      %v989 = vmul.f32 %v980, %v986
      %v990 = vmul.f32 %v981, %v986
      %v991 = vadd.f32 %v974, %v987
      %v992 = vadd.f32 %v975, %v988
      %v993 = vadd.f32 %v976, %v989
      %v994 = vadd.f32 %v977, %v990
      %v995 = vld [vmem:[%s1 + $0x4] sm:$0x1]
      %v996 = vlaneseq
      %v997 = vshrl.u32 %v996, 7
      %v998 = vsub.s32 0, %v997
      %v999 = vrot.slane %v995, %v998
      %v1000 = vmul.f32 %v978, %v999
      %v1001 = vmul.f32 %v979, %v999
      %v1002 = vmul.f32 %v980, %v999
      %v1003 = vmul.f32 %v981, %v999
      %v1008 = vrot.slane %v1000, 1
      %v1009 = vrot.slane %v1001, 1
      %v1010 = vsel %vm230, %v1008, %v1009
      %v1011 = vrot.slane %v1002, 1
      %v1012 = vsel %vm230, %v1009, %v1011
      %v1013 = vrot.slane %v1003, 1
      %v1014 = vsel %vm230, %v1011, %v1013
      %v1019 = vadd.f32 %v991, %v1010
      %v1020 = vadd.f32 %v992, %v1012
      %v1021 = vadd.f32 %v993, %v1014
      %v1022 = vadd.f32 %v994, %v1013
      %v1023 = vld [vmem:[%s1 + $0x5] sm:$0x1]
      %v1024 = vlaneseq
      %v1025 = vshrl.u32 %v1024, 7
      %v1026 = vsub.s32 0, %v1025
      %v1027 = vrot.slane %v1023, %v1026
      %v1028 = vmul.f32 %v978, %v1027
      %v1029 = vmul.f32 %v979, %v1027
      %v1030 = vmul.f32 %v980, %v1027
      %v1031 = vmul.f32 %v981, %v1027
      %v1036 = vrot.slane %v1028, 2
      %v1037 = vrot.slane %v1029, 2
      %v1038 = vsel %vm259, %v1036, %v1037
      %v1039 = vrot.slane %v1030, 2
      %v1040 = vsel %vm259, %v1037, %v1039
      %v1041 = vrot.slane %v1031, 2
      %v1042 = vsel %vm259, %v1039, %v1041
      %v1047 = vadd.f32 %v1019, %v1038
      %v1048 = vadd.f32 %v1020, %v1040
      %v1049 = vadd.f32 %v1021, %v1042
      %v1050 = vadd.f32 %v1022, %v1041
      %s1051 = sadd.s32 %s196, 5
      %s1052 = smul.u32 %s1051, 32
      %s1053 = scalar_lea.vmem %s184, %s1052
      %v1054 = vld [vmem:[%s1053] sm:$0xff]
      %v1055 = vld [vmem:[%s1053 + $0x8] sm:$0xff]
      %v1056 = vld [vmem:[%s1053 + $0x10] sm:$0xff]
      %v1057 = vld [vmem:[%s1053 + $0x18] sm:$0x1f]
      %v1058 = vld [vmem:[%s1 + $0x6] sm:$0x1]
      %v1059 = vlaneseq
      %v1060 = vshrl.u32 %v1059, 7
      %v1061 = vsub.s32 0, %v1060
      %v1062 = vrot.slane %v1058, %v1061
      %v1063 = vmul.f32 %v1054, %v1062
      %v1064 = vmul.f32 %v1055, %v1062
      %v1065 = vmul.f32 %v1056, %v1062
      %v1066 = vmul.f32 %v1057, %v1062
      %v1067 = vadd.f32 %v1047, %v1063
      %v1068 = vadd.f32 %v1048, %v1064
      %v1069 = vadd.f32 %v1049, %v1065
      %v1070 = vadd.f32 %v1050, %v1066
      %v1071 = vld [vmem:[%s1 + $0x7] sm:$0x1]
      %v1072 = vlaneseq
      %v1073 = vshrl.u32 %v1072, 7
      %v1074 = vsub.s32 0, %v1073
      %v1075 = vrot.slane %v1071, %v1074
      %v1076 = vmul.f32 %v1054, %v1075
      %v1077 = vmul.f32 %v1055, %v1075
      %v1078 = vmul.f32 %v1056, %v1075
      %v1079 = vmul.f32 %v1057, %v1075
      %v1084 = vrot.slane %v1076, 1
      %v1085 = vrot.slane %v1077, 1
      %v1086 = vsel %vm230, %v1084, %v1085
      %v1087 = vrot.slane %v1078, 1
      %v1088 = vsel %vm230, %v1085, %v1087
      %v1089 = vrot.slane %v1079, 1
      %v1090 = vsel %vm230, %v1087, %v1089
      %v1095 = vadd.f32 %v1067, %v1086
      %v1096 = vadd.f32 %v1068, %v1088
      %v1097 = vadd.f32 %v1069, %v1090
      %v1098 = vadd.f32 %v1070, %v1089
      %v1099 = vld [vmem:[%s1 + $0x8] sm:$0x1]
      %v1100 = vlaneseq
      %v1101 = vshrl.u32 %v1100, 7
      %v1102 = vsub.s32 0, %v1101
      %v1103 = vrot.slane %v1099, %v1102
      %v1104 = vmul.f32 %v1054, %v1103
      %v1105 = vmul.f32 %v1055, %v1103
      %v1106 = vmul.f32 %v1056, %v1103
      %v1107 = vmul.f32 %v1057, %v1103
      %v1112 = vrot.slane %v1104, 2
      %v1113 = vrot.slane %v1105, 2
      %v1114 = vsel %vm259, %v1112, %v1113
      %v1115 = vrot.slane %v1106, 2
      %v1116 = vsel %vm259, %v1113, %v1115
      %v1117 = vrot.slane %v1107, 2
      %v1118 = vsel %vm259, %v1115, %v1117
      %v1123 = vadd.f32 %v1095, %v1114
      %v1124 = vadd.f32 %v1096, %v1116
      %v1125 = vadd.f32 %v1097, %v1118
      %v1126 = vadd.f32 %v1098, %v1117
      %v1127 = vadd.f32 %v1123, %v431
      %v1128 = vadd.f32 %v1124, %v431
      %v1129 = vadd.f32 %v1125, %v431
      %v1130 = vadd.f32 %v1126, %v431
      %s1131 = scalar_lea.vmem %s194, 96
      %1132 = vst.msk [vmem:[%s1131] sm:$0xff] %vm437, %v1127
      %1133 = vst.msk [vmem:[%s1131 + $0x8] sm:$0xff] %vm437, %v1128
      %1134 = vst.msk [vmem:[%s1131 + $0x10] sm:$0xff] %vm437, %v1129
      %1135 = vst.msk [vmem:[%s1131 + $0x18] sm:$0x7] %vm441, %v1130
      %v1136 = vld [vmem:[%s822] sm:$0xff]
      %v1137 = vld [vmem:[%s822 + $0x8] sm:$0xff]
      %v1138 = vld [vmem:[%s822 + $0x10] sm:$0xff]
      %v1139 = vld [vmem:[%s822 + $0x18] sm:$0x1f]
      %v1140 = vld [vmem:[%s1] sm:$0x1]
      %v1141 = vlaneseq
      %v1142 = vshrl.u32 %v1141, 7
      %v1143 = vsub.s32 0, %v1142
      %v1144 = vrot.slane %v1140, %v1143
      %v1145 = vmul.f32 %v1136, %v1144
      %v1146 = vmul.f32 %v1137, %v1144
      %v1147 = vmul.f32 %v1138, %v1144
      %v1148 = vmul.f32 %v1139, %v1144
      %v1149 = vadd.f32 %v1145, 0.0
      %v1150 = vadd.f32 %v1146, 0.0
      %v1151 = vadd.f32 %v1147, 0.0
      %v1152 = vadd.f32 %v1148, 0.0
      %v1153 = vld [vmem:[%s1 + $0x1] sm:$0x1]
      %v1154 = vlaneseq
      %v1155 = vshrl.u32 %v1154, 7
      %v1156 = vsub.s32 0, %v1155
      %v1157 = vrot.slane %v1153, %v1156
      %v1158 = vmul.f32 %v1136, %v1157
      %v1159 = vmul.f32 %v1137, %v1157
      %v1160 = vmul.f32 %v1138, %v1157
      %v1161 = vmul.f32 %v1139, %v1157
      %v1166 = vrot.slane %v1158, 1
      %v1167 = vrot.slane %v1159, 1
      %v1168 = vsel %vm230, %v1166, %v1167
      %v1169 = vrot.slane %v1160, 1
      %v1170 = vsel %vm230, %v1167, %v1169
      %v1171 = vrot.slane %v1161, 1
      %v1172 = vsel %vm230, %v1169, %v1171
      %v1177 = vadd.f32 %v1149, %v1168
      %v1178 = vadd.f32 %v1150, %v1170
      %v1179 = vadd.f32 %v1151, %v1172
      %v1180 = vadd.f32 %v1152, %v1171
      %v1181 = vld [vmem:[%s1 + $0x2] sm:$0x1]
      %v1182 = vlaneseq
      %v1183 = vshrl.u32 %v1182, 7
      %v1184 = vsub.s32 0, %v1183
      %v1185 = vrot.slane %v1181, %v1184
      %v1186 = vmul.f32 %v1136, %v1185
      %v1187 = vmul.f32 %v1137, %v1185
      %v1188 = vmul.f32 %v1138, %v1185
      %v1189 = vmul.f32 %v1139, %v1185
      %v1194 = vrot.slane %v1186, 2
      %v1195 = vrot.slane %v1187, 2
      %v1196 = vsel %vm259, %v1194, %v1195
      %v1197 = vrot.slane %v1188, 2
      %v1198 = vsel %vm259, %v1195, %v1197
      %v1199 = vrot.slane %v1189, 2
      %v1200 = vsel %vm259, %v1197, %v1199
      %v1205 = vadd.f32 %v1177, %v1196
      %v1206 = vadd.f32 %v1178, %v1198
      %v1207 = vadd.f32 %v1179, %v1200
      %v1208 = vadd.f32 %v1180, %v1199
      %v1209 = vld [vmem:[%s1053] sm:$0xff]
      %v1210 = vld [vmem:[%s1053 + $0x8] sm:$0xff]
      %v1211 = vld [vmem:[%s1053 + $0x10] sm:$0xff]
      %v1212 = vld [vmem:[%s1053 + $0x18] sm:$0x1f]
      %v1213 = vld [vmem:[%s1 + $0x3] sm:$0x1]
      %v1214 = vlaneseq
      %v1215 = vshrl.u32 %v1214, 7
      %v1216 = vsub.s32 0, %v1215
      %v1217 = vrot.slane %v1213, %v1216
      %v1218 = vmul.f32 %v1209, %v1217
      %v1219 = vmul.f32 %v1210, %v1217
      %v1220 = vmul.f32 %v1211, %v1217
      %v1221 = vmul.f32 %v1212, %v1217
      %v1222 = vadd.f32 %v1205, %v1218
      %v1223 = vadd.f32 %v1206, %v1219
      %v1224 = vadd.f32 %v1207, %v1220
      %v1225 = vadd.f32 %v1208, %v1221
      %v1226 = vld [vmem:[%s1 + $0x4] sm:$0x1]
      %v1227 = vlaneseq
      %v1228 = vshrl.u32 %v1227, 7
      %v1229 = vsub.s32 0, %v1228
      %v1230 = vrot.slane %v1226, %v1229
      %v1231 = vmul.f32 %v1209, %v1230
      %v1232 = vmul.f32 %v1210, %v1230
      %v1233 = vmul.f32 %v1211, %v1230
      %v1234 = vmul.f32 %v1212, %v1230
      %v1239 = vrot.slane %v1231, 1
      %v1240 = vrot.slane %v1232, 1
      %v1241 = vsel %vm230, %v1239, %v1240
      %v1242 = vrot.slane %v1233, 1
      %v1243 = vsel %vm230, %v1240, %v1242
      %v1244 = vrot.slane %v1234, 1
      %v1245 = vsel %vm230, %v1242, %v1244
      %v1250 = vadd.f32 %v1222, %v1241
      %v1251 = vadd.f32 %v1223, %v1243
      %v1252 = vadd.f32 %v1224, %v1245
      %v1253 = vadd.f32 %v1225, %v1244
      %v1254 = vld [vmem:[%s1 + $0x5] sm:$0x1]
      %v1255 = vlaneseq
      %v1256 = vshrl.u32 %v1255, 7
      %v1257 = vsub.s32 0, %v1256
      %v1258 = vrot.slane %v1254, %v1257
      %v1259 = vmul.f32 %v1209, %v1258
      %v1260 = vmul.f32 %v1210, %v1258
      %v1261 = vmul.f32 %v1211, %v1258
      %v1262 = vmul.f32 %v1212, %v1258
      %v1267 = vrot.slane %v1259, 2
      %v1268 = vrot.slane %v1260, 2
      %v1269 = vsel %vm259, %v1267, %v1268
      %v1270 = vrot.slane %v1261, 2
      %v1271 = vsel %vm259, %v1268, %v1270
      %v1272 = vrot.slane %v1262, 2
      %v1273 = vsel %vm259, %v1270, %v1272
      %v1278 = vadd.f32 %v1250, %v1269
      %v1279 = vadd.f32 %v1251, %v1271
      %v1280 = vadd.f32 %v1252, %v1273
      %v1281 = vadd.f32 %v1253, %v1272
      %s1282 = sadd.s32 %s196, 6
      %s1283 = smul.u32 %s1282, 32
      %s1284 = scalar_lea.vmem %s184, %s1283
      %v1285 = vld [vmem:[%s1284] sm:$0xff]
      %v1286 = vld [vmem:[%s1284 + $0x8] sm:$0xff]
      %v1287 = vld [vmem:[%s1284 + $0x10] sm:$0xff]
      %v1288 = vld [vmem:[%s1284 + $0x18] sm:$0x1f]
      %v1289 = vld [vmem:[%s1 + $0x6] sm:$0x1]
      %v1290 = vlaneseq
      %v1291 = vshrl.u32 %v1290, 7
      %v1292 = vsub.s32 0, %v1291
      %v1293 = vrot.slane %v1289, %v1292
      %v1294 = vmul.f32 %v1285, %v1293
      %v1295 = vmul.f32 %v1286, %v1293
      %v1296 = vmul.f32 %v1287, %v1293
      %v1297 = vmul.f32 %v1288, %v1293
      %v1298 = vadd.f32 %v1278, %v1294
      %v1299 = vadd.f32 %v1279, %v1295
      %v1300 = vadd.f32 %v1280, %v1296
      %v1301 = vadd.f32 %v1281, %v1297
      %v1302 = vld [vmem:[%s1 + $0x7] sm:$0x1]
      %v1303 = vlaneseq
      %v1304 = vshrl.u32 %v1303, 7
      %v1305 = vsub.s32 0, %v1304
      %v1306 = vrot.slane %v1302, %v1305
      %v1307 = vmul.f32 %v1285, %v1306
      %v1308 = vmul.f32 %v1286, %v1306
      %v1309 = vmul.f32 %v1287, %v1306
      %v1310 = vmul.f32 %v1288, %v1306
      %v1315 = vrot.slane %v1307, 1
      %v1316 = vrot.slane %v1308, 1
      %v1317 = vsel %vm230, %v1315, %v1316
      %v1318 = vrot.slane %v1309, 1
      %v1319 = vsel %vm230, %v1316, %v1318
      %v1320 = vrot.slane %v1310, 1
      %v1321 = vsel %vm230, %v1318, %v1320
      %v1326 = vadd.f32 %v1298, %v1317
      %v1327 = vadd.f32 %v1299, %v1319
      %v1328 = vadd.f32 %v1300, %v1321
      %v1329 = vadd.f32 %v1301, %v1320
      %v1330 = vld [vmem:[%s1 + $0x8] sm:$0x1]
      %v1331 = vlaneseq
      %v1332 = vshrl.u32 %v1331, 7
      %v1333 = vsub.s32 0, %v1332
      %v1334 = vrot.slane %v1330, %v1333
      %v1335 = vmul.f32 %v1285, %v1334
      %v1336 = vmul.f32 %v1286, %v1334
      %v1337 = vmul.f32 %v1287, %v1334
      %v1338 = vmul.f32 %v1288, %v1334
      %v1343 = vrot.slane %v1335, 2
      %v1344 = vrot.slane %v1336, 2
      %v1345 = vsel %vm259, %v1343, %v1344
      %v1346 = vrot.slane %v1337, 2
      %v1347 = vsel %vm259, %v1344, %v1346
      %v1348 = vrot.slane %v1338, 2
      %v1349 = vsel %vm259, %v1346, %v1348
      %v1354 = vadd.f32 %v1326, %v1345
      %v1355 = vadd.f32 %v1327, %v1347
      %v1356 = vadd.f32 %v1328, %v1349
      %v1357 = vadd.f32 %v1329, %v1348
      %v1358 = vadd.f32 %v1354, %v431
      %v1359 = vadd.f32 %v1355, %v431
      %v1360 = vadd.f32 %v1356, %v431
      %v1361 = vadd.f32 %v1357, %v431
      %s1362 = scalar_lea.vmem %s194, 128
      %1363 = vst.msk [vmem:[%s1362] sm:$0xff] %vm437, %v1358
      %1364 = vst.msk [vmem:[%s1362 + $0x8] sm:$0xff] %vm437, %v1359
      %1365 = vst.msk [vmem:[%s1362 + $0x10] sm:$0xff] %vm437, %v1360
      %1366 = vst.msk [vmem:[%s1362 + $0x18] sm:$0x7] %vm441, %v1361
      %v1367 = vld [vmem:[%s1053] sm:$0xff]
      %v1368 = vld [vmem:[%s1053 + $0x8] sm:$0xff]
      %v1369 = vld [vmem:[%s1053 + $0x10] sm:$0xff]
      %v1370 = vld [vmem:[%s1053 + $0x18] sm:$0x1f]
      %v1371 = vld [vmem:[%s1] sm:$0x1]
      %v1372 = vlaneseq
      %v1373 = vshrl.u32 %v1372, 7
      %v1374 = vsub.s32 0, %v1373
      %v1375 = vrot.slane %v1371, %v1374
      %v1376 = vmul.f32 %v1367, %v1375
      %v1377 = vmul.f32 %v1368, %v1375
      %v1378 = vmul.f32 %v1369, %v1375
      %v1379 = vmul.f32 %v1370, %v1375
      %v1380 = vadd.f32 %v1376, 0.0
      %v1381 = vadd.f32 %v1377, 0.0
      %v1382 = vadd.f32 %v1378, 0.0
      %v1383 = vadd.f32 %v1379, 0.0
      %v1384 = vld [vmem:[%s1 + $0x1] sm:$0x1]
      %v1385 = vlaneseq
      %v1386 = vshrl.u32 %v1385, 7
      %v1387 = vsub.s32 0, %v1386
      %v1388 = vrot.slane %v1384, %v1387
      %v1389 = vmul.f32 %v1367, %v1388
      %v1390 = vmul.f32 %v1368, %v1388
      %v1391 = vmul.f32 %v1369, %v1388
      %v1392 = vmul.f32 %v1370, %v1388
      %v1397 = vrot.slane %v1389, 1
      %v1398 = vrot.slane %v1390, 1
      %v1399 = vsel %vm230, %v1397, %v1398
      %v1400 = vrot.slane %v1391, 1
      %v1401 = vsel %vm230, %v1398, %v1400
      %v1402 = vrot.slane %v1392, 1
      %v1403 = vsel %vm230, %v1400, %v1402
      %v1408 = vadd.f32 %v1380, %v1399
      %v1409 = vadd.f32 %v1381, %v1401
      %v1410 = vadd.f32 %v1382, %v1403
      %v1411 = vadd.f32 %v1383, %v1402
      %v1412 = vld [vmem:[%s1 + $0x2] sm:$0x1]
      %v1413 = vlaneseq
      %v1414 = vshrl.u32 %v1413, 7
      %v1415 = vsub.s32 0, %v1414
      %v1416 = vrot.slane %v1412, %v1415
      %v1417 = vmul.f32 %v1367, %v1416
      %v1418 = vmul.f32 %v1368, %v1416
      %v1419 = vmul.f32 %v1369, %v1416
      %v1420 = vmul.f32 %v1370, %v1416
      %v1425 = vrot.slane %v1417, 2
      %v1426 = vrot.slane %v1418, 2
      %v1427 = vsel %vm259, %v1425, %v1426
      %v1428 = vrot.slane %v1419, 2
      %v1429 = vsel %vm259, %v1426, %v1428
      %v1430 = vrot.slane %v1420, 2
      %v1431 = vsel %vm259, %v1428, %v1430
      %v1436 = vadd.f32 %v1408, %v1427
      %v1437 = vadd.f32 %v1409, %v1429
      %v1438 = vadd.f32 %v1410, %v1431
      %v1439 = vadd.f32 %v1411, %v1430
      %v1440 = vld [vmem:[%s1284] sm:$0xff]
      %v1441 = vld [vmem:[%s1284 + $0x8] sm:$0xff]
      %v1442 = vld [vmem:[%s1284 + $0x10] sm:$0xff]
      %v1443 = vld [vmem:[%s1284 + $0x18] sm:$0x1f]
      %v1444 = vld [vmem:[%s1 + $0x3] sm:$0x1]
      %v1445 = vlaneseq
      %v1446 = vshrl.u32 %v1445, 7
      %v1447 = vsub.s32 0, %v1446
      %v1448 = vrot.slane %v1444, %v1447
      %v1449 = vmul.f32 %v1440, %v1448
      %v1450 = vmul.f32 %v1441, %v1448
      %v1451 = vmul.f32 %v1442, %v1448
      %v1452 = vmul.f32 %v1443, %v1448
      %v1453 = vadd.f32 %v1436, %v1449
      %v1454 = vadd.f32 %v1437, %v1450
      %v1455 = vadd.f32 %v1438, %v1451
      %v1456 = vadd.f32 %v1439, %v1452
      %v1457 = vld [vmem:[%s1 + $0x4] sm:$0x1]
      %v1458 = vlaneseq
      %v1459 = vshrl.u32 %v1458, 7
      %v1460 = vsub.s32 0, %v1459
      %v1461 = vrot.slane %v1457, %v1460
      %v1462 = vmul.f32 %v1440, %v1461
      %v1463 = vmul.f32 %v1441, %v1461
      %v1464 = vmul.f32 %v1442, %v1461
      %v1465 = vmul.f32 %v1443, %v1461
      %v1470 = vrot.slane %v1462, 1
      %v1471 = vrot.slane %v1463, 1
      %v1472 = vsel %vm230, %v1470, %v1471
      %v1473 = vrot.slane %v1464, 1
      %v1474 = vsel %vm230, %v1471, %v1473
      %v1475 = vrot.slane %v1465, 1
      %v1476 = vsel %vm230, %v1473, %v1475
      %v1481 = vadd.f32 %v1453, %v1472
      %v1482 = vadd.f32 %v1454, %v1474
      %v1483 = vadd.f32 %v1455, %v1476
      %v1484 = vadd.f32 %v1456, %v1475
      %v1485 = vld [vmem:[%s1 + $0x5] sm:$0x1]
      %v1486 = vlaneseq
      %v1487 = vshrl.u32 %v1486, 7
      %v1488 = vsub.s32 0, %v1487
      %v1489 = vrot.slane %v1485, %v1488
      %v1490 = vmul.f32 %v1440, %v1489
      %v1491 = vmul.f32 %v1441, %v1489
      %v1492 = vmul.f32 %v1442, %v1489
      %v1493 = vmul.f32 %v1443, %v1489
      %v1498 = vrot.slane %v1490, 2
      %v1499 = vrot.slane %v1491, 2
      %v1500 = vsel %vm259, %v1498, %v1499
      %v1501 = vrot.slane %v1492, 2
      %v1502 = vsel %vm259, %v1499, %v1501
      %v1503 = vrot.slane %v1493, 2
      %v1504 = vsel %vm259, %v1501, %v1503
      %v1509 = vadd.f32 %v1481, %v1500
      %v1510 = vadd.f32 %v1482, %v1502
      %v1511 = vadd.f32 %v1483, %v1504
      %v1512 = vadd.f32 %v1484, %v1503
      %s1513 = sadd.s32 %s196, 7
      %s1514 = smul.u32 %s1513, 32
      %s1515 = scalar_lea.vmem %s184, %s1514
      %v1516 = vld [vmem:[%s1515] sm:$0xff]
      %v1517 = vld [vmem:[%s1515 + $0x8] sm:$0xff]
      %v1518 = vld [vmem:[%s1515 + $0x10] sm:$0xff]
      %v1519 = vld [vmem:[%s1515 + $0x18] sm:$0x1f]
      %v1520 = vld [vmem:[%s1 + $0x6] sm:$0x1]
      %v1521 = vlaneseq
      %v1522 = vshrl.u32 %v1521, 7
      %v1523 = vsub.s32 0, %v1522
      %v1524 = vrot.slane %v1520, %v1523
      %v1525 = vmul.f32 %v1516, %v1524
      %v1526 = vmul.f32 %v1517, %v1524
      %v1527 = vmul.f32 %v1518, %v1524
      %v1528 = vmul.f32 %v1519, %v1524
      %v1529 = vadd.f32 %v1509, %v1525
      %v1530 = vadd.f32 %v1510, %v1526
      %v1531 = vadd.f32 %v1511, %v1527
      %v1532 = vadd.f32 %v1512, %v1528
      %v1533 = vld [vmem:[%s1 + $0x7] sm:$0x1]
      %v1534 = vlaneseq
      %v1535 = vshrl.u32 %v1534, 7
      %v1536 = vsub.s32 0, %v1535
      %v1537 = vrot.slane %v1533, %v1536
      %v1538 = vmul.f32 %v1516, %v1537
      %v1539 = vmul.f32 %v1517, %v1537
      %v1540 = vmul.f32 %v1518, %v1537
      %v1541 = vmul.f32 %v1519, %v1537
      %v1546 = vrot.slane %v1538, 1
      %v1547 = vrot.slane %v1539, 1
      %v1548 = vsel %vm230, %v1546, %v1547
      %v1549 = vrot.slane %v1540, 1
      %v1550 = vsel %vm230, %v1547, %v1549
      %v1551 = vrot.slane %v1541, 1
      %v1552 = vsel %vm230, %v1549, %v1551
      %v1557 = vadd.f32 %v1529, %v1548
      %v1558 = vadd.f32 %v1530, %v1550
      %v1559 = vadd.f32 %v1531, %v1552
      %v1560 = vadd.f32 %v1532, %v1551
      %v1561 = vld [vmem:[%s1 + $0x8] sm:$0x1]
      %v1562 = vlaneseq
      %v1563 = vshrl.u32 %v1562, 7
      %v1564 = vsub.s32 0, %v1563
      %v1565 = vrot.slane %v1561, %v1564
      %v1566 = vmul.f32 %v1516, %v1565
      %v1567 = vmul.f32 %v1517, %v1565
      %v1568 = vmul.f32 %v1518, %v1565
      %v1569 = vmul.f32 %v1519, %v1565
      %v1574 = vrot.slane %v1566, 2
      %v1575 = vrot.slane %v1567, 2
      %v1576 = vsel %vm259, %v1574, %v1575
      %v1577 = vrot.slane %v1568, 2
      %v1578 = vsel %vm259, %v1575, %v1577
      %v1579 = vrot.slane %v1569, 2
      %v1580 = vsel %vm259, %v1577, %v1579
      %v1585 = vadd.f32 %v1557, %v1576
      %v1586 = vadd.f32 %v1558, %v1578
      %v1587 = vadd.f32 %v1559, %v1580
      %v1588 = vadd.f32 %v1560, %v1579
      %v1589 = vadd.f32 %v1585, %v431
      %v1590 = vadd.f32 %v1586, %v431
      %v1591 = vadd.f32 %v1587, %v431
      %v1592 = vadd.f32 %v1588, %v431
      %s1593 = scalar_lea.vmem %s194, 160
      %1594 = vst.msk [vmem:[%s1593] sm:$0xff] %vm437, %v1589
      %1595 = vst.msk [vmem:[%s1593 + $0x8] sm:$0xff] %vm437, %v1590
      %1596 = vst.msk [vmem:[%s1593 + $0x10] sm:$0xff] %vm437, %v1591
      %1597 = vst.msk [vmem:[%s1593 + $0x18] sm:$0x7] %vm441, %v1592
      %v1598 = vld [vmem:[%s1284] sm:$0xff]
      %v1599 = vld [vmem:[%s1284 + $0x8] sm:$0xff]
      %v1600 = vld [vmem:[%s1284 + $0x10] sm:$0xff]
      %v1601 = vld [vmem:[%s1284 + $0x18] sm:$0x1f]
      %v1602 = vld [vmem:[%s1] sm:$0x1]
      %v1603 = vlaneseq
      %v1604 = vshrl.u32 %v1603, 7
      %v1605 = vsub.s32 0, %v1604
      %v1606 = vrot.slane %v1602, %v1605
      %v1607 = vmul.f32 %v1598, %v1606
      %v1608 = vmul.f32 %v1599, %v1606
      %v1609 = vmul.f32 %v1600, %v1606
      %v1610 = vmul.f32 %v1601, %v1606
      %v1611 = vadd.f32 %v1607, 0.0
      %v1612 = vadd.f32 %v1608, 0.0
      %v1613 = vadd.f32 %v1609, 0.0
      %v1614 = vadd.f32 %v1610, 0.0
      %v1615 = vld [vmem:[%s1 + $0x1] sm:$0x1]
      %v1616 = vlaneseq
      %v1617 = vshrl.u32 %v1616, 7
      %v1618 = vsub.s32 0, %v1617
      %v1619 = vrot.slane %v1615, %v1618
      %v1620 = vmul.f32 %v1598, %v1619
      %v1621 = vmul.f32 %v1599, %v1619
      %v1622 = vmul.f32 %v1600, %v1619
      %v1623 = vmul.f32 %v1601, %v1619
      %v1628 = vrot.slane %v1620, 1
      %v1629 = vrot.slane %v1621, 1
      %v1630 = vsel %vm230, %v1628, %v1629
      %v1631 = vrot.slane %v1622, 1
      %v1632 = vsel %vm230, %v1629, %v1631
      %v1633 = vrot.slane %v1623, 1
      %v1634 = vsel %vm230, %v1631, %v1633
      %v1639 = vadd.f32 %v1611, %v1630
      %v1640 = vadd.f32 %v1612, %v1632
      %v1641 = vadd.f32 %v1613, %v1634
      %v1642 = vadd.f32 %v1614, %v1633
      %v1643 = vld [vmem:[%s1 + $0x2] sm:$0x1]
      %v1644 = vlaneseq
      %v1645 = vshrl.u32 %v1644, 7
      %v1646 = vsub.s32 0, %v1645
      %v1647 = vrot.slane %v1643, %v1646
      %v1648 = vmul.f32 %v1598, %v1647
      %v1649 = vmul.f32 %v1599, %v1647
      %v1650 = vmul.f32 %v1600, %v1647
      %v1651 = vmul.f32 %v1601, %v1647
      %v1656 = vrot.slane %v1648, 2
      %v1657 = vrot.slane %v1649, 2
      %v1658 = vsel %vm259, %v1656, %v1657
      %v1659 = vrot.slane %v1650, 2
      %v1660 = vsel %vm259, %v1657, %v1659
      %v1661 = vrot.slane %v1651, 2
      %v1662 = vsel %vm259, %v1659, %v1661
      %v1667 = vadd.f32 %v1639, %v1658
      %v1668 = vadd.f32 %v1640, %v1660
      %v1669 = vadd.f32 %v1641, %v1662
      %v1670 = vadd.f32 %v1642, %v1661
      %v1671 = vld [vmem:[%s1515] sm:$0xff]
      %v1672 = vld [vmem:[%s1515 + $0x8] sm:$0xff]
      %v1673 = vld [vmem:[%s1515 + $0x10] sm:$0xff]
      %v1674 = vld [vmem:[%s1515 + $0x18] sm:$0x1f]
      %v1675 = vld [vmem:[%s1 + $0x3] sm:$0x1]
      %v1676 = vlaneseq
      %v1677 = vshrl.u32 %v1676, 7
      %v1678 = vsub.s32 0, %v1677
      %v1679 = vrot.slane %v1675, %v1678
      %v1680 = vmul.f32 %v1671, %v1679
      %v1681 = vmul.f32 %v1672, %v1679
      %v1682 = vmul.f32 %v1673, %v1679
      %v1683 = vmul.f32 %v1674, %v1679
      %v1684 = vadd.f32 %v1667, %v1680
      %v1685 = vadd.f32 %v1668, %v1681
      %v1686 = vadd.f32 %v1669, %v1682
      %v1687 = vadd.f32 %v1670, %v1683
      %v1688 = vld [vmem:[%s1 + $0x4] sm:$0x1]
      %v1689 = vlaneseq
      %v1690 = vshrl.u32 %v1689, 7
      %v1691 = vsub.s32 0, %v1690
      %v1692 = vrot.slane %v1688, %v1691
      %v1693 = vmul.f32 %v1671, %v1692
      %v1694 = vmul.f32 %v1672, %v1692
      %v1695 = vmul.f32 %v1673, %v1692
      %v1696 = vmul.f32 %v1674, %v1692
      %v1701 = vrot.slane %v1693, 1
      %v1702 = vrot.slane %v1694, 1
      %v1703 = vsel %vm230, %v1701, %v1702
      %v1704 = vrot.slane %v1695, 1
      %v1705 = vsel %vm230, %v1702, %v1704
      %v1706 = vrot.slane %v1696, 1
      %v1707 = vsel %vm230, %v1704, %v1706
      %v1712 = vadd.f32 %v1684, %v1703
      %v1713 = vadd.f32 %v1685, %v1705
      %v1714 = vadd.f32 %v1686, %v1707
      %v1715 = vadd.f32 %v1687, %v1706
      %v1716 = vld [vmem:[%s1 + $0x5] sm:$0x1]
      %v1717 = vlaneseq
      %v1718 = vshrl.u32 %v1717, 7
      %v1719 = vsub.s32 0, %v1718
      %v1720 = vrot.slane %v1716, %v1719
      %v1721 = vmul.f32 %v1671, %v1720
      %v1722 = vmul.f32 %v1672, %v1720
      %v1723 = vmul.f32 %v1673, %v1720
      %v1724 = vmul.f32 %v1674, %v1720
      %v1729 = vrot.slane %v1721, 2
      %v1730 = vrot.slane %v1722, 2
      %v1731 = vsel %vm259, %v1729, %v1730
      %v1732 = vrot.slane %v1723, 2
      %v1733 = vsel %vm259, %v1730, %v1732
      %v1734 = vrot.slane %v1724, 2
      %v1735 = vsel %vm259, %v1732, %v1734
      %v1740 = vadd.f32 %v1712, %v1731
      %v1741 = vadd.f32 %v1713, %v1733
      %v1742 = vadd.f32 %v1714, %v1735
      %v1743 = vadd.f32 %v1715, %v1734
      %s1744 = sadd.s32 %s196, 8
      %s1745 = smul.u32 %s1744, 32
      %s1746 = scalar_lea.vmem %s184, %s1745
      %v1747 = vld [vmem:[%s1746] sm:$0xff]
      %v1748 = vld [vmem:[%s1746 + $0x8] sm:$0xff]
      %v1749 = vld [vmem:[%s1746 + $0x10] sm:$0xff]
      %v1750 = vld [vmem:[%s1746 + $0x18] sm:$0x1f]
      %v1751 = vld [vmem:[%s1 + $0x6] sm:$0x1]
      %v1752 = vlaneseq
      %v1753 = vshrl.u32 %v1752, 7
      %v1754 = vsub.s32 0, %v1753
      %v1755 = vrot.slane %v1751, %v1754
      %v1756 = vmul.f32 %v1747, %v1755
      %v1757 = vmul.f32 %v1748, %v1755
      %v1758 = vmul.f32 %v1749, %v1755
      %v1759 = vmul.f32 %v1750, %v1755
      %v1760 = vadd.f32 %v1740, %v1756
      %v1761 = vadd.f32 %v1741, %v1757
      %v1762 = vadd.f32 %v1742, %v1758
      %v1763 = vadd.f32 %v1743, %v1759
      %v1764 = vld [vmem:[%s1 + $0x7] sm:$0x1]
      %v1765 = vlaneseq
      %v1766 = vshrl.u32 %v1765, 7
      %v1767 = vsub.s32 0, %v1766
      %v1768 = vrot.slane %v1764, %v1767
      %v1769 = vmul.f32 %v1747, %v1768
      %v1770 = vmul.f32 %v1748, %v1768
      %v1771 = vmul.f32 %v1749, %v1768
      %v1772 = vmul.f32 %v1750, %v1768
      %v1777 = vrot.slane %v1769, 1
      %v1778 = vrot.slane %v1770, 1
      %v1779 = vsel %vm230, %v1777, %v1778
      %v1780 = vrot.slane %v1771, 1
      %v1781 = vsel %vm230, %v1778, %v1780
      %v1782 = vrot.slane %v1772, 1
      %v1783 = vsel %vm230, %v1780, %v1782
      %v1788 = vadd.f32 %v1760, %v1779
      %v1789 = vadd.f32 %v1761, %v1781
      %v1790 = vadd.f32 %v1762, %v1783
      %v1791 = vadd.f32 %v1763, %v1782
      %v1792 = vld [vmem:[%s1 + $0x8] sm:$0x1]
      %v1793 = vlaneseq
      %v1794 = vshrl.u32 %v1793, 7
      %v1795 = vsub.s32 0, %v1794
      %v1796 = vrot.slane %v1792, %v1795
      %v1797 = vmul.f32 %v1747, %v1796
      %v1798 = vmul.f32 %v1748, %v1796
      %v1799 = vmul.f32 %v1749, %v1796
      %v1800 = vmul.f32 %v1750, %v1796
      %v1805 = vrot.slane %v1797, 2
      %v1806 = vrot.slane %v1798, 2
      %v1807 = vsel %vm259, %v1805, %v1806
      %v1808 = vrot.slane %v1799, 2
      %v1809 = vsel %vm259, %v1806, %v1808
      %v1810 = vrot.slane %v1800, 2
      %v1811 = vsel %vm259, %v1808, %v1810
      %v1816 = vadd.f32 %v1788, %v1807
      %v1817 = vadd.f32 %v1789, %v1809
      %v1818 = vadd.f32 %v1790, %v1811
      %v1819 = vadd.f32 %v1791, %v1810
      %v1820 = vadd.f32 %v1816, %v431
      %v1821 = vadd.f32 %v1817, %v431
      %v1822 = vadd.f32 %v1818, %v431
      %v1823 = vadd.f32 %v1819, %v431
      %s1824 = scalar_lea.vmem %s194, 192
      %1825 = vst.msk [vmem:[%s1824] sm:$0xff] %vm437, %v1820
      %1826 = vst.msk [vmem:[%s1824 + $0x8] sm:$0xff] %vm437, %v1821
      %1827 = vst.msk [vmem:[%s1824 + $0x10] sm:$0xff] %vm437, %v1822
      %1828 = vst.msk [vmem:[%s1824 + $0x18] sm:$0x7] %vm441, %v1823
      %v1829 = vld [vmem:[%s1515] sm:$0xff]
      %v1830 = vld [vmem:[%s1515 + $0x8] sm:$0xff]
      %v1831 = vld [vmem:[%s1515 + $0x10] sm:$0xff]
      %v1832 = vld [vmem:[%s1515 + $0x18] sm:$0x1f]
      %v1833 = vld [vmem:[%s1] sm:$0x1]
      %v1834 = vlaneseq
      %v1835 = vshrl.u32 %v1834, 7
      %v1836 = vsub.s32 0, %v1835
      %v1837 = vrot.slane %v1833, %v1836
      %v1838 = vmul.f32 %v1829, %v1837
      %v1839 = vmul.f32 %v1830, %v1837
      %v1840 = vmul.f32 %v1831, %v1837
      %v1841 = vmul.f32 %v1832, %v1837
      %v1842 = vadd.f32 %v1838, 0.0
      %v1843 = vadd.f32 %v1839, 0.0
      %v1844 = vadd.f32 %v1840, 0.0
      %v1845 = vadd.f32 %v1841, 0.0
      %v1846 = vld [vmem:[%s1 + $0x1] sm:$0x1]
      %v1847 = vlaneseq
      %v1848 = vshrl.u32 %v1847, 7
      %v1849 = vsub.s32 0, %v1848
      %v1850 = vrot.slane %v1846, %v1849
      %v1851 = vmul.f32 %v1829, %v1850
      %v1852 = vmul.f32 %v1830, %v1850
      %v1853 = vmul.f32 %v1831, %v1850
      %v1854 = vmul.f32 %v1832, %v1850
      %v1859 = vrot.slane %v1851, 1
      %v1860 = vrot.slane %v1852, 1
      %v1861 = vsel %vm230, %v1859, %v1860
      %v1862 = vrot.slane %v1853, 1
      %v1863 = vsel %vm230, %v1860, %v1862
      %v1864 = vrot.slane %v1854, 1
      %v1865 = vsel %vm230, %v1862, %v1864
      %v1870 = vadd.f32 %v1842, %v1861
      %v1871 = vadd.f32 %v1843, %v1863
      %v1872 = vadd.f32 %v1844, %v1865
      %v1873 = vadd.f32 %v1845, %v1864
      %v1874 = vld [vmem:[%s1 + $0x2] sm:$0x1]
      %v1875 = vlaneseq
      %v1876 = vshrl.u32 %v1875, 7
      %v1877 = vsub.s32 0, %v1876
      %v1878 = vrot.slane %v1874, %v1877
      %v1879 = vmul.f32 %v1829, %v1878
      %v1880 = vmul.f32 %v1830, %v1878
      %v1881 = vmul.f32 %v1831, %v1878
      %v1882 = vmul.f32 %v1832, %v1878
      %v1887 = vrot.slane %v1879, 2
      %v1888 = vrot.slane %v1880, 2
      %v1889 = vsel %vm259, %v1887, %v1888
      %v1890 = vrot.slane %v1881, 2
      %v1891 = vsel %vm259, %v1888, %v1890
      %v1892 = vrot.slane %v1882, 2
      %v1893 = vsel %vm259, %v1890, %v1892
      %v1898 = vadd.f32 %v1870, %v1889
      %v1899 = vadd.f32 %v1871, %v1891
      %v1900 = vadd.f32 %v1872, %v1893
      %v1901 = vadd.f32 %v1873, %v1892
      %v1902 = vld [vmem:[%s1746] sm:$0xff]
      %v1903 = vld [vmem:[%s1746 + $0x8] sm:$0xff]
      %v1904 = vld [vmem:[%s1746 + $0x10] sm:$0xff]
      %v1905 = vld [vmem:[%s1746 + $0x18] sm:$0x1f]
      %v1906 = vld [vmem:[%s1 + $0x3] sm:$0x1]
      %v1907 = vlaneseq
      %v1908 = vshrl.u32 %v1907, 7
      %v1909 = vsub.s32 0, %v1908
      %v1910 = vrot.slane %v1906, %v1909
      %v1911 = vmul.f32 %v1902, %v1910
      %v1912 = vmul.f32 %v1903, %v1910
      %v1913 = vmul.f32 %v1904, %v1910
      %v1914 = vmul.f32 %v1905, %v1910
      %v1915 = vadd.f32 %v1898, %v1911
      %v1916 = vadd.f32 %v1899, %v1912
      %v1917 = vadd.f32 %v1900, %v1913
      %v1918 = vadd.f32 %v1901, %v1914
      %v1919 = vld [vmem:[%s1 + $0x4] sm:$0x1]
      %v1920 = vlaneseq
      %v1921 = vshrl.u32 %v1920, 7
      %v1922 = vsub.s32 0, %v1921
      %v1923 = vrot.slane %v1919, %v1922
      %v1924 = vmul.f32 %v1902, %v1923
      %v1925 = vmul.f32 %v1903, %v1923
      %v1926 = vmul.f32 %v1904, %v1923
      %v1927 = vmul.f32 %v1905, %v1923
      %v1932 = vrot.slane %v1924, 1
      %v1933 = vrot.slane %v1925, 1
      %v1934 = vsel %vm230, %v1932, %v1933
      %v1935 = vrot.slane %v1926, 1
      %v1936 = vsel %vm230, %v1933, %v1935
      %v1937 = vrot.slane %v1927, 1
      %v1938 = vsel %vm230, %v1935, %v1937
      %v1943 = vadd.f32 %v1915, %v1934
      %v1944 = vadd.f32 %v1916, %v1936
      %v1945 = vadd.f32 %v1917, %v1938
      %v1946 = vadd.f32 %v1918, %v1937
      %v1947 = vld [vmem:[%s1 + $0x5] sm:$0x1]
      %v1948 = vlaneseq
      %v1949 = vshrl.u32 %v1948, 7
      %v1950 = vsub.s32 0, %v1949
      %v1951 = vrot.slane %v1947, %v1950
      %v1952 = vmul.f32 %v1902, %v1951
      %v1953 = vmul.f32 %v1903, %v1951
      %v1954 = vmul.f32 %v1904, %v1951
      %v1955 = vmul.f32 %v1905, %v1951
      %v1960 = vrot.slane %v1952, 2
      %v1961 = vrot.slane %v1953, 2
      %v1962 = vsel %vm259, %v1960, %v1961
      %v1963 = vrot.slane %v1954, 2
      %v1964 = vsel %vm259, %v1961, %v1963
      %v1965 = vrot.slane %v1955, 2
      %v1966 = vsel %vm259, %v1963, %v1965
      %v1971 = vadd.f32 %v1943, %v1962
      %v1972 = vadd.f32 %v1944, %v1964
      %v1973 = vadd.f32 %v1945, %v1966
      %v1974 = vadd.f32 %v1946, %v1965
      %s1975 = sadd.s32 %s196, 9
      %s1976 = smul.u32 %s1975, 32
      %s1977 = scalar_lea.vmem %s184, %s1976
      %v1978 = vld [vmem:[%s1977] sm:$0xff]
      %v1979 = vld [vmem:[%s1977 + $0x8] sm:$0xff]
      %v1980 = vld [vmem:[%s1977 + $0x10] sm:$0xff]
      %v1981 = vld [vmem:[%s1977 + $0x18] sm:$0x1f]
      %v1982 = vld [vmem:[%s1 + $0x6] sm:$0x1]
      %v1983 = vlaneseq
      %v1984 = vshrl.u32 %v1983, 7
      %v1985 = vsub.s32 0, %v1984
      %v1986 = vrot.slane %v1982, %v1985
      %v1987 = vmul.f32 %v1978, %v1986
      %v1988 = vmul.f32 %v1979, %v1986
      %v1989 = vmul.f32 %v1980, %v1986
      %v1990 = vmul.f32 %v1981, %v1986
      %v1991 = vadd.f32 %v1971, %v1987
      %v1992 = vadd.f32 %v1972, %v1988
      %v1993 = vadd.f32 %v1973, %v1989
      %v1994 = vadd.f32 %v1974, %v1990
      %v1995 = vld [vmem:[%s1 + $0x7] sm:$0x1]
      %v1996 = vlaneseq
      %v1997 = vshrl.u32 %v1996, 7
      %v1998 = vsub.s32 0, %v1997
      %v1999 = vrot.slane %v1995, %v1998
      %v2000 = vmul.f32 %v1978, %v1999
      %v2001 = vmul.f32 %v1979, %v1999
      %v2002 = vmul.f32 %v1980, %v1999
      %v2003 = vmul.f32 %v1981, %v1999
      %v2008 = vrot.slane %v2000, 1
      %v2009 = vrot.slane %v2001, 1
      %v2010 = vsel %vm230, %v2008, %v2009
      %v2011 = vrot.slane %v2002, 1
      %v2012 = vsel %vm230, %v2009, %v2011
      %v2013 = vrot.slane %v2003, 1
      %v2014 = vsel %vm230, %v2011, %v2013
      %v2019 = vadd.f32 %v1991, %v2010
      %v2020 = vadd.f32 %v1992, %v2012
      %v2021 = vadd.f32 %v1993, %v2014
      %v2022 = vadd.f32 %v1994, %v2013
      %v2023 = vld [vmem:[%s1 + $0x8] sm:$0x1]
      %v2024 = vlaneseq
      %v2025 = vshrl.u32 %v2024, 7
      %v2026 = vsub.s32 0, %v2025
      %v2027 = vrot.slane %v2023, %v2026
      %v2028 = vmul.f32 %v1978, %v2027
      %v2029 = vmul.f32 %v1979, %v2027
      %v2030 = vmul.f32 %v1980, %v2027
      %v2031 = vmul.f32 %v1981, %v2027
      %v2036 = vrot.slane %v2028, 2
      %v2037 = vrot.slane %v2029, 2
      %v2038 = vsel %vm259, %v2036, %v2037
      %v2039 = vrot.slane %v2030, 2
      %v2040 = vsel %vm259, %v2037, %v2039
      %v2041 = vrot.slane %v2031, 2
      %v2042 = vsel %vm259, %v2039, %v2041
      %v2047 = vadd.f32 %v2019, %v2038
      %v2048 = vadd.f32 %v2020, %v2040
      %v2049 = vadd.f32 %v2021, %v2042
      %v2050 = vadd.f32 %v2022, %v2041
      %v2051 = vadd.f32 %v2047, %v431
      %v2052 = vadd.f32 %v2048, %v431
      %v2053 = vadd.f32 %v2049, %v431
      %v2054 = vadd.f32 %v2050, %v431
      %s2055 = scalar_lea.vmem %s194, 224
      %2056 = vst.msk [vmem:[%s2055] sm:$0xff] %vm437, %v2051
      %2057 = vst.msk [vmem:[%s2055 + $0x8] sm:$0xff] %vm437, %v2052
      %2058 = vst.msk [vmem:[%s2055 + $0x10] sm:$0xff] %vm437, %v2053
      %2059 = vst.msk [vmem:[%s2055 + $0x18] sm:$0x7] %vm441, %v2054
      %v2060 = vld [vmem:[%s1746] sm:$0xff]
      %v2061 = vld [vmem:[%s1746 + $0x8] sm:$0xff]
      %v2062 = vld [vmem:[%s1746 + $0x10] sm:$0xff]
      %v2063 = vld [vmem:[%s1746 + $0x18] sm:$0x1f]
      %v2064 = vld [vmem:[%s1] sm:$0x1]
      %v2065 = vlaneseq
      %v2066 = vshrl.u32 %v2065, 7
      %v2067 = vsub.s32 0, %v2066
      %v2068 = vrot.slane %v2064, %v2067
      %v2069 = vmul.f32 %v2060, %v2068
      %v2070 = vmul.f32 %v2061, %v2068
      %v2071 = vmul.f32 %v2062, %v2068
      %v2072 = vmul.f32 %v2063, %v2068
      %v2073 = vadd.f32 %v2069, 0.0
      %v2074 = vadd.f32 %v2070, 0.0
      %v2075 = vadd.f32 %v2071, 0.0
      %v2076 = vadd.f32 %v2072, 0.0
      %v2077 = vld [vmem:[%s1 + $0x1] sm:$0x1]
      %v2078 = vlaneseq
      %v2079 = vshrl.u32 %v2078, 7
      %v2080 = vsub.s32 0, %v2079
      %v2081 = vrot.slane %v2077, %v2080
      %v2082 = vmul.f32 %v2060, %v2081
      %v2083 = vmul.f32 %v2061, %v2081
      %v2084 = vmul.f32 %v2062, %v2081
      %v2085 = vmul.f32 %v2063, %v2081
      %v2090 = vrot.slane %v2082, 1
      %v2091 = vrot.slane %v2083, 1
      %v2092 = vsel %vm230, %v2090, %v2091
      %v2093 = vrot.slane %v2084, 1
      %v2094 = vsel %vm230, %v2091, %v2093
      %v2095 = vrot.slane %v2085, 1
      %v2096 = vsel %vm230, %v2093, %v2095
      %v2101 = vadd.f32 %v2073, %v2092
      %v2102 = vadd.f32 %v2074, %v2094
      %v2103 = vadd.f32 %v2075, %v2096
      %v2104 = vadd.f32 %v2076, %v2095
      %v2105 = vld [vmem:[%s1 + $0x2] sm:$0x1]
      %v2106 = vlaneseq
      %v2107 = vshrl.u32 %v2106, 7
      %v2108 = vsub.s32 0, %v2107
      %v2109 = vrot.slane %v2105, %v2108
      %v2110 = vmul.f32 %v2060, %v2109
      %v2111 = vmul.f32 %v2061, %v2109
      %v2112 = vmul.f32 %v2062, %v2109
      %v2113 = vmul.f32 %v2063, %v2109
      %v2118 = vrot.slane %v2110, 2
      %v2119 = vrot.slane %v2111, 2
      %v2120 = vsel %vm259, %v2118, %v2119
      %v2121 = vrot.slane %v2112, 2
      %v2122 = vsel %vm259, %v2119, %v2121
      %v2123 = vrot.slane %v2113, 2
      %v2124 = vsel %vm259, %v2121, %v2123
      %v2129 = vadd.f32 %v2101, %v2120
      %v2130 = vadd.f32 %v2102, %v2122
      %v2131 = vadd.f32 %v2103, %v2124
      %v2132 = vadd.f32 %v2104, %v2123
      %v2133 = vld [vmem:[%s1977] sm:$0xff]
      %v2134 = vld [vmem:[%s1977 + $0x8] sm:$0xff]
      %v2135 = vld [vmem:[%s1977 + $0x10] sm:$0xff]
      %v2136 = vld [vmem:[%s1977 + $0x18] sm:$0x1f]
      %v2137 = vld [vmem:[%s1 + $0x3] sm:$0x1]
      %v2138 = vlaneseq
      %v2139 = vshrl.u32 %v2138, 7
      %v2140 = vsub.s32 0, %v2139
      %v2141 = vrot.slane %v2137, %v2140
      %v2142 = vmul.f32 %v2133, %v2141
      %v2143 = vmul.f32 %v2134, %v2141
      %v2144 = vmul.f32 %v2135, %v2141
      %v2145 = vmul.f32 %v2136, %v2141
      %v2146 = vadd.f32 %v2129, %v2142
      %v2147 = vadd.f32 %v2130, %v2143
      %v2148 = vadd.f32 %v2131, %v2144
      %v2149 = vadd.f32 %v2132, %v2145
      %v2150 = vld [vmem:[%s1 + $0x4] sm:$0x1]
      %v2151 = vlaneseq
      %v2152 = vshrl.u32 %v2151, 7
      %v2153 = vsub.s32 0, %v2152
      %v2154 = vrot.slane %v2150, %v2153
      %v2155 = vmul.f32 %v2133, %v2154
      %v2156 = vmul.f32 %v2134, %v2154
      %v2157 = vmul.f32 %v2135, %v2154
      %v2158 = vmul.f32 %v2136, %v2154
      %v2163 = vrot.slane %v2155, 1
      %v2164 = vrot.slane %v2156, 1
      %v2165 = vsel %vm230, %v2163, %v2164
      %v2166 = vrot.slane %v2157, 1
      %v2167 = vsel %vm230, %v2164, %v2166
      %v2168 = vrot.slane %v2158, 1
      %v2169 = vsel %vm230, %v2166, %v2168
      %v2174 = vadd.f32 %v2146, %v2165
      %v2175 = vadd.f32 %v2147, %v2167
      %v2176 = vadd.f32 %v2148, %v2169
      %v2177 = vadd.f32 %v2149, %v2168
      %v2178 = vld [vmem:[%s1 + $0x5] sm:$0x1]
      %v2179 = vlaneseq
      %v2180 = vshrl.u32 %v2179, 7
      %v2181 = vsub.s32 0, %v2180
      %v2182 = vrot.slane %v2178, %v2181
      %v2183 = vmul.f32 %v2133, %v2182
      %v2184 = vmul.f32 %v2134, %v2182
      %v2185 = vmul.f32 %v2135, %v2182
      %v2186 = vmul.f32 %v2136, %v2182
      %v2191 = vrot.slane %v2183, 2
      %v2192 = vrot.slane %v2184, 2
      %v2193 = vsel %vm259, %v2191, %v2192
      %v2194 = vrot.slane %v2185, 2
      %v2195 = vsel %vm259, %v2192, %v2194
      %v2196 = vrot.slane %v2186, 2
      %v2197 = vsel %vm259, %v2194, %v2196
      %v2202 = vadd.f32 %v2174, %v2193
      %v2203 = vadd.f32 %v2175, %v2195
      %v2204 = vadd.f32 %v2176, %v2197
      %v2205 = vadd.f32 %v2177, %v2196
      %s2206 = sadd.s32 %s196, 10
      %s2207 = smul.u32 %s2206, 32
      %s2208 = scalar_lea.vmem %s184, %s2207
      %v2209 = vld [vmem:[%s2208] sm:$0xff]
      %v2210 = vld [vmem:[%s2208 + $0x8] sm:$0xff]
      %v2211 = vld [vmem:[%s2208 + $0x10] sm:$0xff]
      %v2212 = vld [vmem:[%s2208 + $0x18] sm:$0x1f]
      %v2213 = vld [vmem:[%s1 + $0x6] sm:$0x1]
      %v2214 = vlaneseq
      %v2215 = vshrl.u32 %v2214, 7
      %v2216 = vsub.s32 0, %v2215
      %v2217 = vrot.slane %v2213, %v2216
      %v2218 = vmul.f32 %v2209, %v2217
      %v2219 = vmul.f32 %v2210, %v2217
      %v2220 = vmul.f32 %v2211, %v2217
      %v2221 = vmul.f32 %v2212, %v2217
      %v2222 = vadd.f32 %v2202, %v2218
      %v2223 = vadd.f32 %v2203, %v2219
      %v2224 = vadd.f32 %v2204, %v2220
      %v2225 = vadd.f32 %v2205, %v2221
      %v2226 = vld [vmem:[%s1 + $0x7] sm:$0x1]
      %v2227 = vlaneseq
      %v2228 = vshrl.u32 %v2227, 7
      %v2229 = vsub.s32 0, %v2228
      %v2230 = vrot.slane %v2226, %v2229
      %v2231 = vmul.f32 %v2209, %v2230
      %v2232 = vmul.f32 %v2210, %v2230
      %v2233 = vmul.f32 %v2211, %v2230
      %v2234 = vmul.f32 %v2212, %v2230
      %v2239 = vrot.slane %v2231, 1
      %v2240 = vrot.slane %v2232, 1
      %v2241 = vsel %vm230, %v2239, %v2240
      %v2242 = vrot.slane %v2233, 1
      %v2243 = vsel %vm230, %v2240, %v2242
      %v2244 = vrot.slane %v2234, 1
      %v2245 = vsel %vm230, %v2242, %v2244
      %v2250 = vadd.f32 %v2222, %v2241
      %v2251 = vadd.f32 %v2223, %v2243
      %v2252 = vadd.f32 %v2224, %v2245
      %v2253 = vadd.f32 %v2225, %v2244
      %v2254 = vld [vmem:[%s1 + $0x8] sm:$0x1]
      %v2255 = vlaneseq
      %v2256 = vshrl.u32 %v2255, 7
      %v2257 = vsub.s32 0, %v2256
      %v2258 = vrot.slane %v2254, %v2257
      %v2259 = vmul.f32 %v2209, %v2258
      %v2260 = vmul.f32 %v2210, %v2258
      %v2261 = vmul.f32 %v2211, %v2258
      %v2262 = vmul.f32 %v2212, %v2258
      %v2267 = vrot.slane %v2259, 2
      %v2268 = vrot.slane %v2260, 2
      %v2269 = vsel %vm259, %v2267, %v2268
      %v2270 = vrot.slane %v2261, 2
      %v2271 = vsel %vm259, %v2268, %v2270
      %v2272 = vrot.slane %v2262, 2
      %v2273 = vsel %vm259, %v2270, %v2272
      %v2278 = vadd.f32 %v2250, %v2269
      %v2279 = vadd.f32 %v2251, %v2271
      %v2280 = vadd.f32 %v2252, %v2273
      %v2281 = vadd.f32 %v2253, %v2272
      %v2282 = vadd.f32 %v2278, %v431
      %v2283 = vadd.f32 %v2279, %v431
      %v2284 = vadd.f32 %v2280, %v431
      %v2285 = vadd.f32 %v2281, %v431
      %s2286 = scalar_lea.vmem %s194, 256
      %2287 = vst.msk [vmem:[%s2286] sm:$0xff] %vm437, %v2282
      %2288 = vst.msk [vmem:[%s2286 + $0x8] sm:$0xff] %vm437, %v2283
      %2289 = vst.msk [vmem:[%s2286 + $0x10] sm:$0xff] %vm437, %v2284
      %2290 = vst.msk [vmem:[%s2286 + $0x18] sm:$0x7] %vm441, %v2285
      %s2291 = smul.u32 9, %s19
      %p2292 = scmp.lt.s32.totalorder %s18, 0
      %s2293 = scalar_select %p2292, %s18, 0
      %p2294 = scmp.lt.s32.totalorder %s2291, 26
      %s2295 = scalar_select %p2294, %s2291, 26
      %s2296 = smul.addr %s2295, 4
      %s2297 = smul.addr %s2293, 108
      %s2298 = sadd.s32 %s2296, %s2297
      %s2299 = smul.addr %s2298, 8
      %s2300 = scalar_lea.vmem %s3, %s2299
      // Predicated region
      $region33: #{depthwise_conv3x3.1} parent=31 // pred_check
        %p2301 = pneg %p114
      $region34: #{depthwise_conv3x3.1} parent=31 // pred_check_branch
        %2303 = sbr.rel (%p2301) target = $region36
      $region35: #{depthwise_conv3x3.1} parent=31 // pred_region
        %s2304 = smul.u32 9, %s19
      $region36: #{depthwise_conv3x3.1} parent=31 // pred_fallthru
        _
    $region32: #{depthwise_conv3x3.1} parent=5 // pred_fallthru
      _
    %p2305 = scmp.le.s32.totalorder 2, %s9
    // Predicated region
    $region37: #{depthwise_conv3x3.1} parent=5 // pred_check
      %p2306 = pneg %p2305
    $region38: #{depthwise_conv3x3.1} parent=5 // pred_check_branch
      %2308 = sbr.rel (%p2306) target = $region40
    $region39: #{depthwise_conv3x3.1} parent=5 // pred_region
      %s2309 = ssub.s32 %s9, 2
      // Predicated region
      $region41: #{depthwise_conv3x3.1} parent=39 // pred_check
        %p2310 = pneg %p120
      $region42: #{depthwise_conv3x3.1} parent=39 // pred_check_branch
        %2312 = sbr.rel (%p2310) target = $region44
      $region43: #{depthwise_conv3x3.1} parent=39 // pred_region
        %s2313 = smul.u32 9, %s21
        %p2314 = scmp.lt.s32.totalorder %s20, 0
        %s2315 = scalar_select %p2314, %s20, 0
        %p2316 = scmp.lt.s32.totalorder %s2313, 26
        %s2317 = scalar_select %p2316, %s2313, 26
        %s2318 = smul.addr %s2317, 4
        %s2319 = smul.addr %s2315, 108
        %s2320 = sadd.s32 %s2318, %s2319
        %s2321 = smul.addr %s2320, 8
        %s2322 = scalar_lea.vmem %s3, %s2321
      $region44: #{depthwise_conv3x3.1} parent=39 // pred_fallthru
        _
    $region40: #{depthwise_conv3x3.1} parent=5 // pred_fallthru
      _
  $region6: #{depthwise_conv3x3.1} parent=0 // loop_footer
    %s13 = sadd.s32 1, %s9
  $region7: #{depthwise_conv3x3.1} parent=0 // loop_footer_branch
    %8 = sbr.rel target = $region3
  $region8: #{depthwise_conv3x3.1} parent=0 // loop_exit
    _

</llo_original>
